<compile_context>
chip_gen: v7x
topology: tpu7x:2x2x1
jax: 0.10.0
libtpu: 0.0.40
codegen_flags: <defaults>
</compile_context>

<pallas_src>
import math
import functools

import numpy as np
import jax
import jax.numpy as jnp
from jax import lax
from jax.experimental import pallas as pl
from jax.experimental.pallas import tpu as pltpu

# ----------------------------- scaled-down config -----------------------------
BATCH = 2
IN_CHANNELS = 4            # = input_history (num_channels of the patch conv)
IMAGE_SIZE = 12
PATCH_SIZE = 2
WINDOW_SIZE = 3
DEPTHS = (2, 2)
NUM_HEADS = (2, 4)
HIDDEN_DIM = 32
EMBED_DIM = HIDDEN_DIM // 2 ** (len(DEPTHS) - 1)
OUT_DIM = 8
MLP_RATIO = 4.0
CPB_HIDDEN = 512           # continuous-position-bias MLP hidden size (HF Swinv2)
LN_EPS = 1e-5
NEG_INF = -1e9
_SQRT_HALF = 1.0 / math.sqrt(2.0)


# --------------------------- in-kernel math helpers ----------------------------
def _bf16(x):
    return x.astype(jnp.bfloat16)


def _ln(x, g, b):
    mean = jnp.mean(x, axis=-1, keepdims=True)
    var = jnp.mean(jnp.square(x - mean), axis=-1, keepdims=True)
    return (x - mean) * lax.rsqrt(var + LN_EPS) * g + b


def _gelu(x):
    # exact (erf) GELU, matching torch / HF "gelu"
    return 0.5 * x * (1.0 + lax.erf(x * _SQRT_HALF))


# ------------------------------ Pallas kernels --------------------------------
def _linear_ln_kernel(x_ref, w_ref, b_ref, g_ref, be_ref, o_ref):
    # LN(x @ w + b)   (patch embedding, patch merging)
    y = jnp.dot(_bf16(x_ref[...]), w_ref[...],
                preferred_element_type=jnp.float32) + b_ref[...]
    o_ref[...] = _ln(y, g_ref[...], be_ref[...])


def _ln_linear_kernel(x_ref, g_ref, be_ref, w_ref, b_ref, o_ref):
    # LN(x) @ w + b   (final encoder LayerNorm + fc head)
    xn = _ln(x_ref[...], g_ref[...], be_ref[...])
    o_ref[...] = jnp.dot(_bf16(xn), w_ref[...],
                         preferred_element_type=jnp.float32) + b_ref[...]


def _swin_block_kernel(heads, Dh,
                       x_ref, wqkv_ref, bqkv_ref, wo_ref, bo_ref, bias_ref,
                       g1_ref, be1_ref, w1_ref, bf1_ref, w2_ref, bf2_ref,
                       g2_ref, be2_ref, scale_ref, o_ref):
    # Fully-fused Swin-v2 block over all windows/tokens (T = B*nW*N tokens):
    #   packed QKV -> cosine attention (block-diag bias enforces the windows)
    #   -> out-proj -> post-LN residual -> fc1+GELU+fc2 -> post-LN residual.
    T, C = x_ref.shape
    x = x_ref[...]                                                   # (T, C) f32

    # packed QKV projection: one (T, C) @ (C, 3C) MXU matmul
    qkv = jnp.dot(_bf16(x), wqkv_ref[...],
                  preferred_element_type=jnp.float32) + bqkv_ref[...]   # (T, 3C)

    acc = jnp.zeros((T, C), jnp.float32)
    for h in range(heads):                                  # static unroll (2 or 4)
        q = qkv[:, h * Dh:(h + 1) * Dh]                     # (T, Dh)
        k = qkv[:, C + h * Dh:C + (h + 1) * Dh]
        v = qkv[:, 2 * C + h * Dh:2 * C + (h + 1) * Dh]
        # F.normalize(eps=1e-12) semantics via EUP rsqrt (clamp the squared norm)
        qn = q * lax.rsqrt(jnp.maximum(jnp.sum(q * q, axis=-1, keepdims=True), 1e-24))
        kn = k * lax.rsqrt(jnp.maximum(jnp.sum(k * k, axis=-1, keepdims=True), 1e-24))
        # f32 cosine logits (Dh=8 contraction), per-head logit scale from SMEM,
        # block-diagonal bias = rel-pos bias + shift mask (+ -1e9 across windows)
        s = jnp.einsum('nd,md->nm', qn, kn,
                       preferred_element_type=jnp.float32)           # (T, T)
        s = s * scale_ref[h] + bias_ref[h]
        # f32 softmax; EUP exp + approx reciprocal
        s = s - jnp.max(s, axis=-1, keepdims=True)
        p = jnp.exp(s)
        p = p * pl.reciprocal(jnp.sum(p, axis=-1, keepdims=True), approx=True)
        ctx = jnp.dot(_bf16(p), _bf16(v),
                      preferred_element_type=jnp.float32)             # (T, Dh)
        # out-projection folded per head: concat_h(ctx_h) @ wo == sum_h ctx_h @ wo[h]
        acc = acc + jnp.dot(_bf16(ctx), wo_ref[h],
                            preferred_element_type=jnp.float32)       # (T, C)
    attn = acc + bo_ref[...]

    # Swin-v2 post-norm residual (per-token -> identical in window layout)
    y = x + _ln(attn, g1_ref[...], be1_ref[...])

    # fused MLP half-block: y + LN(fc2(gelu(fc1(y))))
    h1 = jnp.dot(_bf16(y), w1_ref[...], preferred_element_type=jnp.float32) + bf1_ref[...]
    h1 = _gelu(h1)
    h2 = jnp.dot(_bf16(h1), w2_ref[...], preferred_element_type=jnp.float32) + bf2_ref[...]
    o_ref[...] = y + _ln(h2, g2_ref[...], be2_ref[...])


# ---------------------------- pallas_call wrappers -----------------------------
def _full_spec(shape):
    zeros = (0,) * len(shape)
    return pl.BlockSpec(shape, lambda i, _z=zeros: _z)


def _call_full(kernel, out_shape, *args):
    """Single-step grid, whole-array VMEM blocks (shapes are tiny here)."""
    return pl.pallas_call(
        kernel,
        out_shape=out_shape,
        grid=(1,),
        in_specs=[_full_spec(a.shape) for a in args],
        out_specs=_full_spec(out_shape.shape),
        compiler_params=pltpu.CompilerParams(dimension_semantics=("arbitrary",)),
    )(*args)


def linear_ln(x, w, b, g, be):
    M, K = x.shape
    N = w.shape[1]
    if b is None:
        b = jnp.zeros((N,), jnp.float32)
    return _call_full(
        _linear_ln_kernel, jax.ShapeDtypeStruct((M, N), jnp.float32),
        x.astype(jnp.float32), w.astype(jnp.bfloat16),
        b.reshape(1, N).astype(jnp.float32),
        g.reshape(1, N).astype(jnp.float32), be.reshape(1, N).astype(jnp.float32))


def ln_linear(x, g, be, w, b):
    M, K = x.shape
    N = w.shape[1]
    return _call_full(
        _ln_linear_kernel, jax.ShapeDtypeStruct((M, N), jnp.float32),
        x.astype(jnp.float32),
        g.reshape(1, K).astype(jnp.float32), be.reshape(1, K).astype(jnp.float32),
        w.astype(jnp.bfloat16), b.reshape(1, N).astype(jnp.float32))


def swin_attn_mlp_block(tokens, blk, bias_full, scale, heads, Dh):
    """Fused attention + MLP Swin block on flat tokens (T, C)."""
    T, C = tokens.shape
    Hd = blk["fc1_w"].shape[1]
    # packed q|k|v weight (key has no bias in Swin-v2)
    wqkv = jnp.concatenate([blk["wq"], blk["wk"], blk["wv"]], axis=1).astype(jnp.bfloat16)
    bqkv = jnp.concatenate(
        [blk["bq"], jnp.zeros((C,), jnp.float32), blk["bv"]]).reshape(1, 3 * C)

    args = (
        tokens.astype(jnp.float32),                                   # x      (T, C)
        wqkv,                                                         # wqkv   (C, 3C) bf16
        bqkv.astype(jnp.float32),                                     # bqkv   (1, 3C)
        blk["wo"].reshape(heads, Dh, C).astype(jnp.bfloat16),         # wo     (h, Dh, C) bf16
        blk["bo"].reshape(1, C).astype(jnp.float32),                  # bo
        bias_full.astype(jnp.float32),                                # bias   (h, T, T)
        blk["ln1_g"].reshape(1, C).astype(jnp.float32),
        blk["ln1_b"].reshape(1, C).astype(jnp.float32),
        blk["fc1_w"].astype(jnp.bfloat16),                            # (C, Hd) bf16
        blk["fc1_b"].reshape(1, Hd).astype(jnp.float32),
        blk["fc2_w"].astype(jnp.bfloat16),                            # (Hd, C) bf16
        blk["fc2_b"].reshape(1, C).astype(jnp.float32),
        blk["ln2_g"].reshape(1, C).astype(jnp.float32),
        blk["ln2_b"].reshape(1, C).astype(jnp.float32),
        scale.astype(jnp.float32),                                    # (heads,) -> SMEM
    )
    in_specs = [_full_spec(a.shape) for a in args[:-1]]
    in_specs.append(pl.BlockSpec(memory_space=pltpu.MemorySpace.SMEM))   # per-head scalars

    kern = functools.partial(_swin_block_kernel, heads, Dh)
    return pl.pallas_call(
        kern,
        out_shape=jax.ShapeDtypeStruct((T, C), jnp.float32),
        grid=(1,),
        in_specs=in_specs,
        out_specs=_full_spec((T, C)),
        compiler_params=pltpu.CompilerParams(dimension_semantics=("arbitrary",)),
    )(*args)


# ------------------------- static (numpy) Swin tables --------------------------
def _relative_position_index(ws):
    coords = np.stack(np.meshgrid(np.arange(ws), np.arange(ws), indexing="ij"))
    coords_flat = coords.reshape(2, -1)
    rel = coords_flat[:, :, None] - coords_flat[:, None, :]
    rel = rel.transpose(1, 2, 0).astype(np.int64)
    rel[:, :, 0] += ws - 1
    rel[:, :, 1] += ws - 1
    rel[:, :, 0] *= 2 * ws - 1
    return rel.sum(-1)                                     # (N, N)


def _relative_coords_table(ws):
    rh = np.arange(-(ws - 1), ws, dtype=np.float32)
    rw = np.arange(-(ws - 1), ws, dtype=np.float32)
    table = np.stack(np.meshgrid(rh, rw, indexing="ij"), axis=-1)  # (2ws-1, 2ws-1, 2)
    table = table / (ws - 1)
    table = table * 8.0
    table = np.sign(table) * np.log2(np.abs(table) + 1.0) / np.log2(8.0)
    return table.reshape(-1, 2).astype(np.float32)          # ((2ws-1)^2, 2)


def _shift_attn_mask(H, W, ws, shift):
    img_mask = np.zeros((1, H, W, 1), dtype=np.float32)
    slices = (slice(0, -ws), slice(-ws, -shift), slice(-shift, None))
    cnt = 0
    for hs in slices:
        for wsl in slices:
            img_mask[:, hs, wsl, :] = cnt
            cnt += 1
    mw = img_mask.reshape(1, H // ws, ws, W // ws, ws, 1).transpose(0, 1, 3, 2, 4, 5)
    mw = mw.reshape(-1, ws * ws)
    attn_mask = mw[:, None, :] - mw[:, :, None]
    return np.where(attn_mask != 0, -100.0, 0.0).astype(np.float32)   # (nW, N, N)


# ------------------------------- JAX glue -------------------------------------
def window_partition(x, ws):
    B, H, W, C = x.shape
    x = x.reshape(B, H // ws, ws, W // ws, ws, C)
    return x.transpose(0, 1, 3, 2, 4, 5).reshape(-1, ws * ws, C)


def window_reverse(windows, ws, H, W, C):
    B = windows.shape[0] // ((H // ws) * (W // ws))
    x = windows.reshape(B, H // ws, W // ws, ws, ws, C)
    return x.transpose(0, 1, 3, 2, 4, 5).reshape(B, H, W, C)


def swin_block(x, H, W, blk, num_heads, ws, shift):
    B, L, C = x.shape
    N = ws * ws
    Dh = C // num_heads

    xs = x.reshape(B, H, W, C)
    if shift > 0:
        xs = jnp.roll(xs, shift=(-shift, -shift), axis=(1, 2))
    windows = window_partition(xs, ws)                 # (BW, N, C); also the residual input
    BW = windows.shape[0]
    nW = BW // B
    T = BW * N                                         # toy-size: T <= 128

    # log-CPB relative position bias (parameter-only) in plain JAX (tiny matmuls,
    # keep out of the Pallas hot path), + shift mask, embedded as a block-diagonal
    # (heads, T, T) additive bias with -1e9 across windows (off-window softmax
    # weights underflow to exactly 0 -> identical to per-window attention).
    table = jnp.asarray(_relative_coords_table(ws))
    cpb = jax.nn.relu(table @ blk["cpb_w1"] + blk["cpb_b1"]) @ blk["cpb_w2"]     # (Tbl, heads)
    rel_idx = jnp.asarray(_relative_position_index(ws).reshape(-1))
    rel_bias = jnp.take(cpb, rel_idx, axis=0).reshape(N, N, num_heads)
    rel_bias = 16.0 * jax.nn.sigmoid(jnp.transpose(rel_bias, (2, 0, 1)))          # (heads, N, N)
    win_bias = jnp.broadcast_to(rel_bias[:, None], (num_heads, nW, N, N))
    if shift > 0:
        win_bias = win_bias + jnp.asarray(_shift_attn_mask(H, W, ws, shift))[None]
    bw_bias = jnp.tile(win_bias, (1, B, 1, 1))                                    # (heads, BW, N, N)
    same_win = jnp.eye(BW, dtype=bool)
    bias_full = jnp.where(same_win[None, :, None, :, None],
                          bw_bias[:, :, :, None, :],
                          NEG_INF).reshape(num_heads, T, T)

    # clamped-exp logit scale (per head), applied to the f32 scores inside the kernel
    scale = jnp.exp(jnp.minimum(blk["logit_scale"].reshape(num_heads), math.log(100.0)))

    # ONE fused pallas_call: qkv + cosine attention + out-proj + LN-residual + MLP + LN-residual
    out = swin_attn_mlp_block(windows.reshape(T, C), blk, bias_full, scale, num_heads, Dh)

    xs = window_reverse(out.reshape(BW, ws, ws, C), ws, H, W, C)
    if shift > 0:
        xs = jnp.roll(xs, shift=(shift, shift), axis=(1, 2))
    return xs.reshape(B, L, C)


def patch_merging(x, H, W, pm):
    B, L, C = x.shape
    xs = x.reshape(B, H, W, C)
    x0 = xs[:, 0::2, 0::2, :]
    x1 = xs[:, 1::2, 0::2, :]
    x2 = xs[:, 0::2, 1::2, :]
    x3 = xs[:, 1::2, 1::2, :]
    cat = jnp.concatenate([x0, x1, x2, x3], axis=-1).reshape(B * (H // 2) * (W // 2), 4 * C)
    red = linear_ln(cat, pm["red_w"], None, pm["ln_g"], pm["ln_b"])   # reduction (no bias) + norm
    return red.reshape(B, (H // 2) * (W // 2), 2 * C)


def swin_forward(params, tec):
    # layout: tec is NCHW (B, C, H, W)
    B, C, H, W = tec.shape
    p = PATCH_SIZE
    Hp, Wp = H // p, W // p

    # patch embedding: Conv2d(k=stride=patch) as matmul over flattened patches, fused with LN
    # (flatten order (C, ph, pw) matches the conv-weight reshape; random init here)
    patches = tec.reshape(B, C, Hp, p, Wp, p).transpose(0, 2, 4, 1, 3, 5).reshape(
        B * Hp * Wp, C * p * p)
    x = linear_ln(patches, params["embed_w"], params["embed_b"],
                  params["embed_ln_g"], params["embed_ln_b"])
    x = x.reshape(B, Hp * Wp, EMBED_DIM)

    curH, curW = Hp, Wp
    for si, stage in enumerate(params["stages"]):
        heads = NUM_HEADS[si]
        for bi, blk in enumerate(stage["blocks"]):
            ws = WINDOW_SIZE
            shift = 0 if bi % 2 == 0 else WINDOW_SIZE // 2
            if min(curH, curW) <= ws:        # HF set_shift_and_window_size
                shift = 0
                ws = min(curH, curW)
            x = swin_block(x, curH, curW, blk, heads, ws, shift)
        if stage["downsample"] is not None:
            x = patch_merging(x, curH, curW, stage["downsample"])
            curH //= 2
            curW //= 2

    # Swinv2Model final LayerNorm -> last_hidden_state, then the module's fc (fused)
    D = x.shape[-1]
    out = ln_linear(x.reshape(-1, D), params["final_ln_g"], params["final_ln_b"],
                    params["fc_w"], params["fc_b"])
    return out.reshape(B, -1, OUT_DIM)


# ------------------------------ deterministic init -----------------------------
def init_params(key):
    def nrm(k, shape, scale=0.02):
        return scale * jax.random.normal(k, shape, jnp.float32)

    keys = iter(jax.random.split(key, 256))
    nk = lambda: next(keys)

    params = {
        "embed_w": nrm(nk(), (IN_CHANNELS * PATCH_SIZE * PATCH_SIZE, EMBED_DIM)),
        "embed_b": jnp.zeros((EMBED_DIM,), jnp.float32),
        "embed_ln_g": jnp.ones((EMBED_DIM,), jnp.float32),
        "embed_ln_b": jnp.zeros((EMBED_DIM,), jnp.float32),
        "stages": [],
    }
    dim = EMBED_DIM
    for si, depth in enumerate(DEPTHS):
        heads = NUM_HEADS[si]
        hdim = int(MLP_RATIO * dim)
        blocks = []
        for _ in range(depth):
            blocks.append({
                "wq": nrm(nk(), (dim, dim)), "bq": jnp.zeros((dim,), jnp.float32),
                "wk": nrm(nk(), (dim, dim)),
                "wv": nrm(nk(), (dim, dim)), "bv": jnp.zeros((dim,), jnp.float32),
                "wo": nrm(nk(), (dim, dim)), "bo": jnp.zeros((dim,), jnp.float32),
                "logit_scale": jnp.full((heads, 1, 1), math.log(10.0), jnp.float32),
                "cpb_w1": nrm(nk(), (2, CPB_HIDDEN)),
                "cpb_b1": jnp.zeros((CPB_HIDDEN,), jnp.float32),
                "cpb_w2": nrm(nk(), (CPB_HIDDEN, heads)),
                "ln1_g": jnp.ones((dim,), jnp.float32), "ln1_b": jnp.zeros((dim,), jnp.float32),
                "fc1_w": nrm(nk(), (dim, hdim)), "fc1_b": jnp.zeros((hdim,), jnp.float32),
                "fc2_w": nrm(nk(), (hdim, dim)), "fc2_b": jnp.zeros((dim,), jnp.float32),
                "ln2_g": jnp.ones((dim,), jnp.float32), "ln2_b": jnp.zeros((dim,), jnp.float32),
            })
        downsample = None
        if si < len(DEPTHS) - 1:
            downsample = {
                "red_w": nrm(nk(), (4 * dim, 2 * dim)),
                "ln_g": jnp.ones((2 * dim,), jnp.float32),
                "ln_b": jnp.zeros((2 * dim,), jnp.float32),
            }
        params["stages"].append({"blocks": blocks, "downsample": downsample})
        if si < len(DEPTHS) - 1:
            dim *= 2

    params["final_ln_g"] = jnp.ones((HIDDEN_DIM,), jnp.float32)
    params["final_ln_b"] = jnp.zeros((HIDDEN_DIM,), jnp.float32)
    params["fc_w"] = nrm(nk(), (HIDDEN_DIM, OUT_DIM))
    params["fc_b"] = jnp.zeros((OUT_DIM,), jnp.float32)
    return params


# ----------------------------------- main --------------------------------------
if __name__ == "__main__":
    key = jax.random.PRNGKey(0)
    pkey, xkey = jax.random.split(key)
    params = init_params(pkey)
    tec = jax.random.normal(xkey, (BATCH, IN_CHANNELS, IMAGE_SIZE, IMAGE_SIZE), jnp.float32)

    out = jax.jit(swin_forward)(params, tec)
    out = jax.block_until_ready(out)

    final_tokens = (IMAGE_SIZE // PATCH_SIZE // 2 ** (len(DEPTHS) - 1)) ** 2
    assert out.shape == (BATCH, final_tokens, OUT_DIM), out.shape
    assert bool(jnp.all(jnp.isfinite(out)))
    # TODO(synk): the pretrained branch (Swinv2ForMaskedImageModeling decoder head +
    # random bool_masked_pos) and the unused TransformerDecoder are not on the fc
    # forward path and are not implemented.
    print("KERNEL_OK")
</pallas_src>

<mosaic_0001>
module attributes {stable_mosaic.version = 11 : i64} {
  func.func @_linear_ln_kernel(%arg0: i32, %arg1: memref<72x16xf32, #tpu.memory_space<vmem>>, %arg2: memref<16x16xbf16, #tpu.memory_space<vmem>>, %arg3: memref<1x16xf32, #tpu.memory_space<vmem>>, %arg4: memref<1x16xf32, #tpu.memory_space<vmem>>, %arg5: memref<1x16xf32, #tpu.memory_space<vmem>>, %arg6: memref<72x16xf32, #tpu.memory_space<vmem>>) attributes {dimension_semantics = [#tpu.dimension_semantics<arbitrary>], iteration_bounds = array<i64: 1>, scalar_prefetch = 0 : i64, scratch_operands = 0 : i64, tpu.core_type = #tpu.core_type<tc>, window_params = [{pipeline_mode = #tpu.pipeline_mode<synchronous>, transform_indices = @transform_0, window_bounds = array<i64: 72, 16>}, {pipeline_mode = #tpu.pipeline_mode<synchronous>, transform_indices = @transform_1, window_bounds = array<i64: 16, 16>}, {pipeline_mode = #tpu.pipeline_mode<synchronous>, transform_indices = @transform_2, window_bounds = array<i64: 1, 16>}, {pipeline_mode = #tpu.pipeline_mode<synchronous>, transform_indices = @transform_3, window_bounds = array<i64: 1, 16>}, {pipeline_mode = #tpu.pipeline_mode<synchronous>, transform_indices = @transform_4, window_bounds = array<i64: 1, 16>}, {pipeline_mode = #tpu.pipeline_mode<synchronous>, transform_indices = @transform_5, window_bounds = array<i64: 72, 16>}]} {
    %c0 = arith.constant 0 : index
    %c0_0 = arith.constant 0 : index
    %0 = vector.load %arg1[%c0, %c0_0] : memref<72x16xf32, #tpu.memory_space<vmem>>, vector<72x16xf32>
    %1 = arith.truncf %0 : vector<72x16xf32> to vector<72x16xbf16>
    %c0_1 = arith.constant 0 : index
    %c0_2 = arith.constant 0 : index
    %2 = vector.load %arg2[%c0_1, %c0_2] : memref<16x16xbf16, #tpu.memory_space<vmem>>, vector<16x16xbf16>
    %cst = arith.constant dense<0.000000e+00> : vector<72x16xf32>
    %3 = tpu.matmul %1, %2, %cst {dimension_numbers = #tpu.dot_dimension_numbers<[1], [0], [0], [1], [0, 0, 1, 1], [], []>} : vector<72x16xbf16>, vector<16x16xbf16>, vector<72x16xf32> -> vector<72x16xf32>
    %c0_3 = arith.constant 0 : index
    %c0_4 = arith.constant 0 : index
    %4 = vector.load %arg3[%c0_3, %c0_4] : memref<1x16xf32, #tpu.memory_space<vmem>>, vector<1x16xf32>
    %5 = vector.broadcast %4 : vector<1x16xf32> to vector<72x16xf32>
    %6 = arith.addf %3, %5 : vector<72x16xf32>
    %c0_5 = arith.constant 0 : index
    %c0_6 = arith.constant 0 : index
    %7 = vector.load %arg4[%c0_5, %c0_6] : memref<1x16xf32, #tpu.memory_space<vmem>>, vector<1x16xf32>
    %c0_7 = arith.constant 0 : index
    %c0_8 = arith.constant 0 : index
    %8 = vector.load %arg5[%c0_7, %c0_8] : memref<1x16xf32, #tpu.memory_space<vmem>>, vector<1x16xf32>
    %cst_9 = arith.constant dense<0.000000e+00> : vector<72xf32>
    %9 = vector.multi_reduction <add>, %6, %cst_9 [1] : vector<72x16xf32> to vector<72xf32>
    %10 = vector.shape_cast %9 : vector<72xf32> to vector<72x1xf32>
    %cst_10 = arith.constant 1.600000e+01 : f32
    %11 = vector.broadcast %cst_10 : f32 to vector<72x1xf32>
    %12 = arith.divf %10, %11 : vector<72x1xf32>
    %13 = vector.broadcast %12 : vector<72x1xf32> to vector<72x16xf32>
    %14 = arith.subf %6, %13 : vector<72x16xf32>
    %15 = arith.mulf %14, %14 : vector<72x16xf32>
    %cst_11 = arith.constant dense<0.000000e+00> : vector<72xf32>
    %16 = vector.multi_reduction <add>, %15, %cst_11 [1] : vector<72x16xf32> to vector<72xf32>
    %17 = vector.shape_cast %16 : vector<72xf32> to vector<72x1xf32>
    %cst_12 = arith.constant 1.600000e+01 : f32
    %18 = vector.broadcast %cst_12 : f32 to vector<72x1xf32>
    %19 = arith.divf %17, %18 : vector<72x1xf32>
    %20 = vector.broadcast %12 : vector<72x1xf32> to vector<72x16xf32>
    %21 = arith.subf %6, %20 : vector<72x16xf32>
    %cst_13 = arith.constant 9.99999974E-6 : f32
    %22 = vector.broadcast %cst_13 : f32 to vector<72x1xf32>
    %23 = arith.addf %19, %22 : vector<72x1xf32>
    %24 = math.rsqrt %23 : vector<72x1xf32>
    %25 = vector.broadcast %24 : vector<72x1xf32> to vector<72x16xf32>
    %26 = arith.mulf %21, %25 : vector<72x16xf32>
    %27 = vector.broadcast %7 : vector<1x16xf32> to vector<72x16xf32>
    %28 = arith.mulf %26, %27 : vector<72x16xf32>
    %29 = vector.broadcast %8 : vector<1x16xf32> to vector<72x16xf32>
    %30 = arith.addf %28, %29 : vector<72x16xf32>
    %c0_14 = arith.constant 0 : index
    %c0_15 = arith.constant 0 : index
    %31 = vector.load %arg6[%c0_14, %c0_15] : memref<72x16xf32, #tpu.memory_space<vmem>>, vector<72x16xf32>
    tpu.vector_store %arg6[%c0_14, %c0_15], %30 {strides = array<i32>} : memref<72x16xf32, #tpu.memory_space<vmem>>, vector<72x16xf32>,
    return
  }
  func.func @transform_0(%arg0: i32) -> (i32, i32) {
    %c0_i32 = arith.constant 0 : i32
    %c0_i32_0 = arith.constant 0 : i32
    %c0_i32_1 = arith.constant 0 : i32
    return %c0_i32, %c0_i32_0 : i32, i32
  }
  func.func @transform_1(%arg0: i32) -> (i32, i32) {
    %c0_i32 = arith.constant 0 : i32
    %c0_i32_0 = arith.constant 0 : i32
    %c0_i32_1 = arith.constant 0 : i32
    return %c0_i32, %c0_i32_0 : i32, i32
  }
  func.func @transform_2(%arg0: i32) -> (i32, i32) {
    %c0_i32 = arith.constant 0 : i32
    %c0_i32_0 = arith.constant 0 : i32
    %c0_i32_1 = arith.constant 0 : i32
    return %c0_i32, %c0_i32_0 : i32, i32
  }
  func.func @transform_3(%arg0: i32) -> (i32, i32) {
    %c0_i32 = arith.constant 0 : i32
    %c0_i32_0 = arith.constant 0 : i32
    %c0_i32_1 = arith.constant 0 : i32
    return %c0_i32, %c0_i32_0 : i32, i32
  }
  func.func @transform_4(%arg0: i32) -> (i32, i32) {
    %c0_i32 = arith.constant 0 : i32
    %c0_i32_0 = arith.constant 0 : i32
    %c0_i32_1 = arith.constant 0 : i32
    return %c0_i32, %c0_i32_0 : i32, i32
  }
  func.func @transform_5(%arg0: i32) -> (i32, i32) {
    %c0_i32 = arith.constant 0 : i32
    %c0_i32_0 = arith.constant 0 : i32
    %c0_i32_1 = arith.constant 0 : i32
    return %c0_i32, %c0_i32_0 : i32, i32
  }
}

module attributes {stable_mosaic.version = 11 : i64} {
  func.func @_swin_block_kernel(%arg0: i32, %arg1: memref<72x16xf32, #tpu.memory_space<vmem>>, %arg2: memref<16x48xbf16, #tpu.memory_space<vmem>>, %arg3: memref<1x48xf32, #tpu.memory_space<vmem>>, %arg4: memref<2x8x16xbf16, #tpu.memory_space<vmem>>, %arg5: memref<1x16xf32, #tpu.memory_space<vmem>>, %arg6: memref<2x72x72xf32, #tpu.memory_space<vmem>>, %arg7: memref<1x16xf32, #tpu.memory_space<vmem>>, %arg8: memref<1x16xf32, #tpu.memory_space<vmem>>, %arg9: memref<16x64xbf16, #tpu.memory_space<vmem>>, %arg10: memref<1x64xf32, #tpu.memory_space<vmem>>, %arg11: memref<64x16xbf16, #tpu.memory_space<vmem>>, %arg12: memref<1x16xf32, #tpu.memory_space<vmem>>, %arg13: memref<1x16xf32, #tpu.memory_space<vmem>>, %arg14: memref<1x16xf32, #tpu.memory_space<vmem>>, %arg15: memref<2xf32, #tpu.memory_space<smem>>, %arg16: memref<72x16xf32, #tpu.memory_space<vmem>>) attributes {dimension_semantics = [#tpu.dimension_semantics<arbitrary>], iteration_bounds = array<i64: 1>, scalar_prefetch = 0 : i64, scratch_operands = 0 : i64, tpu.core_type = #tpu.core_type<tc>, window_params = [{pipeline_mode = #tpu.pipeline_mode<synchronous>, transform_indices = @transform_0, window_bounds = array<i64: 72, 16>}, {pipeline_mode = #tpu.pipeline_mode<synchronous>, transform_indices = @transform_1, window_bounds = array<i64: 16, 48>}, {pipeline_mode = #tpu.pipeline_mode<synchronous>, transform_indices = @transform_2, window_bounds = array<i64: 1, 48>}, {pipeline_mode = #tpu.pipeline_mode<synchronous>, transform_indices = @transform_3, window_bounds = array<i64: 2, 8, 16>}, {pipeline_mode = #tpu.pipeline_mode<synchronous>, transform_indices = @transform_4, window_bounds = array<i64: 1, 16>}, {pipeline_mode = #tpu.pipeline_mode<synchronous>, transform_indices = @transform_5, window_bounds = array<i64: 2, 72, 72>}, {pipeline_mode = #tpu.pipeline_mode<synchronous>, transform_indices = @transform_6, window_bounds = array<i64: 1, 16>}, {pipeline_mode = #tpu.pipeline_mode<synchronous>, transform_indices = @transform_7, window_bounds = array<i64: 1, 16>}, {pipeline_mode = #tpu.pipeline_mode<synchronous>, transform_indices = @transform_8, window_bounds = array<i64: 16, 64>}, {pipeline_mode = #tpu.pipeline_mode<synchronous>, transform_indices = @transform_9, window_bounds = array<i64: 1, 64>}, {pipeline_mode = #tpu.pipeline_mode<synchronous>, transform_indices = @transform_10, window_bounds = array<i64: 64, 16>}, {pipeline_mode = #tpu.pipeline_mode<synchronous>, transform_indices = @transform_11, window_bounds = array<i64: 1, 16>}, {pipeline_mode = #tpu.pipeline_mode<synchronous>, transform_indices = @transform_12, window_bounds = array<i64: 1, 16>}, {pipeline_mode = #tpu.pipeline_mode<synchronous>, transform_indices = @transform_13, window_bounds = array<i64: 1, 16>}, {transform_indices = @transform_14, window_bounds = array<i64: 2>}, {pipeline_mode = #tpu.pipeline_mode<synchronous>, transform_indices = @transform_15, window_bounds = array<i64: 72, 16>}]} {
    %c0 = arith.constant 0 : index
    %c0_0 = arith.constant 0 : index
    %0 = vector.load %arg1[%c0, %c0_0] : memref<72x16xf32, #tpu.memory_space<vmem>>, vector<72x16xf32>
    %1 = arith.truncf %0 : vector<72x16xf32> to vector<72x16xbf16>
    %c0_1 = arith.constant 0 : index
    %c0_2 = arith.constant 0 : index
    %2 = vector.load %arg2[%c0_1, %c0_2] : memref<16x48xbf16, #tpu.memory_space<vmem>>, vector<16x48xbf16>
    %cst = arith.constant dense<0.000000e+00> : vector<72x48xf32>
    %3 = tpu.matmul %1, %2, %cst {dimension_numbers = #tpu.dot_dimension_numbers<[1], [0], [0], [1], [0, 0, 1, 1], [], []>} : vector<72x16xbf16>, vector<16x48xbf16>, vector<72x48xf32> -> vector<72x48xf32>
    %c0_3 = arith.constant 0 : index
    %c0_4 = arith.constant 0 : index
    %4 = vector.load %arg3[%c0_3, %c0_4] : memref<1x48xf32, #tpu.memory_space<vmem>>, vector<1x48xf32>
    %5 = vector.broadcast %4 : vector<1x48xf32> to vector<72x48xf32>
    %6 = arith.addf %3, %5 : vector<72x48xf32>
    %cst_5 = arith.constant 0.000000e+00 : f32
    %7 = vector.broadcast %cst_5 : f32 to vector<72x16xf32>
    %8 = vector.extract_strided_slice %6 {offsets = [0, 0], sizes = [72, 8], strides = [1, 1]} : vector<72x48xf32> to vector<72x8xf32>
    %9 = vector.extract_strided_slice %6 {offsets = [0, 16], sizes = [72, 8], strides = [1, 1]} : vector<72x48xf32> to vector<72x8xf32>
    %10 = vector.extract_strided_slice %6 {offsets = [0, 32], sizes = [72, 8], strides = [1, 1]} : vector<72x48xf32> to vector<72x8xf32>
    %11 = arith.mulf %8, %8 : vector<72x8xf32>
    %cst_6 = arith.constant dense<0.000000e+00> : vector<72xf32>
    %12 = vector.multi_reduction <add>, %11, %cst_6 [1] : vector<72x8xf32> to vector<72xf32>
    %13 = vector.shape_cast %12 : vector<72xf32> to vector<72x1xf32>
    %cst_7 = arith.constant 1.000000e-24 : f32
    %14 = vector.broadcast %cst_7 : f32 to vector<72x1xf32>
    %15 = arith.maximumf %13, %14 : vector<72x1xf32>
    %16 = math.rsqrt %15 : vector<72x1xf32>
    %17 = vector.broadcast %16 : vector<72x1xf32> to vector<72x8xf32>
    %18 = arith.mulf %8, %17 : vector<72x8xf32>
    %19 = arith.mulf %9, %9 : vector<72x8xf32>
    %cst_8 = arith.constant dense<0.000000e+00> : vector<72xf32>
    %20 = vector.multi_reduction <add>, %19, %cst_8 [1] : vector<72x8xf32> to vector<72xf32>
    %21 = vector.shape_cast %20 : vector<72xf32> to vector<72x1xf32>
    %cst_9 = arith.constant 1.000000e-24 : f32
    %22 = vector.broadcast %cst_9 : f32 to vector<72x1xf32>
    %23 = arith.maximumf %21, %22 : vector<72x1xf32>
    %24 = math.rsqrt %23 : vector<72x1xf32>
    %25 = vector.broadcast %24 : vector<72x1xf32> to vector<72x8xf32>
    %26 = arith.mulf %9, %25 : vector<72x8xf32>
    "tpu.trace_start"() <{level = 10 : i32, message = "nd,md->nm"}> : () -> ()
    %cst_10 = arith.constant dense<0.000000e+00> : vector<72x72xf32>
    %27 = tpu.matmul %18, %26, %cst_10 {dimension_numbers = #tpu.dot_dimension_numbers<[1], [1], [0], [0], [0, 0, 1, 0], [], []>} : vector<72x8xf32>, vector<72x8xf32>, vector<72x72xf32> -> vector<72x72xf32>
    "tpu.trace_stop"() : () -> ()
    %c0_11 = arith.constant 0 : index
    %28 = memref.load %arg15[%c0_11] : memref<2xf32, #tpu.memory_space<smem>>
    %29 = vector.broadcast %28 : f32 to vector<72x72xf32>
    %30 = arith.mulf %27, %29 : vector<72x72xf32>
    %c0_12 = arith.constant 0 : index
    %c0_13 = arith.constant 0 : index
    %c0_14 = arith.constant 0 : index
    %31 = vector.load %arg6[%c0_12, %c0_13, %c0_14] : memref<2x72x72xf32, #tpu.memory_space<vmem>>, vector<1x72x72xf32>
    %32 = vector.shape_cast %31 : vector<1x72x72xf32> to vector<72x72xf32>
    %33 = arith.addf %30, %32 : vector<72x72xf32>
    %cst_15 = arith.constant dense<0xFF800000> : vector<72xf32>
    %34 = vector.multi_reduction <maximumf>, %33, %cst_15 [1] : vector<72x72xf32> to vector<72xf32>
    %35 = vector.shape_cast %34 : vector<72xf32> to vector<72x1xf32>
    %36 = vector.broadcast %35 : vector<72x1xf32> to vector<72x72xf32>
    %37 = arith.subf %33, %36 : vector<72x72xf32>
    %38 = math.exp %37 : vector<72x72xf32>
    %cst_16 = arith.constant dense<0.000000e+00> : vector<72xf32>
    %39 = vector.multi_reduction <add>, %38, %cst_16 [1] : vector<72x72xf32> to vector<72xf32>
    %40 = vector.shape_cast %39 : vector<72xf32> to vector<72x1xf32>
    %41 = tpu.reciprocal %40 {approx = true} : vector<72x1xf32> -> vector<72x1xf32>
    %42 = vector.broadcast %41 : vector<72x1xf32> to vector<72x72xf32>
    %43 = arith.mulf %38, %42 : vector<72x72xf32>
    %44 = arith.truncf %43 : vector<72x72xf32> to vector<72x72xbf16>
    %45 = arith.truncf %10 : vector<72x8xf32> to vector<72x8xbf16>
    %cst_17 = arith.constant dense<0.000000e+00> : vector<72x8xf32>
    %46 = tpu.matmul %44, %45, %cst_17 {dimension_numbers = #tpu.dot_dimension_numbers<[1], [0], [0], [1], [0, 0, 1, 1], [], []>} : vector<72x72xbf16>, vector<72x8xbf16>, vector<72x8xf32> -> vector<72x8xf32>
    %47 = arith.truncf %46 : vector<72x8xf32> to vector<72x8xbf16>
    %c0_18 = arith.constant 0 : index
    %c0_19 = arith.constant 0 : index
    %c0_20 = arith.constant 0 : index
    %48 = vector.load %arg4[%c0_18, %c0_19, %c0_20] : memref<2x8x16xbf16, #tpu.memory_space<vmem>>, vector<1x8x16xbf16>
    %49 = vector.shape_cast %48 : vector<1x8x16xbf16> to vector<8x16xbf16>
    %cst_21 = arith.constant dense<0.000000e+00> : vector<72x16xf32>
    %50 = tpu.matmul %47, %49, %cst_21 {dimension_numbers = #tpu.dot_dimension_numbers<[1], [0], [0], [1], [0, 0, 1, 1], [], []>} : vector<72x8xbf16>, vector<8x16xbf16>, vector<72x16xf32> -> vector<72x16xf32>
    %51 = arith.addf %7, %50 : vector<72x16xf32>
    %52 = vector.extract_strided_slice %6 {offsets = [0, 8], sizes = [72, 8], strides = [1, 1]} : vector<72x48xf32> to vector<72x8xf32>
    %53 = vector.extract_strided_slice %6 {offsets = [0, 24], sizes = [72, 8], strides = [1, 1]} : vector<72x48xf32> to vector<72x8xf32>
    %54 = vector.extract_strided_slice %6 {offsets = [0, 40], sizes = [72, 8], strides = [1, 1]} : vector<72x48xf32> to vector<72x8xf32>
    %55 = arith.mulf %52, %52 : vector<72x8xf32>
    %cst_22 = arith.constant dense<0.000000e+00> : vector<72xf32>
    %56 = vector.multi_reduction <add>, %55, %cst_22 [1] : vector<72x8xf32> to vector<72xf32>
    %57 = vector.shape_cast %56 : vector<72xf32> to vector<72x1xf32>
    %cst_23 = arith.constant 1.000000e-24 : f32
    %58 = vector.broadcast %cst_23 : f32 to vector<72x1xf32>
    %59 = arith.maximumf %57, %58 : vector<72x1xf32>
    %60 = math.rsqrt %59 : vector<72x1xf32>
    %61 = vector.broadcast %60 : vector<72x1xf32> to vector<72x8xf32>
    %62 = arith.mulf %52, %61 : vector<72x8xf32>
    %63 = arith.mulf %53, %53 : vector<72x8xf32>
    %cst_24 = arith.constant dense<0.000000e+00> : vector<72xf32>
    %64 = vector.multi_reduction <add>, %63, %cst_24 [1] : vector<72x8xf32> to vector<72xf32>
    %65 = vector.shape_cast %64 : vector<72xf32> to vector<72x1xf32>
    %cst_25 = arith.constant 1.000000e-24 : f32
    %66 = vector.broadcast %cst_25 : f32 to vector<72x1xf32>
    %67 = arith.maximumf %65, %66 : vector<72x1xf32>
    %68 = math.rsqrt %67 : vector<72x1xf32>
    %69 = vector.broadcast %68 : vector<72x1xf32> to vector<72x8xf32>
    %70 = arith.mulf %53, %69 : vector<72x8xf32>
    "tpu.trace_start"() <{level = 10 : i32, message = "nd,md->nm"}> : () -> ()
    %cst_26 = arith.constant dense<0.000000e+00> : vector<72x72xf32>
    %71 = tpu.matmul %62, %70, %cst_26 {dimension_numbers = #tpu.dot_dimension_numbers<[1], [1], [0], [0], [0, 0, 1, 0], [], []>} : vector<72x8xf32>, vector<72x8xf32>, vector<72x72xf32> -> vector<72x72xf32>
    "tpu.trace_stop"() : () -> ()
    %c1 = arith.constant 1 : index
    %72 = memref.load %arg15[%c1] : memref<2xf32, #tpu.memory_space<smem>>
    %73 = vector.broadcast %72 : f32 to vector<72x72xf32>
    %74 = arith.mulf %71, %73 : vector<72x72xf32>
    %c1_27 = arith.constant 1 : index
    %c0_28 = arith.constant 0 : index
    %c0_29 = arith.constant 0 : index
    %75 = vector.load %arg6[%c1_27, %c0_28, %c0_29] : memref<2x72x72xf32, #tpu.memory_space<vmem>>, vector<1x72x72xf32>
    %76 = vector.shape_cast %75 : vector<1x72x72xf32> to vector<72x72xf32>
    %77 = arith.addf %74, %76 : vector<72x72xf32>
    %cst_30 = arith.constant dense<0xFF800000> : vector<72xf32>
    %78 = vector.multi_reduction <maximumf>, %77, %cst_30 [1] : vector<72x72xf32> to vector<72xf32>
    %79 = vector.shape_cast %78 : vector<72xf32> to vector<72x1xf32>
    %80 = vector.broadcast %79 : vector<72x1xf32> to vector<72x72xf32>
    %81 = arith.subf %77, %80 : vector<72x72xf32>
    %82 = math.exp %81 : vector<72x72xf32>
    %cst_31 = arith.constant dense<0.000000e+00> : vector<72xf32>
    %83 = vector.multi_reduction <add>, %82, %cst_31 [1] : vector<72x72xf32> to vector<72xf32>
    %84 = vector.shape_cast %83 : vector<72xf32> to vector<72x1xf32>
    %85 = tpu.reciprocal %84 {approx = true} : vector<72x1xf32> -> vector<72x1xf32>
    %86 = vector.broadcast %85 : vector<72x1xf32> to vector<72x72xf32>
    %87 = arith.mulf %82, %86 : vector<72x72xf32>
    %88 = arith.truncf %87 : vector<72x72xf32> to vector<72x72xbf16>
    %89 = arith.truncf %54 : vector<72x8xf32> to vector<72x8xbf16>
    %cst_32 = arith.constant dense<0.000000e+00> : vector<72x8xf32>
    %90 = tpu.matmul %88, %89, %cst_32 {dimension_numbers = #tpu.dot_dimension_numbers<[1], [0], [0], [1], [0, 0, 1, 1], [], []>} : vector<72x72xbf16>, vector<72x8xbf16>, vector<72x8xf32> -> vector<72x8xf32>
    %91 = arith.truncf %90 : vector<72x8xf32> to vector<72x8xbf16>
    %c1_33 = arith.constant 1 : index
    %c0_34 = arith.constant 0 : index
    %c0_35 = arith.constant 0 : index
    %92 = vector.load %arg4[%c1_33, %c0_34, %c0_35] : memref<2x8x16xbf16, #tpu.memory_space<vmem>>, vector<1x8x16xbf16>
    %93 = vector.shape_cast %92 : vector<1x8x16xbf16> to vector<8x16xbf16>
    %cst_36 = arith.constant dense<0.000000e+00> : vector<72x16xf32>
    %94 = tpu.matmul %91, %93, %cst_36 {dimension_numbers = #tpu.dot_dimension_numbers<[1], [0], [0], [1], [0, 0, 1, 1], [], []>} : vector<72x8xbf16>, vector<8x16xbf16>, vector<72x16xf32> -> vector<72x16xf32>
    %95 = arith.addf %51, %94 : vector<72x16xf32>
    %c0_37 = arith.constant 0 : index
    %c0_38 = arith.constant 0 : index
    %96 = vector.load %arg5[%c0_37, %c0_38] : memref<1x16xf32, #tpu.memory_space<vmem>>, vector<1x16xf32>
    %97 = vector.broadcast %96 : vector<1x16xf32> to vector<72x16xf32>
    %98 = arith.addf %95, %97 : vector<72x16xf32>
    %c0_39 = arith.constant 0 : index
    %c0_40 = arith.constant 0 : index
    %99 = vector.load %arg7[%c0_39, %c0_40] : memref<1x16xf32, #tpu.memory_space<vmem>>, vector<1x16xf32>
    %c0_41 = arith.constant 0 : index
    %c0_42 = arith.constant 0 : index
    %100 = vector.load %arg8[%c0_41, %c0_42] : memref<1x16xf32, #tpu.memory_space<vmem>>, vector<1x16xf32>
    %cst_43 = arith.constant dense<0.000000e+00> : vector<72xf32>
    %101 = vector.multi_reduction <add>, %98, %cst_43 [1] : vector<72x16xf32> to vector<72xf32>
    %102 = vector.shape_cast %101 : vector<72xf32> to vector<72x1xf32>
    %cst_44 = arith.constant 1.600000e+01 : f32
    %103 = vector.broadcast %cst_44 : f32 to vector<72x1xf32>
    %104 = arith.divf %102, %103 : vector<72x1xf32>
    %105 = vector.broadcast %104 : vector<72x1xf32> to vector<72x16xf32>
    %106 = arith.subf %98, %105 : vector<72x16xf32>
    %107 = arith.mulf %106, %106 : vector<72x16xf32>
    %cst_45 = arith.constant dense<0.000000e+00> : vector<72xf32>
    %108 = vector.multi_reduction <add>, %107, %cst_45 [1] : vector<72x16xf32> to vector<72xf32>
    %109 = vector.shape_cast %108 : vector<72xf32> to vector<72x1xf32>
    %cst_46 = arith.constant 1.600000e+01 : f32
    %110 = vector.broadcast %cst_46 : f32 to vector<72x1xf32>
    %111 = arith.divf %109, %110 : vector<72x1xf32>
    %112 = vector.broadcast %104 : vector<72x1xf32> to vector<72x16xf32>
    %113 = arith.subf %98, %112 : vector<72x16xf32>
    %cst_47 = arith.constant 9.99999974E-6 : f32
    %114 = vector.broadcast %cst_47 : f32 to vector<72x1xf32>
    %115 = arith.addf %111, %114 : vector<72x1xf32>
    %116 = math.rsqrt %115 : vector<72x1xf32>
    %117 = vector.broadcast %116 : vector<72x1xf32> to vector<72x16xf32>
    %118 = arith.mulf %113, %117 : vector<72x16xf32>
    %119 = vector.broadcast %99 : vector<1x16xf32> to vector<72x16xf32>
    %120 = arith.mulf %118, %119 : vector<72x16xf32>
    %121 = vector.broadcast %100 : vector<1x16xf32> to vector<72x16xf32>
    %122 = arith.addf %120, %121 : vector<72x16xf32>
    %123 = arith.addf %0, %122 : vector<72x16xf32>
    %124 = arith.truncf %123 : vector<72x16xf32> to vector<72x16xbf16>
    %c0_48 = arith.constant 0 : index
    %c0_49 = arith.constant 0 : index
    %125 = vector.load %arg9[%c0_48, %c0_49] : memref<16x64xbf16, #tpu.memory_space<vmem>>, vector<16x64xbf16>
    %cst_50 = arith.constant dense<0.000000e+00> : vector<72x64xf32>
    %126 = tpu.matmul %124, %125, %cst_50 {dimension_numbers = #tpu.dot_dimension_numbers<[1], [0], [0], [1], [0, 0, 1, 1], [], []>} : vector<72x16xbf16>, vector<16x64xbf16>, vector<72x64xf32> -> vector<72x64xf32>
    %c0_51 = arith.constant 0 : index
    %c0_52 = arith.constant 0 : index
    %127 = vector.load %arg10[%c0_51, %c0_52] : memref<1x64xf32, #tpu.memory_space<vmem>>, vector<1x64xf32>
    %128 = vector.broadcast %127 : vector<1x64xf32> to vector<72x64xf32>
    %129 = arith.addf %126, %128 : vector<72x64xf32>
    %cst_53 = arith.constant 5.000000e-01 : f32
    %130 = vector.broadcast %cst_53 : f32 to vector<72x64xf32>
    %131 = arith.mulf %130, %129 : vector<72x64xf32>
    %cst_54 = arith.constant 0.707106769 : f32
    %132 = vector.broadcast %cst_54 : f32 to vector<72x64xf32>
    %133 = arith.mulf %129, %132 : vector<72x64xf32>
    %134 = math.erf %133 : vector<72x64xf32>
    %cst_55 = arith.constant 1.000000e+00 : f32
    %135 = vector.broadcast %cst_55 : f32 to vector<72x64xf32>
    %136 = arith.addf %135, %134 : vector<72x64xf32>
    %137 = arith.mulf %131, %136 : vector<72x64xf32>
    %138 = arith.truncf %137 : vector<72x64xf32> to vector<72x64xbf16>
    %c0_56 = arith.constant 0 : index
    %c0_57 = arith.constant 0 : index
    %139 = vector.load %arg11[%c0_56, %c0_57] : memref<64x16xbf16, #tpu.memory_space<vmem>>, vector<64x16xbf16>
    %cst_58 = arith.constant dense<0.000000e+00> : vector<72x16xf32>
    %140 = tpu.matmul %138, %139, %cst_58 {dimension_numbers = #tpu.dot_dimension_numbers<[1], [0], [0], [1], [0, 0, 1, 1], [], []>} : vector<72x64xbf16>, vector<64x16xbf16>, vector<72x16xf32> -> vector<72x16xf32>
    %c0_59 = arith.constant 0 : index
    %c0_60 = arith.constant 0 : index
    %141 = vector.load %arg12[%c0_59, %c0_60] : memref<1x16xf32, #tpu.memory_space<vmem>>, vector<1x16xf32>
    %142 = vector.broadcast %141 : vector<1x16xf32> to vector<72x16xf32>
    %143 = arith.addf %140, %142 : vector<72x16xf32>
    %c0_61 = arith.constant 0 : index
    %c0_62 = arith.constant 0 : index
    %144 = vector.load %arg13[%c0_61, %c0_62] : memref<1x16xf32, #tpu.memory_space<vmem>>, vector<1x16xf32>
    %c0_63 = arith.constant 0 : index
    %c0_64 = arith.constant 0 : index
    %145 = vector.load %arg14[%c0_63, %c0_64] : memref<1x16xf32, #tpu.memory_space<vmem>>, vector<1x16xf32>
    %cst_65 = arith.constant dense<0.000000e+00> : vector<72xf32>
    %146 = vector.multi_reduction <add>, %143, %cst_65 [1] : vector<72x16xf32> to vector<72xf32>
    %147 = vector.shape_cast %146 : vector<72xf32> to vector<72x1xf32>
    %cst_66 = arith.constant 1.600000e+01 : f32
    %148 = vector.broadcast %cst_66 : f32 to vector<72x1xf32>
    %149 = arith.divf %147, %148 : vector<72x1xf32>
    %150 = vector.broadcast %149 : vector<72x1xf32> to vector<72x16xf32>
    %151 = arith.subf %143, %150 : vector<72x16xf32>
    %152 = arith.mulf %151, %151 : vector<72x16xf32>
    %cst_67 = arith.constant dense<0.000000e+00> : vector<72xf32>
    %153 = vector.multi_reduction <add>, %152, %cst_67 [1] : vector<72x16xf32> to vector<72xf32>
    %154 = vector.shape_cast %153 : vector<72xf32> to vector<72x1xf32>
    %cst_68 = arith.constant 1.600000e+01 : f32
    %155 = vector.broadcast %cst_68 : f32 to vector<72x1xf32>
    %156 = arith.divf %154, %155 : vector<72x1xf32>
    %157 = vector.broadcast %149 : vector<72x1xf32> to vector<72x16xf32>
    %158 = arith.subf %143, %157 : vector<72x16xf32>
    %cst_69 = arith.constant 9.99999974E-6 : f32
    %159 = vector.broadcast %cst_69 : f32 to vector<72x1xf32>
    %160 = arith.addf %156, %159 : vector<72x1xf32>
    %161 = math.rsqrt %160 : vector<72x1xf32>
    %162 = vector.broadcast %161 : vector<72x1xf32> to vector<72x16xf32>
    %163 = arith.mulf %158, %162 : vector<72x16xf32>
    %164 = vector.broadcast %144 : vector<1x16xf32> to vector<72x16xf32>
    %165 = arith.mulf %163, %164 : vector<72x16xf32>
    %166 = vector.broadcast %145 : vector<1x16xf32> to vector<72x16xf32>
    %167 = arith.addf %165, %166 : vector<72x16xf32>
    %168 = arith.addf %123, %167 : vector<72x16xf32>
    %c0_70 = arith.constant 0 : index
    %c0_71 = arith.constant 0 : index
    %169 = vector.load %arg16[%c0_70, %c0_71] : memref<72x16xf32, #tpu.memory_space<vmem>>, vector<72x16xf32>
    tpu.vector_store %arg16[%c0_70, %c0_71], %168 {strides = array<i32>} : memref<72x16xf32, #tpu.memory_space<vmem>>, vector<72x16xf32>,
    return
  }
  func.func @transform_0(%arg0: i32) -> (i32, i32) {
    %c0_i32 = arith.constant 0 : i32
    %c0_i32_0 = arith.constant 0 : i32
    %c0_i32_1 = arith.constant 0 : i32
    return %c0_i32, %c0_i32_0 : i32, i32
  }
  func.func @transform_1(%arg0: i32) -> (i32, i32) {
    %c0_i32 = arith.constant 0 : i32
    %c0_i32_0 = arith.constant 0 : i32
    %c0_i32_1 = arith.constant 0 : i32
    return %c0_i32, %c0_i32_0 : i32, i32
  }
  func.func @transform_2(%arg0: i32) -> (i32, i32) {
    %c0_i32 = arith.constant 0 : i32
    %c0_i32_0 = arith.constant 0 : i32
    %c0_i32_1 = arith.constant 0 : i32
    return %c0_i32, %c0_i32_0 : i32, i32
  }
  func.func @transform_3(%arg0: i32) -> (i32, i32, i32) {
    %c0_i32 = arith.constant 0 : i32
    %c0_i32_0 = arith.constant 0 : i32
    %c0_i32_1 = arith.constant 0 : i32
    %c0_i32_2 = arith.constant 0 : i32
    return %c0_i32, %c0_i32_0, %c0_i32_1 : i32, i32, i32
  }
  func.func @transform_4(%arg0: i32) -> (i32, i32) {
    %c0_i32 = arith.constant 0 : i32
    %c0_i32_0 = arith.constant 0 : i32
    %c0_i32_1 = arith.constant 0 : i32
    return %c0_i32, %c0_i32_0 : i32, i32
  }
  func.func @transform_5(%arg0: i32) -> (i32, i32, i32) {
    %c0_i32 = arith.constant 0 : i32
    %c0_i32_0 = arith.constant 0 : i32
    %c0_i32_1 = arith.constant 0 : i32
    %c0_i32_2 = arith.constant 0 : i32
    return %c0_i32, %c0_i32_0, %c0_i32_1 : i32, i32, i32
  }
  func.func @transform_6(%arg0: i32) -> (i32, i32) {
    %c0_i32 = arith.constant 0 : i32
    %c0_i32_0 = arith.constant 0 : i32
    %c0_i32_1 = arith.constant 0 : i32
    return %c0_i32, %c0_i32_0 : i32, i32
  }
  func.func @transform_7(%arg0: i32) -> (i32, i32) {
    %c0_i32 = arith.constant 0 : i32
    %c0_i32_0 = arith.constant 0 : i32
    %c0_i32_1 = arith.constant 0 : i32
    return %c0_i32, %c0_i32_0 : i32, i32
  }
  func.func @transform_8(%arg0: i32) -> (i32, i32) {
    %c0_i32 = arith.constant 0 : i32
    %c0_i32_0 = arith.constant 0 : i32
    %c0_i32_1 = arith.constant 0 : i32
    return %c0_i32, %c0_i32_0 : i32, i32
  }
  func.func @transform_9(%arg0: i32) -> (i32, i32) {
    %c0_i32 = arith.constant 0 : i32
    %c0_i32_0 = arith.constant 0 : i32
    %c0_i32_1 = arith.constant 0 : i32
    return %c0_i32, %c0_i32_0 : i32, i32
  }
  func.func @transform_10(%arg0: i32) -> (i32, i32) {
    %c0_i32 = arith.constant 0 : i32
    %c0_i32_0 = arith.constant 0 : i32
    %c0_i32_1 = arith.constant 0 : i32
    return %c0_i32, %c0_i32_0 : i32, i32
  }
  func.func @transform_11(%arg0: i32) -> (i32, i32) {
    %c0_i32 = arith.constant 0 : i32
    %c0_i32_0 = arith.constant 0 : i32
    %c0_i32_1 = arith.constant 0 : i32
    return %c0_i32, %c0_i32_0 : i32, i32
  }
  func.func @transform_12(%arg0: i32) -> (i32, i32) {
    %c0_i32 = arith.constant 0 : i32
    %c0_i32_0 = arith.constant 0 : i32
    %c0_i32_1 = arith.constant 0 : i32
    return %c0_i32, %c0_i32_0 : i32, i32
  }
  func.func @transform_13(%arg0: i32) -> (i32, i32) {
    %c0_i32 = arith.constant 0 : i32
    %c0_i32_0 = arith.constant 0 : i32
    %c0_i32_1 = arith.constant 0 : i32
    return %c0_i32, %c0_i32_0 : i32, i32
  }
  func.func @transform_14(%arg0: i32) -> i32 {
    %c0_i32 = arith.constant 0 : i32
    %c0_i32_0 = arith.constant 0 : i32
    return %c0_i32 : i32
  }
  func.func @transform_15(%arg0: i32) -> (i32, i32) {
    %c0_i32 = arith.constant 0 : i32
    %c0_i32_0 = arith.constant 0 : i32
    %c0_i32_1 = arith.constant 0 : i32
    return %c0_i32, %c0_i32_0 : i32, i32
  }
}

module attributes {stable_mosaic.version = 11 : i64} {
  func.func @_linear_ln_kernel(%arg0: i32, %arg1: memref<18x64xf32, #tpu.memory_space<vmem>>, %arg2: memref<64x32xbf16, #tpu.memory_space<vmem>>, %arg3: memref<1x32xf32, #tpu.memory_space<vmem>>, %arg4: memref<1x32xf32, #tpu.memory_space<vmem>>, %arg5: memref<1x32xf32, #tpu.memory_space<vmem>>, %arg6: memref<18x32xf32, #tpu.memory_space<vmem>>) attributes {dimension_semantics = [#tpu.dimension_semantics<arbitrary>], iteration_bounds = array<i64: 1>, scalar_prefetch = 0 : i64, scratch_operands = 0 : i64, tpu.core_type = #tpu.core_type<tc>, window_params = [{pipeline_mode = #tpu.pipeline_mode<synchronous>, transform_indices = @transform_0, window_bounds = array<i64: 18, 64>}, {pipeline_mode = #tpu.pipeline_mode<synchronous>, transform_indices = @transform_1, window_bounds = array<i64: 64, 32>}, {pipeline_mode = #tpu.pipeline_mode<synchronous>, transform_indices = @transform_2, window_bounds = array<i64: 1, 32>}, {pipeline_mode = #tpu.pipeline_mode<synchronous>, transform_indices = @transform_3, window_bounds = array<i64: 1, 32>}, {pipeline_mode = #tpu.pipeline_mode<synchronous>, transform_indices = @transform_4, window_bounds = array<i64: 1, 32>}, {pipeline_mode = #tpu.pipeline_mode<synchronous>, transform_indices = @transform_5, window_bounds = array<i64: 18, 32>}]} {
    %c0 = arith.constant 0 : index
    %c0_0 = arith.constant 0 : index
    %0 = vector.load %arg1[%c0, %c0_0] : memref<18x64xf32, #tpu.memory_space<vmem>>, vector<18x64xf32>
    %1 = arith.truncf %0 : vector<18x64xf32> to vector<18x64xbf16>
    %c0_1 = arith.constant 0 : index
    %c0_2 = arith.constant 0 : index
    %2 = vector.load %arg2[%c0_1, %c0_2] : memref<64x32xbf16, #tpu.memory_space<vmem>>, vector<64x32xbf16>
    %cst = arith.constant dense<0.000000e+00> : vector<18x32xf32>
    %3 = tpu.matmul %1, %2, %cst {dimension_numbers = #tpu.dot_dimension_numbers<[1], [0], [0], [1], [0, 0, 1, 1], [], []>} : vector<18x64xbf16>, vector<64x32xbf16>, vector<18x32xf32> -> vector<18x32xf32>
    %c0_3 = arith.constant 0 : index
    %c0_4 = arith.constant 0 : index
    %4 = vector.load %arg3[%c0_3, %c0_4] : memref<1x32xf32, #tpu.memory_space<vmem>>, vector<1x32xf32>
    %5 = vector.broadcast %4 : vector<1x32xf32> to vector<18x32xf32>
    %6 = arith.addf %3, %5 : vector<18x32xf32>
    %c0_5 = arith.constant 0 : index
    %c0_6 = arith.constant 0 : index
    %7 = vector.load %arg4[%c0_5, %c0_6] : memref<1x32xf32, #tpu.memory_space<vmem>>, vector<1x32xf32>
    %c0_7 = arith.constant 0 : index
    %c0_8 = arith.constant 0 : index
    %8 = vector.load %arg5[%c0_7, %c0_8] : memref<1x32xf32, #tpu.memory_space<vmem>>, vector<1x32xf32>
    %cst_9 = arith.constant dense<0.000000e+00> : vector<18xf32>
    %9 = vector.multi_reduction <add>, %6, %cst_9 [1] : vector<18x32xf32> to vector<18xf32>
    %10 = vector.shape_cast %9 : vector<18xf32> to vector<18x1xf32>
    %cst_10 = arith.constant 3.200000e+01 : f32
    %11 = vector.broadcast %cst_10 : f32 to vector<18x1xf32>
    %12 = arith.divf %10, %11 : vector<18x1xf32>
    %13 = vector.broadcast %12 : vector<18x1xf32> to vector<18x32xf32>
    %14 = arith.subf %6, %13 : vector<18x32xf32>
    %15 = arith.mulf %14, %14 : vector<18x32xf32>
    %cst_11 = arith.constant dense<0.000000e+00> : vector<18xf32>
    %16 = vector.multi_reduction <add>, %15, %cst_11 [1] : vector<18x32xf32> to vector<18xf32>
    %17 = vector.shape_cast %16 : vector<18xf32> to vector<18x1xf32>
    %cst_12 = arith.constant 3.200000e+01 : f32
    %18 = vector.broadcast %cst_12 : f32 to vector<18x1xf32>
    %19 = arith.divf %17, %18 : vector<18x1xf32>
    %20 = vector.broadcast %12 : vector<18x1xf32> to vector<18x32xf32>
    %21 = arith.subf %6, %20 : vector<18x32xf32>
    %cst_13 = arith.constant 9.99999974E-6 : f32
    %22 = vector.broadcast %cst_13 : f32 to vector<18x1xf32>
    %23 = arith.addf %19, %22 : vector<18x1xf32>
    %24 = math.rsqrt %23 : vector<18x1xf32>
    %25 = vector.broadcast %24 : vector<18x1xf32> to vector<18x32xf32>
    %26 = arith.mulf %21, %25 : vector<18x32xf32>
    %27 = vector.broadcast %7 : vector<1x32xf32> to vector<18x32xf32>
    %28 = arith.mulf %26, %27 : vector<18x32xf32>
    %29 = vector.broadcast %8 : vector<1x32xf32> to vector<18x32xf32>
    %30 = arith.addf %28, %29 : vector<18x32xf32>
    %c0_14 = arith.constant 0 : index
    %c0_15 = arith.constant 0 : index
    %31 = vector.load %arg6[%c0_14, %c0_15] : memref<18x32xf32, #tpu.memory_space<vmem>>, vector<18x32xf32>
    tpu.vector_store %arg6[%c0_14, %c0_15], %30 {strides = array<i32>} : memref<18x32xf32, #tpu.memory_space<vmem>>, vector<18x32xf32>,
    return
  }
  func.func @transform_0(%arg0: i32) -> (i32, i32) {
    %c0_i32 = arith.constant 0 : i32
    %c0_i32_0 = arith.constant 0 : i32
    %c0_i32_1 = arith.constant 0 : i32
    return %c0_i32, %c0_i32_0 : i32, i32
  }
  func.func @transform_1(%arg0: i32) -> (i32, i32) {
    %c0_i32 = arith.constant 0 : i32
    %c0_i32_0 = arith.constant 0 : i32
    %c0_i32_1 = arith.constant 0 : i32
    return %c0_i32, %c0_i32_0 : i32, i32
  }
  func.func @transform_2(%arg0: i32) -> (i32, i32) {
    %c0_i32 = arith.constant 0 : i32
    %c0_i32_0 = arith.constant 0 : i32
    %c0_i32_1 = arith.constant 0 : i32
    return %c0_i32, %c0_i32_0 : i32, i32
  }
  func.func @transform_3(%arg0: i32) -> (i32, i32) {
    %c0_i32 = arith.constant 0 : i32
    %c0_i32_0 = arith.constant 0 : i32
    %c0_i32_1 = arith.constant 0 : i32
    return %c0_i32, %c0_i32_0 : i32, i32
  }
  func.func @transform_4(%arg0: i32) -> (i32, i32) {
    %c0_i32 = arith.constant 0 : i32
    %c0_i32_0 = arith.constant 0 : i32
    %c0_i32_1 = arith.constant 0 : i32
    return %c0_i32, %c0_i32_0 : i32, i32
  }
  func.func @transform_5(%arg0: i32) -> (i32, i32) {
    %c0_i32 = arith.constant 0 : i32
    %c0_i32_0 = arith.constant 0 : i32
    %c0_i32_1 = arith.constant 0 : i32
    return %c0_i32, %c0_i32_0 : i32, i32
  }
}

module attributes {stable_mosaic.version = 11 : i64} {
  func.func @_swin_block_kernel(%arg0: i32, %arg1: memref<18x32xf32, #tpu.memory_space<vmem>>, %arg2: memref<32x96xbf16, #tpu.memory_space<vmem>>, %arg3: memref<1x96xf32, #tpu.memory_space<vmem>>, %arg4: memref<4x8x32xbf16, #tpu.memory_space<vmem>>, %arg5: memref<1x32xf32, #tpu.memory_space<vmem>>, %arg6: memref<4x18x18xf32, #tpu.memory_space<vmem>>, %arg7: memref<1x32xf32, #tpu.memory_space<vmem>>, %arg8: memref<1x32xf32, #tpu.memory_space<vmem>>, %arg9: memref<32x128xbf16, #tpu.memory_space<vmem>>, %arg10: memref<1x128xf32, #tpu.memory_space<vmem>>, %arg11: memref<128x32xbf16, #tpu.memory_space<vmem>>, %arg12: memref<1x32xf32, #tpu.memory_space<vmem>>, %arg13: memref<1x32xf32, #tpu.memory_space<vmem>>, %arg14: memref<1x32xf32, #tpu.memory_space<vmem>>, %arg15: memref<4xf32, #tpu.memory_space<smem>>, %arg16: memref<18x32xf32, #tpu.memory_space<vmem>>) attributes {dimension_semantics = [#tpu.dimension_semantics<arbitrary>], iteration_bounds = array<i64: 1>, scalar_prefetch = 0 : i64, scratch_operands = 0 : i64, tpu.core_type = #tpu.core_type<tc>, window_params = [{pipeline_mode = #tpu.pipeline_mode<synchronous>, transform_indices = @transform_0, window_bounds = array<i64: 18, 32>}, {pipeline_mode = #tpu.pipeline_mode<synchronous>, transform_indices = @transform_1, window_bounds = array<i64: 32, 96>}, {pipeline_mode = #tpu.pipeline_mode<synchronous>, transform_indices = @transform_2, window_bounds = array<i64: 1, 96>}, {pipeline_mode = #tpu.pipeline_mode<synchronous>, transform_indices = @transform_3, window_bounds = array<i64: 4, 8, 32>}, {pipeline_mode = #tpu.pipeline_mode<synchronous>, transform_indices = @transform_4, window_bounds = array<i64: 1, 32>}, {pipeline_mode = #tpu.pipeline_mode<synchronous>, transform_indices = @transform_5, window_bounds = array<i64: 4, 18, 18>}, {pipeline_mode = #tpu.pipeline_mode<synchronous>, transform_indices = @transform_6, window_bounds = array<i64: 1, 32>}, {pipeline_mode = #tpu.pipeline_mode<synchronous>, transform_indices = @transform_7, window_bounds = array<i64: 1, 32>}, {pipeline_mode = #tpu.pipeline_mode<synchronous>, transform_indices = @transform_8, window_bounds = array<i64: 32, 128>}, {pipeline_mode = #tpu.pipeline_mode<synchronous>, transform_indices = @transform_9, window_bounds = array<i64: 1, 128>}, {pipeline_mode = #tpu.pipeline_mode<synchronous>, transform_indices = @transform_10, window_bounds = array<i64: 128, 32>}, {pipeline_mode = #tpu.pipeline_mode<synchronous>, transform_indices = @transform_11, window_bounds = array<i64: 1, 32>}, {pipeline_mode = #tpu.pipeline_mode<synchronous>, transform_indices = @transform_12, window_bounds = array<i64: 1, 32>}, {pipeline_mode = #tpu.pipeline_mode<synchronous>, transform_indices = @transform_13, window_bounds = array<i64: 1, 32>}, {transform_indices = @transform_14, window_bounds = array<i64: 4>}, {pipeline_mode = #tpu.pipeline_mode<synchronous>, transform_indices = @transform_15, window_bounds = array<i64: 18, 32>}]} {
    %c0 = arith.constant 0 : index
    %c0_0 = arith.constant 0 : index
    %0 = vector.load %arg1[%c0, %c0_0] : memref<18x32xf32, #tpu.memory_space<vmem>>, vector<18x32xf32>
    %1 = arith.truncf %0 : vector<18x32xf32> to vector<18x32xbf16>
    %c0_1 = arith.constant 0 : index
    %c0_2 = arith.constant 0 : index
    %2 = vector.load %arg2[%c0_1, %c0_2] : memref<32x96xbf16, #tpu.memory_space<vmem>>, vector<32x96xbf16>
    %cst = arith.constant dense<0.000000e+00> : vector<18x96xf32>
    %3 = tpu.matmul %1, %2, %cst {dimension_numbers = #tpu.dot_dimension_numbers<[1], [0], [0], [1], [0, 0, 1, 1], [], []>} : vector<18x32xbf16>, vector<32x96xbf16>, vector<18x96xf32> -> vector<18x96xf32>
    %c0_3 = arith.constant 0 : index
    %c0_4 = arith.constant 0 : index
    %4 = vector.load %arg3[%c0_3, %c0_4] : memref<1x96xf32, #tpu.memory_space<vmem>>, vector<1x96xf32>
    %5 = vector.broadcast %4 : vector<1x96xf32> to vector<18x96xf32>
    %6 = arith.addf %3, %5 : vector<18x96xf32>
    %cst_5 = arith.constant 0.000000e+00 : f32
    %7 = vector.broadcast %cst_5 : f32 to vector<18x32xf32>
    %8 = vector.extract_strided_slice %6 {offsets = [0, 0], sizes = [18, 8], strides = [1, 1]} : vector<18x96xf32> to vector<18x8xf32>
    %9 = vector.extract_strided_slice %6 {offsets = [0, 32], sizes = [18, 8], strides = [1, 1]} : vector<18x96xf32> to vector<18x8xf32>
    %10 = vector.extract_strided_slice %6 {offsets = [0, 64], sizes = [18, 8], strides = [1, 1]} : vector<18x96xf32> to vector<18x8xf32>
    %11 = arith.mulf %8, %8 : vector<18x8xf32>
    %cst_6 = arith.constant dense<0.000000e+00> : vector<18xf32>
    %12 = vector.multi_reduction <add>, %11, %cst_6 [1] : vector<18x8xf32> to vector<18xf32>
    %13 = vector.shape_cast %12 : vector<18xf32> to vector<18x1xf32>
    %cst_7 = arith.constant 1.000000e-24 : f32
    %14 = vector.broadcast %cst_7 : f32 to vector<18x1xf32>
    %15 = arith.maximumf %13, %14 : vector<18x1xf32>
    %16 = math.rsqrt %15 : vector<18x1xf32>
    %17 = vector.broadcast %16 : vector<18x1xf32> to vector<18x8xf32>
    %18 = arith.mulf %8, %17 : vector<18x8xf32>
    %19 = arith.mulf %9, %9 : vector<18x8xf32>
    %cst_8 = arith.constant dense<0.000000e+00> : vector<18xf32>
    %20 = vector.multi_reduction <add>, %19, %cst_8 [1] : vector<18x8xf32> to vector<18xf32>
    %21 = vector.shape_cast %20 : vector<18xf32> to vector<18x1xf32>
    %cst_9 = arith.constant 1.000000e-24 : f32
    %22 = vector.broadcast %cst_9 : f32 to vector<18x1xf32>
    %23 = arith.maximumf %21, %22 : vector<18x1xf32>
    %24 = math.rsqrt %23 : vector<18x1xf32>
    %25 = vector.broadcast %24 : vector<18x1xf32> to vector<18x8xf32>
    %26 = arith.mulf %9, %25 : vector<18x8xf32>
    "tpu.trace_start"() <{level = 10 : i32, message = "nd,md->nm"}> : () -> ()
    %cst_10 = arith.constant dense<0.000000e+00> : vector<18x18xf32>
    %27 = tpu.matmul %18, %26, %cst_10 {dimension_numbers = #tpu.dot_dimension_numbers<[1], [1], [0], [0], [0, 0, 1, 0], [], []>} : vector<18x8xf32>, vector<18x8xf32>, vector<18x18xf32> -> vector<18x18xf32>
    "tpu.trace_stop"() : () -> ()
    %c0_11 = arith.constant 0 : index
    %28 = memref.load %arg15[%c0_11] : memref<4xf32, #tpu.memory_space<smem>>
    %29 = vector.broadcast %28 : f32 to vector<18x18xf32>
    %30 = arith.mulf %27, %29 : vector<18x18xf32>
    %c0_12 = arith.constant 0 : index
    %c0_13 = arith.constant 0 : index
    %c0_14 = arith.constant 0 : index
    %31 = vector.load %arg6[%c0_12, %c0_13, %c0_14] : memref<4x18x18xf32, #tpu.memory_space<vmem>>, vector<1x18x18xf32>
    %32 = vector.shape_cast %31 : vector<1x18x18xf32> to vector<18x18xf32>
    %33 = arith.addf %30, %32 : vector<18x18xf32>
    %cst_15 = arith.constant dense<0xFF800000> : vector<18xf32>
    %34 = vector.multi_reduction <maximumf>, %33, %cst_15 [1] : vector<18x18xf32> to vector<18xf32>
    %35 = vector.shape_cast %34 : vector<18xf32> to vector<18x1xf32>
    %36 = vector.broadcast %35 : vector<18x1xf32> to vector<18x18xf32>
    %37 = arith.subf %33, %36 : vector<18x18xf32>
    %38 = math.exp %37 : vector<18x18xf32>
    %cst_16 = arith.constant dense<0.000000e+00> : vector<18xf32>
    %39 = vector.multi_reduction <add>, %38, %cst_16 [1] : vector<18x18xf32> to vector<18xf32>
    %40 = vector.shape_cast %39 : vector<18xf32> to vector<18x1xf32>
    %41 = tpu.reciprocal %40 {approx = true} : vector<18x1xf32> -> vector<18x1xf32>
    %42 = vector.broadcast %41 : vector<18x1xf32> to vector<18x18xf32>
    %43 = arith.mulf %38, %42 : vector<18x18xf32>
    %44 = arith.truncf %43 : vector<18x18xf32> to vector<18x18xbf16>
    %45 = arith.truncf %10 : vector<18x8xf32> to vector<18x8xbf16>
    %cst_17 = arith.constant dense<0.000000e+00> : vector<18x8xf32>
    %46 = tpu.matmul %44, %45, %cst_17 {dimension_numbers = #tpu.dot_dimension_numbers<[1], [0], [0], [1], [0, 0, 1, 1], [], []>} : vector<18x18xbf16>, vector<18x8xbf16>, vector<18x8xf32> -> vector<18x8xf32>
    %47 = arith.truncf %46 : vector<18x8xf32> to vector<18x8xbf16>
    %c0_18 = arith.constant 0 : index
    %c0_19 = arith.constant 0 : index
    %c0_20 = arith.constant 0 : index
    %48 = vector.load %arg4[%c0_18, %c0_19, %c0_20] : memref<4x8x32xbf16, #tpu.memory_space<vmem>>, vector<1x8x32xbf16>
    %49 = vector.shape_cast %48 : vector<1x8x32xbf16> to vector<8x32xbf16>
    %cst_21 = arith.constant dense<0.000000e+00> : vector<18x32xf32>
    %50 = tpu.matmul %47, %49, %cst_21 {dimension_numbers = #tpu.dot_dimension_numbers<[1], [0], [0], [1], [0, 0, 1, 1], [], []>} : vector<18x8xbf16>, vector<8x32xbf16>, vector<18x32xf32> -> vector<18x32xf32>
    %51 = arith.addf %7, %50 : vector<18x32xf32>
    %52 = vector.extract_strided_slice %6 {offsets = [0, 8], sizes = [18, 8], strides = [1, 1]} : vector<18x96xf32> to vector<18x8xf32>
    %53 = vector.extract_strided_slice %6 {offsets = [0, 40], sizes = [18, 8], strides = [1, 1]} : vector<18x96xf32> to vector<18x8xf32>
    %54 = vector.extract_strided_slice %6 {offsets = [0, 72], sizes = [18, 8], strides = [1, 1]} : vector<18x96xf32> to vector<18x8xf32>
    %55 = arith.mulf %52, %52 : vector<18x8xf32>
    %cst_22 = arith.constant dense<0.000000e+00> : vector<18xf32>
    %56 = vector.multi_reduction <add>, %55, %cst_22 [1] : vector<18x8xf32> to vector<18xf32>
    %57 = vector.shape_cast %56 : vector<18xf32> to vector<18x1xf32>
    %cst_23 = arith.constant 1.000000e-24 : f32
    %58 = vector.broadcast %cst_23 : f32 to vector<18x1xf32>
    %59 = arith.maximumf %57, %58 : vector<18x1xf32>
    %60 = math.rsqrt %59 : vector<18x1xf32>
    %61 = vector.broadcast %60 : vector<18x1xf32> to vector<18x8xf32>
    %62 = arith.mulf %52, %61 : vector<18x8xf32>
    %63 = arith.mulf %53, %53 : vector<18x8xf32>
    %cst_24 = arith.constant dense<0.000000e+00> : vector<18xf32>
    %64 = vector.multi_reduction <add>, %63, %cst_24 [1] : vector<18x8xf32> to vector<18xf32>
    %65 = vector.shape_cast %64 : vector<18xf32> to vector<18x1xf32>
    %cst_25 = arith.constant 1.000000e-24 : f32
    %66 = vector.broadcast %cst_25 : f32 to vector<18x1xf32>
    %67 = arith.maximumf %65, %66 : vector<18x1xf32>
    %68 = math.rsqrt %67 : vector<18x1xf32>
    %69 = vector.broadcast %68 : vector<18x1xf32> to vector<18x8xf32>
    %70 = arith.mulf %53, %69 : vector<18x8xf32>
    "tpu.trace_start"() <{level = 10 : i32, message = "nd,md->nm"}> : () -> ()
    %cst_26 = arith.constant dense<0.000000e+00> : vector<18x18xf32>
    %71 = tpu.matmul %62, %70, %cst_26 {dimension_numbers = #tpu.dot_dimension_numbers<[1], [1], [0], [0], [0, 0, 1, 0], [], []>} : vector<18x8xf32>, vector<18x8xf32>, vector<18x18xf32> -> vector<18x18xf32>
    "tpu.trace_stop"() : () -> ()
    %c1 = arith.constant 1 : index
    %72 = memref.load %arg15[%c1] : memref<4xf32, #tpu.memory_space<smem>>
    %73 = vector.broadcast %72 : f32 to vector<18x18xf32>
    %74 = arith.mulf %71, %73 : vector<18x18xf32>
    %c1_27 = arith.constant 1 : index
    %c0_28 = arith.constant 0 : index
    %c0_29 = arith.constant 0 : index
    %75 = vector.load %arg6[%c1_27, %c0_28, %c0_29] : memref<4x18x18xf32, #tpu.memory_space<vmem>>, vector<1x18x18xf32>
    %76 = vector.shape_cast %75 : vector<1x18x18xf32> to vector<18x18xf32>
    %77 = arith.addf %74, %76 : vector<18x18xf32>
    %cst_30 = arith.constant dense<0xFF800000> : vector<18xf32>
    %78 = vector.multi_reduction <maximumf>, %77, %cst_30 [1] : vector<18x18xf32> to vector<18xf32>
    %79 = vector.shape_cast %78 : vector<18xf32> to vector<18x1xf32>
    %80 = vector.broadcast %79 : vector<18x1xf32> to vector<18x18xf32>
    %81 = arith.subf %77, %80 : vector<18x18xf32>
    %82 = math.exp %81 : vector<18x18xf32>
    %cst_31 = arith.constant dense<0.000000e+00> : vector<18xf32>
    %83 = vector.multi_reduction <add>, %82, %cst_31 [1] : vector<18x18xf32> to vector<18xf32>
    %84 = vector.shape_cast %83 : vector<18xf32> to vector<18x1xf32>
    %85 = tpu.reciprocal %84 {approx = true} : vector<18x1xf32> -> vector<18x1xf32>
    %86 = vector.broadcast %85 : vector<18x1xf32> to vector<18x18xf32>
    %87 = arith.mulf %82, %86 : vector<18x18xf32>
    %88 = arith.truncf %87 : vector<18x18xf32> to vector<18x18xbf16>
    %89 = arith.truncf %54 : vector<18x8xf32> to vector<18x8xbf16>
    %cst_32 = arith.constant dense<0.000000e+00> : vector<18x8xf32>
    %90 = tpu.matmul %88, %89, %cst_32 {dimension_numbers = #tpu.dot_dimension_numbers<[1], [0], [0], [1], [0, 0, 1, 1], [], []>} : vector<18x18xbf16>, vector<18x8xbf16>, vector<18x8xf32> -> vector<18x8xf32>
    %91 = arith.truncf %90 : vector<18x8xf32> to vector<18x8xbf16>
    %c1_33 = arith.constant 1 : index
    %c0_34 = arith.constant 0 : index
    %c0_35 = arith.constant 0 : index
    %92 = vector.load %arg4[%c1_33, %c0_34, %c0_35] : memref<4x8x32xbf16, #tpu.memory_space<vmem>>, vector<1x8x32xbf16>
    %93 = vector.shape_cast %92 : vector<1x8x32xbf16> to vector<8x32xbf16>
    %cst_36 = arith.constant dense<0.000000e+00> : vector<18x32xf32>
    %94 = tpu.matmul %91, %93, %cst_36 {dimension_numbers = #tpu.dot_dimension_numbers<[1], [0], [0], [1], [0, 0, 1, 1], [], []>} : vector<18x8xbf16>, vector<8x32xbf16>, vector<18x32xf32> -> vector<18x32xf32>
    %95 = arith.addf %51, %94 : vector<18x32xf32>
    %96 = vector.extract_strided_slice %6 {offsets = [0, 16], sizes = [18, 8], strides = [1, 1]} : vector<18x96xf32> to vector<18x8xf32>
    %97 = vector.extract_strided_slice %6 {offsets = [0, 48], sizes = [18, 8], strides = [1, 1]} : vector<18x96xf32> to vector<18x8xf32>
    %98 = vector.extract_strided_slice %6 {offsets = [0, 80], sizes = [18, 8], strides = [1, 1]} : vector<18x96xf32> to vector<18x8xf32>
    %99 = arith.mulf %96, %96 : vector<18x8xf32>
    %cst_37 = arith.constant dense<0.000000e+00> : vector<18xf32>
    %100 = vector.multi_reduction <add>, %99, %cst_37 [1] : vector<18x8xf32> to vector<18xf32>
    %101 = vector.shape_cast %100 : vector<18xf32> to vector<18x1xf32>
    %cst_38 = arith.constant 1.000000e-24 : f32
    %102 = vector.broadcast %cst_38 : f32 to vector<18x1xf32>
    %103 = arith.maximumf %101, %102 : vector<18x1xf32>
    %104 = math.rsqrt %103 : vector<18x1xf32>
    %105 = vector.broadcast %104 : vector<18x1xf32> to vector<18x8xf32>
    %106 = arith.mulf %96, %105 : vector<18x8xf32>
    %107 = arith.mulf %97, %97 : vector<18x8xf32>
    %cst_39 = arith.constant dense<0.000000e+00> : vector<18xf32>
    %108 = vector.multi_reduction <add>, %107, %cst_39 [1] : vector<18x8xf32> to vector<18xf32>
    %109 = vector.shape_cast %108 : vector<18xf32> to vector<18x1xf32>
    %cst_40 = arith.constant 1.000000e-24 : f32
    %110 = vector.broadcast %cst_40 : f32 to vector<18x1xf32>
    %111 = arith.maximumf %109, %110 : vector<18x1xf32>
    %112 = math.rsqrt %111 : vector<18x1xf32>
    %113 = vector.broadcast %112 : vector<18x1xf32> to vector<18x8xf32>
    %114 = arith.mulf %97, %113 : vector<18x8xf32>
    "tpu.trace_start"() <{level = 10 : i32, message = "nd,md->nm"}> : () -> ()
    %cst_41 = arith.constant dense<0.000000e+00> : vector<18x18xf32>
    %115 = tpu.matmul %106, %114, %cst_41 {dimension_numbers = #tpu.dot_dimension_numbers<[1], [1], [0], [0], [0, 0, 1, 0], [], []>} : vector<18x8xf32>, vector<18x8xf32>, vector<18x18xf32> -> vector<18x18xf32>
    "tpu.trace_stop"() : () -> ()
    %c2 = arith.constant 2 : index
    %116 = memref.load %arg15[%c2] : memref<4xf32, #tpu.memory_space<smem>>
    %117 = vector.broadcast %116 : f32 to vector<18x18xf32>
    %118 = arith.mulf %115, %117 : vector<18x18xf32>
    %c2_42 = arith.constant 2 : index
    %c0_43 = arith.constant 0 : index
    %c0_44 = arith.constant 0 : index
    %119 = vector.load %arg6[%c2_42, %c0_43, %c0_44] : memref<4x18x18xf32, #tpu.memory_space<vmem>>, vector<1x18x18xf32>
    %120 = vector.shape_cast %119 : vector<1x18x18xf32> to vector<18x18xf32>
    %121 = arith.addf %118, %120 : vector<18x18xf32>
    %cst_45 = arith.constant dense<0xFF800000> : vector<18xf32>
    %122 = vector.multi_reduction <maximumf>, %121, %cst_45 [1] : vector<18x18xf32> to vector<18xf32>
    %123 = vector.shape_cast %122 : vector<18xf32> to vector<18x1xf32>
    %124 = vector.broadcast %123 : vector<18x1xf32> to vector<18x18xf32>
    %125 = arith.subf %121, %124 : vector<18x18xf32>
    %126 = math.exp %125 : vector<18x18xf32>
    %cst_46 = arith.constant dense<0.000000e+00> : vector<18xf32>
    %127 = vector.multi_reduction <add>, %126, %cst_46 [1] : vector<18x18xf32> to vector<18xf32>
    %128 = vector.shape_cast %127 : vector<18xf32> to vector<18x1xf32>
    %129 = tpu.reciprocal %128 {approx = true} : vector<18x1xf32> -> vector<18x1xf32>
    %130 = vector.broadcast %129 : vector<18x1xf32> to vector<18x18xf32>
    %131 = arith.mulf %126, %130 : vector<18x18xf32>
    %132 = arith.truncf %131 : vector<18x18xf32> to vector<18x18xbf16>
    %133 = arith.truncf %98 : vector<18x8xf32> to vector<18x8xbf16>
    %cst_47 = arith.constant dense<0.000000e+00> : vector<18x8xf32>
    %134 = tpu.matmul %132, %133, %cst_47 {dimension_numbers = #tpu.dot_dimension_numbers<[1], [0], [0], [1], [0, 0, 1, 1], [], []>} : vector<18x18xbf16>, vector<18x8xbf16>, vector<18x8xf32> -> vector<18x8xf32>
    %135 = arith.truncf %134 : vector<18x8xf32> to vector<18x8xbf16>
    %c2_48 = arith.constant 2 : index
    %c0_49 = arith.constant 0 : index
    %c0_50 = arith.constant 0 : index
    %136 = vector.load %arg4[%c2_48, %c0_49, %c0_50] : memref<4x8x32xbf16, #tpu.memory_space<vmem>>, vector<1x8x32xbf16>
    %137 = vector.shape_cast %136 : vector<1x8x32xbf16> to vector<8x32xbf16>
    %cst_51 = arith.constant dense<0.000000e+00> : vector<18x32xf32>
    %138 = tpu.matmul %135, %137, %cst_51 {dimension_numbers = #tpu.dot_dimension_numbers<[1], [0], [0], [1], [0, 0, 1, 1], [], []>} : vector<18x8xbf16>, vector<8x32xbf16>, vector<18x32xf32> -> vector<18x32xf32>
    %139 = arith.addf %95, %138 : vector<18x32xf32>
    %140 = vector.extract_strided_slice %6 {offsets = [0, 24], sizes = [18, 8], strides = [1, 1]} : vector<18x96xf32> to vector<18x8xf32>
    %141 = vector.extract_strided_slice %6 {offsets = [0, 56], sizes = [18, 8], strides = [1, 1]} : vector<18x96xf32> to vector<18x8xf32>
    %142 = vector.extract_strided_slice %6 {offsets = [0, 88], sizes = [18, 8], strides = [1, 1]} : vector<18x96xf32> to vector<18x8xf32>
    %143 = arith.mulf %140, %140 : vector<18x8xf32>
    %cst_52 = arith.constant dense<0.000000e+00> : vector<18xf32>
    %144 = vector.multi_reduction <add>, %143, %cst_52 [1] : vector<18x8xf32> to vector<18xf32>
    %145 = vector.shape_cast %144 : vector<18xf32> to vector<18x1xf32>
    %cst_53 = arith.constant 1.000000e-24 : f32
    %146 = vector.broadcast %cst_53 : f32 to vector<18x1xf32>
    %147 = arith.maximumf %145, %146 : vector<18x1xf32>
    %148 = math.rsqrt %147 : vector<18x1xf32>
    %149 = vector.broadcast %148 : vector<18x1xf32> to vector<18x8xf32>
    %150 = arith.mulf %140, %149 : vector<18x8xf32>
    %151 = arith.mulf %141, %141 : vector<18x8xf32>
    %cst_54 = arith.constant dense<0.000000e+00> : vector<18xf32>
    %152 = vector.multi_reduction <add>, %151, %cst_54 [1] : vector<18x8xf32> to vector<18xf32>
    %153 = vector.shape_cast %152 : vector<18xf32> to vector<18x1xf32>
    %cst_55 = arith.constant 1.000000e-24 : f32
    %154 = vector.broadcast %cst_55 : f32 to vector<18x1xf32>
    %155 = arith.maximumf %153, %154 : vector<18x1xf32>
    %156 = math.rsqrt %155 : vector<18x1xf32>
    %157 = vector.broadcast %156 : vector<18x1xf32> to vector<18x8xf32>
    %158 = arith.mulf %141, %157 : vector<18x8xf32>
    "tpu.trace_start"() <{level = 10 : i32, message = "nd,md->nm"}> : () -> ()
    %cst_56 = arith.constant dense<0.000000e+00> : vector<18x18xf32>
    %159 = tpu.matmul %150, %158, %cst_56 {dimension_numbers = #tpu.dot_dimension_numbers<[1], [1], [0], [0], [0, 0, 1, 0], [], []>} : vector<18x8xf32>, vector<18x8xf32>, vector<18x18xf32> -> vector<18x18xf32>
    "tpu.trace_stop"() : () -> ()
    %c3 = arith.constant 3 : index
    %160 = memref.load %arg15[%c3] : memref<4xf32, #tpu.memory_space<smem>>
    %161 = vector.broadcast %160 : f32 to vector<18x18xf32>
    %162 = arith.mulf %159, %161 : vector<18x18xf32>
    %c3_57 = arith.constant 3 : index
    %c0_58 = arith.constant 0 : index
    %c0_59 = arith.constant 0 : index
    %163 = vector.load %arg6[%c3_57, %c0_58, %c0_59] : memref<4x18x18xf32, #tpu.memory_space<vmem>>, vector<1x18x18xf32>
    %164 = vector.shape_cast %163 : vector<1x18x18xf32> to vector<18x18xf32>
    %165 = arith.addf %162, %164 : vector<18x18xf32>
    %cst_60 = arith.constant dense<0xFF800000> : vector<18xf32>
    %166 = vector.multi_reduction <maximumf>, %165, %cst_60 [1] : vector<18x18xf32> to vector<18xf32>
    %167 = vector.shape_cast %166 : vector<18xf32> to vector<18x1xf32>
    %168 = vector.broadcast %167 : vector<18x1xf32> to vector<18x18xf32>
    %169 = arith.subf %165, %168 : vector<18x18xf32>
    %170 = math.exp %169 : vector<18x18xf32>
    %cst_61 = arith.constant dense<0.000000e+00> : vector<18xf32>
    %171 = vector.multi_reduction <add>, %170, %cst_61 [1] : vector<18x18xf32> to vector<18xf32>
    %172 = vector.shape_cast %171 : vector<18xf32> to vector<18x1xf32>
    %173 = tpu.reciprocal %172 {approx = true} : vector<18x1xf32> -> vector<18x1xf32>
    %174 = vector.broadcast %173 : vector<18x1xf32> to vector<18x18xf32>
    %175 = arith.mulf %170, %174 : vector<18x18xf32>
    %176 = arith.truncf %175 : vector<18x18xf32> to vector<18x18xbf16>
    %177 = arith.truncf %142 : vector<18x8xf32> to vector<18x8xbf16>
    %cst_62 = arith.constant dense<0.000000e+00> : vector<18x8xf32>
    %178 = tpu.matmul %176, %177, %cst_62 {dimension_numbers = #tpu.dot_dimension_numbers<[1], [0], [0], [1], [0, 0, 1, 1], [], []>} : vector<18x18xbf16>, vector<18x8xbf16>, vector<18x8xf32> -> vector<18x8xf32>
    %179 = arith.truncf %178 : vector<18x8xf32> to vector<18x8xbf16>
    %c3_63 = arith.constant 3 : index
    %c0_64 = arith.constant 0 : index
    %c0_65 = arith.constant 0 : index
    %180 = vector.load %arg4[%c3_63, %c0_64, %c0_65] : memref<4x8x32xbf16, #tpu.memory_space<vmem>>, vector<1x8x32xbf16>
    %181 = vector.shape_cast %180 : vector<1x8x32xbf16> to vector<8x32xbf16>
    %cst_66 = arith.constant dense<0.000000e+00> : vector<18x32xf32>
    %182 = tpu.matmul %179, %181, %cst_66 {dimension_numbers = #tpu.dot_dimension_numbers<[1], [0], [0], [1], [0, 0, 1, 1], [], []>} : vector<18x8xbf16>, vector<8x32xbf16>, vector<18x32xf32> -> vector<18x32xf32>
    %183 = arith.addf %139, %182 : vector<18x32xf32>
    %c0_67 = arith.constant 0 : index
    %c0_68 = arith.constant 0 : index
    %184 = vector.load %arg5[%c0_67, %c0_68] : memref<1x32xf32, #tpu.memory_space<vmem>>, vector<1x32xf32>
    %185 = vector.broadcast %184 : vector<1x32xf32> to vector<18x32xf32>
    %186 = arith.addf %183, %185 : vector<18x32xf32>
    %c0_69 = arith.constant 0 : index
    %c0_70 = arith.constant 0 : index
    %187 = vector.load %arg7[%c0_69, %c0_70] : memref<1x32xf32, #tpu.memory_space<vmem>>, vector<1x32xf32>
    %c0_71 = arith.constant 0 : index
    %c0_72 = arith.constant 0 : index
    %188 = vector.load %arg8[%c0_71, %c0_72] : memref<1x32xf32, #tpu.memory_space<vmem>>, vector<1x32xf32>
    %cst_73 = arith.constant dense<0.000000e+00> : vector<18xf32>
    %189 = vector.multi_reduction <add>, %186, %cst_73 [1] : vector<18x32xf32> to vector<18xf32>
    %190 = vector.shape_cast %189 : vector<18xf32> to vector<18x1xf32>
    %cst_74 = arith.constant 3.200000e+01 : f32
    %191 = vector.broadcast %cst_74 : f32 to vector<18x1xf32>
    %192 = arith.divf %190, %191 : vector<18x1xf32>
    %193 = vector.broadcast %192 : vector<18x1xf32> to vector<18x32xf32>
    %194 = arith.subf %186, %193 : vector<18x32xf32>
    %195 = arith.mulf %194, %194 : vector<18x32xf32>
    %cst_75 = arith.constant dense<0.000000e+00> : vector<18xf32>
    %196 = vector.multi_reduction <add>, %195, %cst_75 [1] : vector<18x32xf32> to vector<18xf32>
    %197 = vector.shape_cast %196 : vector<18xf32> to vector<18x1xf32>
    %cst_76 = arith.constant 3.200000e+01 : f32
    %198 = vector.broadcast %cst_76 : f32 to vector<18x1xf32>
    %199 = arith.divf %197, %198 : vector<18x1xf32>
    %200 = vector.broadcast %192 : vector<18x1xf32> to vector<18x32xf32>
    %201 = arith.subf %186, %200 : vector<18x32xf32>
    %cst_77 = arith.constant 9.99999974E-6 : f32
    %202 = vector.broadcast %cst_77 : f32 to vector<18x1xf32>
    %203 = arith.addf %199, %202 : vector<18x1xf32>
    %204 = math.rsqrt %203 : vector<18x1xf32>
    %205 = vector.broadcast %204 : vector<18x1xf32> to vector<18x32xf32>
    %206 = arith.mulf %201, %205 : vector<18x32xf32>
    %207 = vector.broadcast %187 : vector<1x32xf32> to vector<18x32xf32>
    %208 = arith.mulf %206, %207 : vector<18x32xf32>
    %209 = vector.broadcast %188 : vector<1x32xf32> to vector<18x32xf32>
    %210 = arith.addf %208, %209 : vector<18x32xf32>
    %211 = arith.addf %0, %210 : vector<18x32xf32>
    %212 = arith.truncf %211 : vector<18x32xf32> to vector<18x32xbf16>
    %c0_78 = arith.constant 0 : index
    %c0_79 = arith.constant 0 : index
    %213 = vector.load %arg9[%c0_78, %c0_79] : memref<32x128xbf16, #tpu.memory_space<vmem>>, vector<32x128xbf16>
    %cst_80 = arith.constant dense<0.000000e+00> : vector<18x128xf32>
    %214 = tpu.matmul %212, %213, %cst_80 {dimension_numbers = #tpu.dot_dimension_numbers<[1], [0], [0], [1], [0, 0, 1, 1], [], []>} : vector<18x32xbf16>, vector<32x128xbf16>, vector<18x128xf32> -> vector<18x128xf32>
    %c0_81 = arith.constant 0 : index
    %c0_82 = arith.constant 0 : index
    %215 = vector.load %arg10[%c0_81, %c0_82] : memref<1x128xf32, #tpu.memory_space<vmem>>, vector<1x128xf32>
    %216 = vector.broadcast %215 : vector<1x128xf32> to vector<18x128xf32>
    %217 = arith.addf %214, %216 : vector<18x128xf32>
    %cst_83 = arith.constant 5.000000e-01 : f32
    %218 = vector.broadcast %cst_83 : f32 to vector<18x128xf32>
    %219 = arith.mulf %218, %217 : vector<18x128xf32>
    %cst_84 = arith.constant 0.707106769 : f32
    %220 = vector.broadcast %cst_84 : f32 to vector<18x128xf32>
    %221 = arith.mulf %217, %220 : vector<18x128xf32>
    %222 = math.erf %221 : vector<18x128xf32>
    %cst_85 = arith.constant 1.000000e+00 : f32
    %223 = vector.broadcast %cst_85 : f32 to vector<18x128xf32>
    %224 = arith.addf %223, %222 : vector<18x128xf32>
    %225 = arith.mulf %219, %224 : vector<18x128xf32>
    %226 = arith.truncf %225 : vector<18x128xf32> to vector<18x128xbf16>
    %c0_86 = arith.constant 0 : index
    %c0_87 = arith.constant 0 : index
    %227 = vector.load %arg11[%c0_86, %c0_87] : memref<128x32xbf16, #tpu.memory_space<vmem>>, vector<128x32xbf16>
    %cst_88 = arith.constant dense<0.000000e+00> : vector<18x32xf32>
    %228 = tpu.matmul %226, %227, %cst_88 {dimension_numbers = #tpu.dot_dimension_numbers<[1], [0], [0], [1], [0, 0, 1, 1], [], []>} : vector<18x128xbf16>, vector<128x32xbf16>, vector<18x32xf32> -> vector<18x32xf32>
    %c0_89 = arith.constant 0 : index
    %c0_90 = arith.constant 0 : index
    %229 = vector.load %arg12[%c0_89, %c0_90] : memref<1x32xf32, #tpu.memory_space<vmem>>, vector<1x32xf32>
    %230 = vector.broadcast %229 : vector<1x32xf32> to vector<18x32xf32>
    %231 = arith.addf %228, %230 : vector<18x32xf32>
    %c0_91 = arith.constant 0 : index
    %c0_92 = arith.constant 0 : index
    %232 = vector.load %arg13[%c0_91, %c0_92] : memref<1x32xf32, #tpu.memory_space<vmem>>, vector<1x32xf32>
    %c0_93 = arith.constant 0 : index
    %c0_94 = arith.constant 0 : index
    %233 = vector.load %arg14[%c0_93, %c0_94] : memref<1x32xf32, #tpu.memory_space<vmem>>, vector<1x32xf32>
    %cst_95 = arith.constant dense<0.000000e+00> : vector<18xf32>
    %234 = vector.multi_reduction <add>, %231, %cst_95 [1] : vector<18x32xf32> to vector<18xf32>
    %235 = vector.shape_cast %234 : vector<18xf32> to vector<18x1xf32>
    %cst_96 = arith.constant 3.200000e+01 : f32
    %236 = vector.broadcast %cst_96 : f32 to vector<18x1xf32>
    %237 = arith.divf %235, %236 : vector<18x1xf32>
    %238 = vector.broadcast %237 : vector<18x1xf32> to vector<18x32xf32>
    %239 = arith.subf %231, %238 : vector<18x32xf32>
    %240 = arith.mulf %239, %239 : vector<18x32xf32>
    %cst_97 = arith.constant dense<0.000000e+00> : vector<18xf32>
    %241 = vector.multi_reduction <add>, %240, %cst_97 [1] : vector<18x32xf32> to vector<18xf32>
    %242 = vector.shape_cast %241 : vector<18xf32> to vector<18x1xf32>
    %cst_98 = arith.constant 3.200000e+01 : f32
    %243 = vector.broadcast %cst_98 : f32 to vector<18x1xf32>
    %244 = arith.divf %242, %243 : vector<18x1xf32>
    %245 = vector.broadcast %237 : vector<18x1xf32> to vector<18x32xf32>
    %246 = arith.subf %231, %245 : vector<18x32xf32>
    %cst_99 = arith.constant 9.99999974E-6 : f32
    %247 = vector.broadcast %cst_99 : f32 to vector<18x1xf32>
    %248 = arith.addf %244, %247 : vector<18x1xf32>
    %249 = math.rsqrt %248 : vector<18x1xf32>
    %250 = vector.broadcast %249 : vector<18x1xf32> to vector<18x32xf32>
    %251 = arith.mulf %246, %250 : vector<18x32xf32>
    %252 = vector.broadcast %232 : vector<1x32xf32> to vector<18x32xf32>
    %253 = arith.mulf %251, %252 : vector<18x32xf32>
    %254 = vector.broadcast %233 : vector<1x32xf32> to vector<18x32xf32>
    %255 = arith.addf %253, %254 : vector<18x32xf32>
    %256 = arith.addf %211, %255 : vector<18x32xf32>
    %c0_100 = arith.constant 0 : index
    %c0_101 = arith.constant 0 : index
    %257 = vector.load %arg16[%c0_100, %c0_101] : memref<18x32xf32, #tpu.memory_space<vmem>>, vector<18x32xf32>
    tpu.vector_store %arg16[%c0_100, %c0_101], %256 {strides = array<i32>} : memref<18x32xf32, #tpu.memory_space<vmem>>, vector<18x32xf32>,
    return
  }
  func.func @transform_0(%arg0: i32) -> (i32, i32) {
    %c0_i32 = arith.constant 0 : i32
    %c0_i32_0 = arith.constant 0 : i32
    %c0_i32_1 = arith.constant 0 : i32
    return %c0_i32, %c0_i32_0 : i32, i32
  }
  func.func @transform_1(%arg0: i32) -> (i32, i32) {
    %c0_i32 = arith.constant 0 : i32
    %c0_i32_0 = arith.constant 0 : i32
    %c0_i32_1 = arith.constant 0 : i32
    return %c0_i32, %c0_i32_0 : i32, i32
  }
  func.func @transform_2(%arg0: i32) -> (i32, i32) {
    %c0_i32 = arith.constant 0 : i32
    %c0_i32_0 = arith.constant 0 : i32
    %c0_i32_1 = arith.constant 0 : i32
    return %c0_i32, %c0_i32_0 : i32, i32
  }
  func.func @transform_3(%arg0: i32) -> (i32, i32, i32) {
    %c0_i32 = arith.constant 0 : i32
    %c0_i32_0 = arith.constant 0 : i32
    %c0_i32_1 = arith.constant 0 : i32
    %c0_i32_2 = arith.constant 0 : i32
    return %c0_i32, %c0_i32_0, %c0_i32_1 : i32, i32, i32
  }
  func.func @transform_4(%arg0: i32) -> (i32, i32) {
    %c0_i32 = arith.constant 0 : i32
    %c0_i32_0 = arith.constant 0 : i32
    %c0_i32_1 = arith.constant 0 : i32
    return %c0_i32, %c0_i32_0 : i32, i32
  }
  func.func @transform_5(%arg0: i32) -> (i32, i32, i32) {
    %c0_i32 = arith.constant 0 : i32
    %c0_i32_0 = arith.constant 0 : i32
    %c0_i32_1 = arith.constant 0 : i32
    %c0_i32_2 = arith.constant 0 : i32
    return %c0_i32, %c0_i32_0, %c0_i32_1 : i32, i32, i32
  }
  func.func @transform_6(%arg0: i32) -> (i32, i32) {
    %c0_i32 = arith.constant 0 : i32
    %c0_i32_0 = arith.constant 0 : i32
    %c0_i32_1 = arith.constant 0 : i32
    return %c0_i32, %c0_i32_0 : i32, i32
  }
  func.func @transform_7(%arg0: i32) -> (i32, i32) {
    %c0_i32 = arith.constant 0 : i32
    %c0_i32_0 = arith.constant 0 : i32
    %c0_i32_1 = arith.constant 0 : i32
    return %c0_i32, %c0_i32_0 : i32, i32
  }
  func.func @transform_8(%arg0: i32) -> (i32, i32) {
    %c0_i32 = arith.constant 0 : i32
    %c0_i32_0 = arith.constant 0 : i32
    %c0_i32_1 = arith.constant 0 : i32
    return %c0_i32, %c0_i32_0 : i32, i32
  }
  func.func @transform_9(%arg0: i32) -> (i32, i32) {
    %c0_i32 = arith.constant 0 : i32
    %c0_i32_0 = arith.constant 0 : i32
    %c0_i32_1 = arith.constant 0 : i32
    return %c0_i32, %c0_i32_0 : i32, i32
  }
  func.func @transform_10(%arg0: i32) -> (i32, i32) {
    %c0_i32 = arith.constant 0 : i32
    %c0_i32_0 = arith.constant 0 : i32
    %c0_i32_1 = arith.constant 0 : i32
    return %c0_i32, %c0_i32_0 : i32, i32
  }
  func.func @transform_11(%arg0: i32) -> (i32, i32) {
    %c0_i32 = arith.constant 0 : i32
    %c0_i32_0 = arith.constant 0 : i32
    %c0_i32_1 = arith.constant 0 : i32
    return %c0_i32, %c0_i32_0 : i32, i32
  }
  func.func @transform_12(%arg0: i32) -> (i32, i32) {
    %c0_i32 = arith.constant 0 : i32
    %c0_i32_0 = arith.constant 0 : i32
    %c0_i32_1 = arith.constant 0 : i32
    return %c0_i32, %c0_i32_0 : i32, i32
  }
  func.func @transform_13(%arg0: i32) -> (i32, i32) {
    %c0_i32 = arith.constant 0 : i32
    %c0_i32_0 = arith.constant 0 : i32
    %c0_i32_1 = arith.constant 0 : i32
    return %c0_i32, %c0_i32_0 : i32, i32
  }
  func.func @transform_14(%arg0: i32) -> i32 {
    %c0_i32 = arith.constant 0 : i32
    %c0_i32_0 = arith.constant 0 : i32
    return %c0_i32 : i32
  }
  func.func @transform_15(%arg0: i32) -> (i32, i32) {
    %c0_i32 = arith.constant 0 : i32
    %c0_i32_0 = arith.constant 0 : i32
    %c0_i32_1 = arith.constant 0 : i32
    return %c0_i32, %c0_i32_0 : i32, i32
  }
}

module attributes {stable_mosaic.version = 11 : i64} {
  func.func @_ln_linear_kernel(%arg0: i32, %arg1: memref<18x32xf32, #tpu.memory_space<vmem>>, %arg2: memref<1x32xf32, #tpu.memory_space<vmem>>, %arg3: memref<1x32xf32, #tpu.memory_space<vmem>>, %arg4: memref<32x8xbf16, #tpu.memory_space<vmem>>, %arg5: memref<1x8xf32, #tpu.memory_space<vmem>>, %arg6: memref<18x8xf32, #tpu.memory_space<vmem>>) attributes {dimension_semantics = [#tpu.dimension_semantics<arbitrary>], iteration_bounds = array<i64: 1>, scalar_prefetch = 0 : i64, scratch_operands = 0 : i64, tpu.core_type = #tpu.core_type<tc>, window_params = [{pipeline_mode = #tpu.pipeline_mode<synchronous>, transform_indices = @transform_0, window_bounds = array<i64: 18, 32>}, {pipeline_mode = #tpu.pipeline_mode<synchronous>, transform_indices = @transform_1, window_bounds = array<i64: 1, 32>}, {pipeline_mode = #tpu.pipeline_mode<synchronous>, transform_indices = @transform_2, window_bounds = array<i64: 1, 32>}, {pipeline_mode = #tpu.pipeline_mode<synchronous>, transform_indices = @transform_3, window_bounds = array<i64: 32, 8>}, {pipeline_mode = #tpu.pipeline_mode<synchronous>, transform_indices = @transform_4, window_bounds = array<i64: 1, 8>}, {pipeline_mode = #tpu.pipeline_mode<synchronous>, transform_indices = @transform_5, window_bounds = array<i64: 18, 8>}]} {
    %c0 = arith.constant 0 : index
    %c0_0 = arith.constant 0 : index
    %0 = vector.load %arg1[%c0, %c0_0] : memref<18x32xf32, #tpu.memory_space<vmem>>, vector<18x32xf32>
    %c0_1 = arith.constant 0 : index
    %c0_2 = arith.constant 0 : index
    %1 = vector.load %arg2[%c0_1, %c0_2] : memref<1x32xf32, #tpu.memory_space<vmem>>, vector<1x32xf32>
    %c0_3 = arith.constant 0 : index
    %c0_4 = arith.constant 0 : index
    %2 = vector.load %arg3[%c0_3, %c0_4] : memref<1x32xf32, #tpu.memory_space<vmem>>, vector<1x32xf32>
    %cst = arith.constant dense<0.000000e+00> : vector<18xf32>
    %3 = vector.multi_reduction <add>, %0, %cst [1] : vector<18x32xf32> to vector<18xf32>
    %4 = vector.shape_cast %3 : vector<18xf32> to vector<18x1xf32>
    %cst_5 = arith.constant 3.200000e+01 : f32
    %5 = vector.broadcast %cst_5 : f32 to vector<18x1xf32>
    %6 = arith.divf %4, %5 : vector<18x1xf32>
    %7 = vector.broadcast %6 : vector<18x1xf32> to vector<18x32xf32>
    %8 = arith.subf %0, %7 : vector<18x32xf32>
    %9 = arith.mulf %8, %8 : vector<18x32xf32>
    %cst_6 = arith.constant dense<0.000000e+00> : vector<18xf32>
    %10 = vector.multi_reduction <add>, %9, %cst_6 [1] : vector<18x32xf32> to vector<18xf32>
    %11 = vector.shape_cast %10 : vector<18xf32> to vector<18x1xf32>
    %cst_7 = arith.constant 3.200000e+01 : f32
    %12 = vector.broadcast %cst_7 : f32 to vector<18x1xf32>
    %13 = arith.divf %11, %12 : vector<18x1xf32>
    %14 = vector.broadcast %6 : vector<18x1xf32> to vector<18x32xf32>
    %15 = arith.subf %0, %14 : vector<18x32xf32>
    %cst_8 = arith.constant 9.99999974E-6 : f32
    %16 = vector.broadcast %cst_8 : f32 to vector<18x1xf32>
    %17 = arith.addf %13, %16 : vector<18x1xf32>
    %18 = math.rsqrt %17 : vector<18x1xf32>
    %19 = vector.broadcast %18 : vector<18x1xf32> to vector<18x32xf32>
    %20 = arith.mulf %15, %19 : vector<18x32xf32>
    %21 = vector.broadcast %1 : vector<1x32xf32> to vector<18x32xf32>
    %22 = arith.mulf %20, %21 : vector<18x32xf32>
    %23 = vector.broadcast %2 : vector<1x32xf32> to vector<18x32xf32>
    %24 = arith.addf %22, %23 : vector<18x32xf32>
    %25 = arith.truncf %24 : vector<18x32xf32> to vector<18x32xbf16>
    %c0_9 = arith.constant 0 : index
    %c0_10 = arith.constant 0 : index
    %26 = vector.load %arg4[%c0_9, %c0_10] : memref<32x8xbf16, #tpu.memory_space<vmem>>, vector<32x8xbf16>
    %cst_11 = arith.constant dense<0.000000e+00> : vector<18x8xf32>
    %27 = tpu.matmul %25, %26, %cst_11 {dimension_numbers = #tpu.dot_dimension_numbers<[1], [0], [0], [1], [0, 0, 1, 1], [], []>} : vector<18x32xbf16>, vector<32x8xbf16>, vector<18x8xf32> -> vector<18x8xf32>
    %c0_12 = arith.constant 0 : index
    %c0_13 = arith.constant 0 : index
    %28 = vector.load %arg5[%c0_12, %c0_13] : memref<1x8xf32, #tpu.memory_space<vmem>>, vector<1x8xf32>
    %29 = vector.broadcast %28 : vector<1x8xf32> to vector<18x8xf32>
    %30 = arith.addf %27, %29 : vector<18x8xf32>
    %c0_14 = arith.constant 0 : index
    %c0_15 = arith.constant 0 : index
    %31 = vector.load %arg6[%c0_14, %c0_15] : memref<18x8xf32, #tpu.memory_space<vmem>>, vector<18x8xf32>
    tpu.vector_store %arg6[%c0_14, %c0_15], %30 {strides = array<i32>} : memref<18x8xf32, #tpu.memory_space<vmem>>, vector<18x8xf32>,
    return
  }
  func.func @transform_0(%arg0: i32) -> (i32, i32) {
    %c0_i32 = arith.constant 0 : i32
    %c0_i32_0 = arith.constant 0 : i32
    %c0_i32_1 = arith.constant 0 : i32
    return %c0_i32, %c0_i32_0 : i32, i32
  }
  func.func @transform_1(%arg0: i32) -> (i32, i32) {
    %c0_i32 = arith.constant 0 : i32
    %c0_i32_0 = arith.constant 0 : i32
    %c0_i32_1 = arith.constant 0 : i32
    return %c0_i32, %c0_i32_0 : i32, i32
  }
  func.func @transform_2(%arg0: i32) -> (i32, i32) {
    %c0_i32 = arith.constant 0 : i32
    %c0_i32_0 = arith.constant 0 : i32
    %c0_i32_1 = arith.constant 0 : i32
    return %c0_i32, %c0_i32_0 : i32, i32
  }
  func.func @transform_3(%arg0: i32) -> (i32, i32) {
    %c0_i32 = arith.constant 0 : i32
    %c0_i32_0 = arith.constant 0 : i32
    %c0_i32_1 = arith.constant 0 : i32
    return %c0_i32, %c0_i32_0 : i32, i32
  }
  func.func @transform_4(%arg0: i32) -> (i32, i32) {
    %c0_i32 = arith.constant 0 : i32
    %c0_i32_0 = arith.constant 0 : i32
    %c0_i32_1 = arith.constant 0 : i32
    return %c0_i32, %c0_i32_0 : i32, i32
  }
  func.func @transform_5(%arg0: i32) -> (i32, i32) {
    %c0_i32 = arith.constant 0 : i32
    %c0_i32_0 = arith.constant 0 : i32
    %c0_i32_1 = arith.constant 0 : i32
    return %c0_i32, %c0_i32_0 : i32, i32
  }
}

</mosaic_0001>

<llo_original>
// kernel: swin_forward.7
$region0: #{swin_forward.7}
  #allocation0 [shape = 'u32[]', space=smem, size = 0x4, offset = 0x4, fixed_abs, tag = 'smem constant byte address 0x4 - core index']
  #allocation1 [shape = 'u32[144,128]{1,0:T(1,128)}', space=vmem, size = 0x12000, scoped, tag = 'internal scratch']
  %s0 = inlined_call_operand.vmem [shape: f32[72,16], index: 0, kind: input, shape index: {}]
  %s1 = inlined_call_operand.vmem [shape: bf16[16,16], index: 1, kind: input, shape index: {}]
  %s2 = inlined_call_operand.vmem [shape: f32[1,16], index: 2, kind: input, shape index: {}]
  %s3 = inlined_call_operand.vmem [shape: f32[1,16], index: 3, kind: input, shape index: {}]
  %s4 = inlined_call_operand.vmem [shape: f32[1,16], index: 4, kind: input, shape index: {}]
  %s5 = inlined_call_operand.vmem [shape: f32[72,16], index: 5, kind: output, shape index: {}]
  %s6 = sld [smem:[#allocation0]]
  $region30: #{swin_forward.7} parent=0
    _
  %s8 = ssub.s32 1, %s6
  %s9 = scalar_select 0, %s8, %s6
  // Predicated region
  $region2: #{swin_forward.7} parent=0 // pred_check
    _
  $region3: #{swin_forward.7} parent=0 // pred_check_branch
    %11 = sbr.rel (0) target = $region5
  $region4: #{swin_forward.7} parent=0 // pred_region
    _
  $region5: #{swin_forward.7} parent=0 // pred_fallthru
    _
  // Predicated region
  $region6: #{swin_forward.7} parent=0 // pred_check
    _
  $region7: #{swin_forward.7} parent=0 // pred_check_branch
    %13 = sbr.rel (0) target = $region9
  $region8: #{swin_forward.7} parent=0 // pred_region
    _
  $region9: #{swin_forward.7} parent=0 // pred_fallthru
    _
  // Predicated region
  $region10: #{swin_forward.7} parent=0 // pred_check
    _
  $region11: #{swin_forward.7} parent=0 // pred_check_branch
    %15 = sbr.rel (0) target = $region13
  $region12: #{swin_forward.7} parent=0 // pred_region
    _
  $region13: #{swin_forward.7} parent=0 // pred_fallthru
    _
  // Predicated region
  $region14: #{swin_forward.7} parent=0 // pred_check
    _
  $region15: #{swin_forward.7} parent=0 // pred_check_branch
    %17 = sbr.rel (0) target = $region17
  $region16: #{swin_forward.7} parent=0 // pred_region
    _
  $region17: #{swin_forward.7} parent=0 // pred_fallthru
    _
  // Predicated region
  $region18: #{swin_forward.7} parent=0 // pred_check
    _
  $region19: #{swin_forward.7} parent=0 // pred_check_branch
    %19 = sbr.rel (0) target = $region21
  $region20: #{swin_forward.7} parent=0 // pred_region
    _
  $region21: #{swin_forward.7} parent=0 // pred_fallthru
    _
  %v21 = vld [vmem:[%s0] sm:$0xff]
  %v22 = vld [vmem:[%s0 + $0x8] sm:$0xff]
  %v23 = vld [vmem:[%s0 + $0x10] sm:$0xff]
  %v24 = vld [vmem:[%s0 + $0x18] sm:$0xff]
  %v25 = vld [vmem:[%s0 + $0x20] sm:$0xff]
  %v26 = vld [vmem:[%s0 + $0x28] sm:$0xff]
  %v27 = vld [vmem:[%s0 + $0x30] sm:$0xff]
  %v28 = vld [vmem:[%s0 + $0x38] sm:$0xff]
  %v29 = vld [vmem:[%s0 + $0x40] sm:$0xff]
  %v30 = vpack.c.bf16 %v22, %v21
  %v31 = vpack.c.bf16 %v24, %v23
  %v32 = vpack.c.bf16 %v26, %v25
  %v33 = vpack.c.bf16 %v28, %v27
  %v34 = vpack.c.bf16 %v29, %v29
  %v35 = vld [vmem:[%s1] sm:$0xf]
  %v36 = vld [vmem:[%s1 + $0x4] sm:$0xf]
  %v37 = vld [vmem:[%s2] sm:$0x1]
  %v39 = vlaneseq
  %v40 = vshrl.u32 %v39, 7
  %v41 = vsub.s32 0, %v40
  %v42 = vrot.slane %v37, %v41
  %v46 = vunpack.c.l.b16 %v35
  %v47 = vunpack.c.l.b16 %v36
  %v48 = vpack.c.b16 %v47, %v46
  %vm50 = vcmask 130048
  %v52 = vsel %vm50, %v30, 0
  %v55 = vsel %vm50, %v31, 0
  %v58 = vsel %vm50, %v32, 0
  %v61 = vsel %vm50, %v33, 0
  %v64 = vsel %vm50, %v34, 0
  %66 = vmatprep.subr.bf16.mxu0 0
  %67 = vmatpush1.bf16.msra.mxu0 %v48
  %68 = vmatprep.subr.bf16.mxu0 0
  %69 = vmatpush1.bf16.msra.mxu0 0
  %70 = vmatprep.subr.bf16.mxu0 0
  %71 = vmatpush1.bf16.msra.mxu0 0
  %72 = vmatprep.subr.bf16.mxu0 0
  %73 = vmatpush1.bf16.msra.mxu0 0
  %74 = vmatprep.subr.bf16.mxu0 0
  %75 = vmatpush1.bf16.msra.mxu0 0
  %76 = vmatprep.subr.bf16.mxu0 0
  %77 = vmatpush1.bf16.msra.mxu0 0
  %78 = vmatprep.subr.bf16.mxu0 0
  %79 = vmatpush1.bf16.msra.mxu0 0
  %80 = vmatprep.subr.bf16.mxu0 0
  %81 = vmatpush1.bf16.msra.mxu0 0
  %82 = vmatprep.subr.bf16.mxu0 0
  %83 = vmatpush1.bf16.msra.mxu0 0
  %84 = vmatprep.subr.bf16.mxu0 0
  %85 = vmatpush1.bf16.msra.mxu0 0
  %86 = vmatprep.subr.bf16.mxu0 0
  %87 = vmatpush1.bf16.msra.mxu0 0
  %88 = vmatprep.subr.bf16.mxu0 0
  %89 = vmatpush1.bf16.msra.mxu0 0
  %90 = vmatprep.subr.bf16.mxu0 0
  %91 = vmatpush1.bf16.msra.mxu0 0
  %92 = vmatprep.subr.bf16.mxu0 0
  %93 = vmatpush1.bf16.msra.mxu0 0
  %94 = vmatprep.subr.bf16.mxu0 0
  %95 = vmatpush1.bf16.msra.mxu0 0
  %96 = vmatprep.subr.bf16.mxu0 0
  %97 = vmatpush1.bf16.msra.mxu0 0
  %98 = vmatprep.mubr.bf16.mxu0 0
  %99 = vmatmul.mubr.bf16.gmra.mrb[0].mxu0 %v52
  %v100 = vpop.f32.mrb[0].mxu0
  %v101 = vadd.f32 %v42, %v100
  %v102 = vpop.f32.mrb[0].mxu0
  %v103 = vpop.f32.mrb[0].mxu0
  %v104 = vadd.f32 %v42, %v103
  %v105 = vpop.f32.mrb[0].mxu0
  %106 = vmatprep.mubr.bf16.mxu0 0
  %107 = vmatmul.mubr.bf16.gmra.mrb[0].mxu0 %v55
  %v108 = vpop.f32.mrb[0].mxu0
  %v109 = vadd.f32 %v42, %v108
  %v110 = vpop.f32.mrb[0].mxu0
  %v111 = vpop.f32.mrb[0].mxu0
  %v112 = vadd.f32 %v42, %v111
  %v113 = vpop.f32.mrb[0].mxu0
  %114 = vmatprep.mubr.bf16.mxu0 0
  %115 = vmatmul.mubr.bf16.gmra.mrb[0].mxu0 %v58
  %v116 = vpop.f32.mrb[0].mxu0
  %v117 = vadd.f32 %v42, %v116
  %v118 = vpop.f32.mrb[0].mxu0
  %v119 = vpop.f32.mrb[0].mxu0
  %v120 = vadd.f32 %v42, %v119
  %v121 = vpop.f32.mrb[0].mxu0
  %122 = vmatprep.mubr.bf16.mxu0 0
  %123 = vmatmul.mubr.bf16.gmra.mrb[0].mxu0 %v61
  %v124 = vpop.f32.mrb[0].mxu0
  %v125 = vadd.f32 %v42, %v124
  %v126 = vpop.f32.mrb[0].mxu0
  %v127 = vpop.f32.mrb[0].mxu0
  %v128 = vadd.f32 %v42, %v127
  %v129 = vpop.f32.mrb[0].mxu0
  %130 = vmatprep.mubr.bf16.mxu0 0
  %131 = vmatmul.mubr.bf16.gmra.mrb[0].mxu0 %v64
  %v132 = vpop.f32.mrb[0].mxu0
  %v133 = vadd.f32 %v42, %v132
  %v134 = vpop.f32.mrb[0].mxu0
  %v135 = vpop.f32.mrb[0].mxu0
  %v136 = vpop.f32.mrb[0].mxu0
  %137 = vdwg.mxu0
  %v138 = vld [vmem:[%s3] sm:$0x1]
  %v139 = vld [vmem:[%s4] sm:$0x1]
  %v140 = vsel %vm50, %v101, 0.0
  %141 = vadd.xlane.f32.xlu0 %v140
  %v142 = vpop.xlane.xlu0 %141
  %v143 = vsel %vm50, %v104, 0.0
  %144 = vadd.xlane.f32.xlu0 %v143
  %v145 = vpop.xlane.xlu0 %144
  %v146 = vsel %vm50, %v109, 0.0
  %147 = vadd.xlane.f32.xlu0 %v146
  %v148 = vpop.xlane.xlu0 %147
  %v149 = vsel %vm50, %v112, 0.0
  %150 = vadd.xlane.f32.xlu0 %v149
  %v151 = vpop.xlane.xlu0 %150
  %v152 = vsel %vm50, %v117, 0.0
  %153 = vadd.xlane.f32.xlu0 %v152
  %v154 = vpop.xlane.xlu0 %153
  %v155 = vsel %vm50, %v120, 0.0
  %156 = vadd.xlane.f32.xlu0 %v155
  %v157 = vpop.xlane.xlu0 %156
  %v158 = vsel %vm50, %v125, 0.0
  %159 = vadd.xlane.f32.xlu0 %v158
  %v160 = vpop.xlane.xlu0 %159
  %v161 = vsel %vm50, %v128, 0.0
  %162 = vadd.xlane.f32.xlu0 %v161
  %v163 = vpop.xlane.xlu0 %162
  %v164 = vsel %vm50, %v133, 0.0
  %165 = vadd.xlane.f32.xlu0 %v164
  %v166 = vpop.xlane.xlu0 %165
  %v167 = vrcp.pop 16.0
  %v168 = vmul.f32 %v142, %v167
  %v169 = vmul.f32 %v145, %v167
  %v170 = vmul.f32 %v148, %v167
  %v171 = vmul.f32 %v151, %v167
  %v172 = vmul.f32 %v154, %v167
  %v173 = vmul.f32 %v157, %v167
  %v174 = vmul.f32 %v160, %v167
  %v175 = vmul.f32 %v163, %v167
  %v176 = vmul.f32 %v166, %v167
  %v177 = vsub.f32 %v101, %v168
  %v178 = vsub.f32 %v104, %v169
  %v179 = vsub.f32 %v109, %v170
  %v180 = vsub.f32 %v112, %v171
  %v181 = vsub.f32 %v117, %v172
  %v182 = vsub.f32 %v120, %v173
  %v183 = vsub.f32 %v125, %v174
  %v184 = vsub.f32 %v128, %v175
  %v185 = vsub.f32 %v133, %v176
  %v186 = vmul.f32 %v177, %v177
  %v187 = vmul.f32 %v178, %v178
  %v188 = vmul.f32 %v179, %v179
  %v189 = vmul.f32 %v180, %v180
  %v190 = vmul.f32 %v181, %v181
  %v191 = vmul.f32 %v182, %v182
  %v192 = vmul.f32 %v183, %v183
  %v193 = vmul.f32 %v184, %v184
  %v194 = vmul.f32 %v185, %v185
  %v195 = vsel %vm50, %v186, 0.0
  %196 = vadd.xlane.f32.xlu0 %v195
  %v197 = vpop.xlane.xlu0 %196
  %v198 = vsel %vm50, %v187, 0.0
  %199 = vadd.xlane.f32.xlu0 %v198
  %v200 = vpop.xlane.xlu0 %199
  %v201 = vsel %vm50, %v188, 0.0
  %202 = vadd.xlane.f32.xlu0 %v201
  %v203 = vpop.xlane.xlu0 %202
  %v204 = vsel %vm50, %v189, 0.0
  %205 = vadd.xlane.f32.xlu0 %v204
  %v206 = vpop.xlane.xlu0 %205
  %v207 = vsel %vm50, %v190, 0.0
  %208 = vadd.xlane.f32.xlu0 %v207
  %v209 = vpop.xlane.xlu0 %208
  %v210 = vsel %vm50, %v191, 0.0
  %211 = vadd.xlane.f32.xlu0 %v210
  %v212 = vpop.xlane.xlu0 %211
  %v213 = vsel %vm50, %v192, 0.0
  %214 = vadd.xlane.f32.xlu0 %v213
  %v215 = vpop.xlane.xlu0 %214
  %v216 = vsel %vm50, %v193, 0.0
  %217 = vadd.xlane.f32.xlu0 %v216
  %v218 = vpop.xlane.xlu0 %217
  %v219 = vsel %vm50, %v194, 0.0
  %220 = vadd.xlane.f32.xlu0 %v219
  %v221 = vpop.xlane.xlu0 %220
  %v222 = vmul.f32 %v197, %v167
  %v223 = vmul.f32 %v200, %v167
  %v224 = vmul.f32 %v203, %v167
  %v225 = vmul.f32 %v206, %v167
  %v226 = vmul.f32 %v209, %v167
  %v227 = vmul.f32 %v212, %v167
  %v228 = vmul.f32 %v215, %v167
  %v229 = vmul.f32 %v218, %v167
  %v230 = vmul.f32 %v221, %v167
  %v231 = vadd.f32 %v222, 1e-05
  %v232 = vadd.f32 %v223, 1e-05
  %v233 = vadd.f32 %v224, 1e-05
  %v234 = vadd.f32 %v225, 1e-05
  %v235 = vadd.f32 %v226, 1e-05
  %v236 = vadd.f32 %v227, 1e-05
  %v237 = vadd.f32 %v228, 1e-05
  %v238 = vadd.f32 %v229, 1e-05
  %v239 = vadd.f32 %v230, 1e-05
  %v240 = vrsqrt.pop %v231
  %v241 = vrsqrt.pop %v232
  %v242 = vrsqrt.pop %v233
  %v243 = vrsqrt.pop %v234
  %v244 = vrsqrt.pop %v235
  %v245 = vrsqrt.pop %v236
  %v246 = vrsqrt.pop %v237
  %v247 = vrsqrt.pop %v238
  %v248 = vrsqrt.pop %v239
  %v249 = vmul.f32 %v177, %v240
  %v250 = vmul.f32 %v178, %v241
  %v251 = vmul.f32 %v179, %v242
  %v252 = vmul.f32 %v180, %v243
  %v253 = vmul.f32 %v181, %v244
  %v254 = vmul.f32 %v182, %v245
  %v255 = vmul.f32 %v183, %v246
  %v256 = vmul.f32 %v184, %v247
  %v257 = vmul.f32 %v185, %v248
  %v259 = vlaneseq
  %v260 = vshrl.u32 %v259, 7
  %v261 = vsub.s32 0, %v260
  %v262 = vrot.slane %v138, %v261
  %v264 = vmul.f32 %v249, %v262
  %v265 = vmul.f32 %v250, %v262
  %v266 = vmul.f32 %v251, %v262
  %v267 = vmul.f32 %v252, %v262
  %v268 = vmul.f32 %v253, %v262
  %v269 = vmul.f32 %v254, %v262
  %v270 = vmul.f32 %v255, %v262
  %v271 = vmul.f32 %v256, %v262
  %v272 = vmul.f32 %v257, %v262
  %v274 = vlaneseq
  %v275 = vshrl.u32 %v274, 7
  %v276 = vsub.s32 0, %v275
  %v277 = vrot.slane %v139, %v276
  %v279 = vadd.f32 %v264, %v277
  %v280 = vadd.f32 %v265, %v277
  %v281 = vadd.f32 %v266, %v277
  %v282 = vadd.f32 %v267, %v277
  %v283 = vadd.f32 %v268, %v277
  %v284 = vadd.f32 %v269, %v277
  %v285 = vadd.f32 %v270, %v277
  %v286 = vadd.f32 %v271, %v277
  %v287 = vadd.f32 %v272, %v277
  %288 = vst.msk [vmem:[%s5] sm:$0xff] %vm50, %v279
  %289 = vst.msk [vmem:[%s5 + $0x8] sm:$0xff] %vm50, %v280
  %290 = vst.msk [vmem:[%s5 + $0x10] sm:$0xff] %vm50, %v281
  %291 = vst.msk [vmem:[%s5 + $0x18] sm:$0xff] %vm50, %v282
  %292 = vst.msk [vmem:[%s5 + $0x20] sm:$0xff] %vm50, %v283
  %293 = vst.msk [vmem:[%s5 + $0x28] sm:$0xff] %vm50, %v284
  %294 = vst.msk [vmem:[%s5 + $0x30] sm:$0xff] %vm50, %v285
  %295 = vst.msk [vmem:[%s5 + $0x38] sm:$0xff] %vm50, %v286
  %296 = vst.msk [vmem:[%s5 + $0x40] sm:$0xff] %vm50, %v287
  // Predicated region
  $region22: #{swin_forward.7} parent=0 // pred_check
    _
  $region23: #{swin_forward.7} parent=0 // pred_check_branch
    %298 = sbr.rel (0) target = $region25
  $region24: #{swin_forward.7} parent=0 // pred_region
    _
  $region25: #{swin_forward.7} parent=0 // pred_fallthru
    _
  // Predicated region
  $region26: #{swin_forward.7} parent=0 // pred_check
    _
  $region27: #{swin_forward.7} parent=0 // pred_check_branch
    %300 = sbr.rel (0) target = $region29
  $region28: #{swin_forward.7} parent=0 // pred_region
    _
  $region29: #{swin_forward.7} parent=0 // pred_fallthru
    _

// kernel: swin_forward.8
$region0: #{swin_forward.8}
  #allocation0 [shape = 'u32[]', space=smem, size = 0x4, offset = 0x4, fixed_abs, tag = 'smem constant byte address 0x4 - core index']
  #allocation1 [shape = 'u32[144,128]{1,0:T(1,128)}', space=vmem, size = 0x12000, scoped, tag = 'internal scratch']
  %s0 = inlined_call_operand.vmem [shape: f32[72,16], index: 0, kind: input, shape index: {}]
  %s1 = inlined_call_operand.vmem [shape: bf16[16,48], index: 1, kind: input, shape index: {}]
  %s2 = inlined_call_operand.vmem [shape: f32[1,48], index: 2, kind: input, shape index: {}]
  %s3 = inlined_call_operand.vmem [shape: bf16[2,8,16], index: 3, kind: input, shape index: {}]
  %s4 = inlined_call_operand.vmem [shape: f32[1,16], index: 4, kind: input, shape index: {}]
  %s5 = inlined_call_operand.vmem [shape: f32[2,72,72], index: 5, kind: input, shape index: {}]
  %s6 = inlined_call_operand.vmem [shape: f32[1,16], index: 6, kind: input, shape index: {}]
  %s7 = inlined_call_operand.vmem [shape: f32[1,16], index: 7, kind: input, shape index: {}]
  %s8 = inlined_call_operand.vmem [shape: bf16[16,64], index: 8, kind: input, shape index: {}]
  %s9 = inlined_call_operand.vmem [shape: f32[1,64], index: 9, kind: input, shape index: {}]
  %s10 = inlined_call_operand.vmem [shape: bf16[64,16], index: 10, kind: input, shape index: {}]
  %s11 = inlined_call_operand.vmem [shape: f32[1,16], index: 11, kind: input, shape index: {}]
  %s12 = inlined_call_operand.vmem [shape: f32[1,16], index: 12, kind: input, shape index: {}]
  %s13 = inlined_call_operand.vmem [shape: f32[1,16], index: 13, kind: input, shape index: {}]
  %s14 = inlined_call_operand.vmem [shape: f32[2], index: 14, kind: input, shape index: {}]
  %s15 = inlined_call_operand.vmem [shape: f32[72,16], index: 15, kind: output, shape index: {}]
  %s16 = sld [smem:[#allocation0]]
  $region74: #{swin_forward.8} parent=0
    _
  %s18 = ssub.s32 1, %s16
  %s19 = scalar_select 0, %s18, %s16
  $region1: #{swin_forward.8} parent=0
    #allocation2 [shape = 'u8[512]{0}', space=smem, size = 0x200, scoped, tag = 'input window, operand 14, single buffered']
    #allocation3 [shape = 's32[1]{0}', space=sflag, size = 0x4, scoped, tag = 'scoped memory for swin_forward.8']
    %20 = vsyncpa [#allocation3], 0
    // Predicated region
    $region2: #{swin_forward.8} parent=1 // pred_check
      _
    $region3: #{swin_forward.8} parent=1 // pred_check_branch
      %22 = sbr.rel (0) target = $region5
    $region4: #{swin_forward.8} parent=1 // pred_region
      _
    $region5: #{swin_forward.8} parent=1 // pred_fallthru
      _
    // Predicated region
    $region6: #{swin_forward.8} parent=1 // pred_check
      _
    $region7: #{swin_forward.8} parent=1 // pred_check_branch
      %24 = sbr.rel (0) target = $region9
    $region8: #{swin_forward.8} parent=1 // pred_region
      _
    $region9: #{swin_forward.8} parent=1 // pred_fallthru
      _
    // Predicated region
    $region10: #{swin_forward.8} parent=1 // pred_check
      _
    $region11: #{swin_forward.8} parent=1 // pred_check_branch
      %26 = sbr.rel (0) target = $region13
    $region12: #{swin_forward.8} parent=1 // pred_region
      _
    $region13: #{swin_forward.8} parent=1 // pred_fallthru
      _
    // Predicated region
    $region14: #{swin_forward.8} parent=1 // pred_check
      _
    $region15: #{swin_forward.8} parent=1 // pred_check_branch
      %28 = sbr.rel (0) target = $region17
    $region16: #{swin_forward.8} parent=1 // pred_region
      _
    $region17: #{swin_forward.8} parent=1 // pred_fallthru
      _
    // Predicated region
    $region18: #{swin_forward.8} parent=1 // pred_check
      _
    $region19: #{swin_forward.8} parent=1 // pred_check_branch
      %30 = sbr.rel (0) target = $region21
    $region20: #{swin_forward.8} parent=1 // pred_region
      _
    $region21: #{swin_forward.8} parent=1 // pred_fallthru
      _
    // Predicated region
    $region22: #{swin_forward.8} parent=1 // pred_check
      _
    $region23: #{swin_forward.8} parent=1 // pred_check_branch
      %32 = sbr.rel (0) target = $region25
    $region24: #{swin_forward.8} parent=1 // pred_region
      _
    $region25: #{swin_forward.8} parent=1 // pred_fallthru
      _
    // Predicated region
    $region26: #{swin_forward.8} parent=1 // pred_check
      _
    $region27: #{swin_forward.8} parent=1 // pred_check_branch
      %34 = sbr.rel (0) target = $region29
    $region28: #{swin_forward.8} parent=1 // pred_region
      _
    $region29: #{swin_forward.8} parent=1 // pred_fallthru
      _
    // Predicated region
    $region30: #{swin_forward.8} parent=1 // pred_check
      _
    $region31: #{swin_forward.8} parent=1 // pred_check_branch
      %36 = sbr.rel (0) target = $region33
    $region32: #{swin_forward.8} parent=1 // pred_region
      _
    $region33: #{swin_forward.8} parent=1 // pred_fallthru
      _
    // Predicated region
    $region34: #{swin_forward.8} parent=1 // pred_check
      _
    $region35: #{swin_forward.8} parent=1 // pred_check_branch
      %38 = sbr.rel (0) target = $region37
    $region36: #{swin_forward.8} parent=1 // pred_region
      _
    $region37: #{swin_forward.8} parent=1 // pred_fallthru
      _
    // Predicated region
    $region38: #{swin_forward.8} parent=1 // pred_check
      _
    $region39: #{swin_forward.8} parent=1 // pred_check_branch
      %40 = sbr.rel (0) target = $region41
    $region40: #{swin_forward.8} parent=1 // pred_region
      _
    $region41: #{swin_forward.8} parent=1 // pred_fallthru
      _
    // Predicated region
    $region42: #{swin_forward.8} parent=1 // pred_check
      _
    $region43: #{swin_forward.8} parent=1 // pred_check_branch
      %42 = sbr.rel (0) target = $region45
    $region44: #{swin_forward.8} parent=1 // pred_region
      _
    $region45: #{swin_forward.8} parent=1 // pred_fallthru
      _
    // Predicated region
    $region46: #{swin_forward.8} parent=1 // pred_check
      _
    $region47: #{swin_forward.8} parent=1 // pred_check_branch
      %44 = sbr.rel (0) target = $region49
    $region48: #{swin_forward.8} parent=1 // pred_region
      _
    $region49: #{swin_forward.8} parent=1 // pred_fallthru
      _
    // Predicated region
    $region50: #{swin_forward.8} parent=1 // pred_check
      _
    $region51: #{swin_forward.8} parent=1 // pred_check_branch
      %46 = sbr.rel (0) target = $region53
    $region52: #{swin_forward.8} parent=1 // pred_region
      _
    $region53: #{swin_forward.8} parent=1 // pred_fallthru
      _
    // Predicated region
    $region54: #{swin_forward.8} parent=1 // pred_check
      _
    $region55: #{swin_forward.8} parent=1 // pred_check_branch
      %48 = sbr.rel (0) target = $region57
    $region56: #{swin_forward.8} parent=1 // pred_region
      _
    $region57: #{swin_forward.8} parent=1 // pred_fallthru
      _
    // Predicated region
    $region58: #{swin_forward.8} parent=1 // pred_check
      _
    $region59: #{swin_forward.8} parent=1 // pred_check_branch
      %50 = sbr.rel (0) target = $region61
    $region60: #{swin_forward.8} parent=1 // pred_region
      %s52 = ssub.s32 16, 16
      %53 = vsyncadd [#allocation3], %s52
      %s55 = sshll.u32 %s14, 4
      %s56 = int_to_ptr.vmem [resolvable:$true] %s55
      %58 = dma.vmem_to_smem %s56, 16, [#allocation2], [#allocation3]
    $region61: #{swin_forward.8} parent=1 // pred_fallthru
      _
    // Predicated region
    $region62: #{swin_forward.8} parent=1 // pred_check
      _
    $region63: #{swin_forward.8} parent=1 // pred_check_branch
      %60 = sbr.rel (0) target = $region65
    $region64: #{swin_forward.8} parent=1 // pred_region
      %61 = dma.done [#allocation3], 16
    $region65: #{swin_forward.8} parent=1 // pred_fallthru
      _
    %62 = sfence
    %v64 = vld [vmem:[%s0] sm:$0xff]
    %v65 = vld [vmem:[%s0 + $0x8] sm:$0xff]
    %v66 = vld [vmem:[%s0 + $0x10] sm:$0xff]
    %v67 = vld [vmem:[%s0 + $0x18] sm:$0xff]
    %v68 = vld [vmem:[%s0 + $0x20] sm:$0xff]
    %v69 = vld [vmem:[%s0 + $0x28] sm:$0xff]
    %v70 = vld [vmem:[%s0 + $0x30] sm:$0xff]
    %v71 = vld [vmem:[%s0 + $0x38] sm:$0xff]
    %v72 = vld [vmem:[%s0 + $0x40] sm:$0xff]
    %v73 = vpack.c.bf16 %v65, %v64
    %v74 = vpack.c.bf16 %v67, %v66
    %v75 = vpack.c.bf16 %v69, %v68
    %v76 = vpack.c.bf16 %v71, %v70
    %v77 = vpack.c.bf16 %v72, %v72
    %v78 = vld [vmem:[%s1] sm:$0xf]
    %v79 = vld [vmem:[%s1 + $0x4] sm:$0xf]
    %v80 = vld [vmem:[%s2] sm:$0x1]
    %v82 = vlaneseq
    %v83 = vshrl.u32 %v82, 7
    %v84 = vsub.s32 0, %v83
    %v85 = vrot.slane %v80, %v84
    %v89 = vunpack.c.l.b16 %v78
    %v90 = vunpack.c.l.b16 %v79
    %v91 = vpack.c.b16 %v90, %v89
    %vm93 = vcmask 130048
    %v95 = vsel %vm93, %v73, 0
    %v98 = vsel %vm93, %v74, 0
    %v101 = vsel %vm93, %v75, 0
    %v104 = vsel %vm93, %v76, 0
    %v107 = vsel %vm93, %v77, 0
    %109 = vmatprep.subr.bf16.mxu0 0
    %110 = vmatpush1.bf16.msra.mxu0 %v91
    %111 = vmatprep.subr.bf16.mxu0 0
    %112 = vmatpush1.bf16.msra.mxu0 0
    %113 = vmatprep.subr.bf16.mxu0 0
    %114 = vmatpush1.bf16.msra.mxu0 0
    %115 = vmatprep.subr.bf16.mxu0 0
    %116 = vmatpush1.bf16.msra.mxu0 0
    %117 = vmatprep.subr.bf16.mxu0 0
    %118 = vmatpush1.bf16.msra.mxu0 0
    %119 = vmatprep.subr.bf16.mxu0 0
    %120 = vmatpush1.bf16.msra.mxu0 0
    %121 = vmatprep.subr.bf16.mxu0 0
    %122 = vmatpush1.bf16.msra.mxu0 0
    %123 = vmatprep.subr.bf16.mxu0 0
    %124 = vmatpush1.bf16.msra.mxu0 0
    %125 = vmatprep.subr.bf16.mxu0 0
    %126 = vmatpush1.bf16.msra.mxu0 0
    %127 = vmatprep.subr.bf16.mxu0 0
    %128 = vmatpush1.bf16.msra.mxu0 0
    %129 = vmatprep.subr.bf16.mxu0 0
    %130 = vmatpush1.bf16.msra.mxu0 0
    %131 = vmatprep.subr.bf16.mxu0 0
    %132 = vmatpush1.bf16.msra.mxu0 0
    %133 = vmatprep.subr.bf16.mxu0 0
    %134 = vmatpush1.bf16.msra.mxu0 0
    %135 = vmatprep.subr.bf16.mxu0 0
    %136 = vmatpush1.bf16.msra.mxu0 0
    %137 = vmatprep.subr.bf16.mxu0 0
    %138 = vmatpush1.bf16.msra.mxu0 0
    %139 = vmatprep.subr.bf16.mxu0 0
    %140 = vmatpush1.bf16.msra.mxu0 0
    %141 = vmatprep.mubr.bf16.mxu0 0
    %142 = vmatmul.mubr.bf16.gmra.mrb[0].mxu0 %v95
    %v143 = vpop.f32.mrb[0].mxu0
    %v144 = vadd.f32 %v85, %v143
    %v145 = vpop.f32.mrb[0].mxu0
    %v146 = vpop.f32.mrb[0].mxu0
    %v147 = vadd.f32 %v85, %v146
    %v148 = vpop.f32.mrb[0].mxu0
    %149 = vmatprep.mubr.bf16.mxu0 0
    %150 = vmatmul.mubr.bf16.gmra.mrb[0].mxu0 %v98
    %v151 = vpop.f32.mrb[0].mxu0
    %v152 = vadd.f32 %v85, %v151
    %v153 = vpop.f32.mrb[0].mxu0
    %v154 = vpop.f32.mrb[0].mxu0
    %v155 = vadd.f32 %v85, %v154
    %v156 = vpop.f32.mrb[0].mxu0
    %157 = vmatprep.mubr.bf16.mxu0 0
    %158 = vmatmul.mubr.bf16.gmra.mrb[0].mxu0 %v101
    %v159 = vpop.f32.mrb[0].mxu0
    %v160 = vadd.f32 %v85, %v159
    %v161 = vpop.f32.mrb[0].mxu0
    %v162 = vpop.f32.mrb[0].mxu0
    %v163 = vadd.f32 %v85, %v162
    %v164 = vpop.f32.mrb[0].mxu0
    %165 = vmatprep.mubr.bf16.mxu0 0
    %166 = vmatmul.mubr.bf16.gmra.mrb[0].mxu0 %v104
    %v167 = vpop.f32.mrb[0].mxu0
    %v168 = vadd.f32 %v85, %v167
    %v169 = vpop.f32.mrb[0].mxu0
    %v170 = vpop.f32.mrb[0].mxu0
    %v171 = vadd.f32 %v85, %v170
    %v172 = vpop.f32.mrb[0].mxu0
    %173 = vmatprep.mubr.bf16.mxu0 0
    %174 = vmatmul.mubr.bf16.gmra.mrb[0].mxu0 %v107
    %v175 = vpop.f32.mrb[0].mxu0
    %v176 = vadd.f32 %v85, %v175
    %v177 = vpop.f32.mrb[0].mxu0
    %v178 = vpop.f32.mrb[0].mxu0
    %v179 = vpop.f32.mrb[0].mxu0
    %180 = vdwg.mxu0
    %v181 = vmul.f32 %v144, %v144
    %v182 = vmul.f32 %v147, %v147
    %v183 = vmul.f32 %v152, %v152
    %v184 = vmul.f32 %v155, %v155
    %v185 = vmul.f32 %v160, %v160
    %v186 = vmul.f32 %v163, %v163
    %v187 = vmul.f32 %v168, %v168
    %v188 = vmul.f32 %v171, %v171
    %v189 = vmul.f32 %v176, %v176
    %vm190 = vcmask 64512
    %v191 = vsel %vm190, %v181, 0.0
    %192 = vadd.xlane.f32.xlu0 %v191
    %v193 = vpop.xlane.xlu0 %192
    %v194 = vsel %vm190, %v182, 0.0
    %195 = vadd.xlane.f32.xlu0 %v194
    %v196 = vpop.xlane.xlu0 %195
    %v197 = vsel %vm190, %v183, 0.0
    %198 = vadd.xlane.f32.xlu0 %v197
    %v199 = vpop.xlane.xlu0 %198
    %v200 = vsel %vm190, %v184, 0.0
    %201 = vadd.xlane.f32.xlu0 %v200
    %v202 = vpop.xlane.xlu0 %201
    %v203 = vsel %vm190, %v185, 0.0
    %204 = vadd.xlane.f32.xlu0 %v203
    %v205 = vpop.xlane.xlu0 %204
    %v206 = vsel %vm190, %v186, 0.0
    %207 = vadd.xlane.f32.xlu0 %v206
    %v208 = vpop.xlane.xlu0 %207
    %v209 = vsel %vm190, %v187, 0.0
    %210 = vadd.xlane.f32.xlu0 %v209
    %v211 = vpop.xlane.xlu0 %210
    %v212 = vsel %vm190, %v188, 0.0
    %213 = vadd.xlane.f32.xlu0 %v212
    %v214 = vpop.xlane.xlu0 %213
    %v215 = vsel %vm190, %v189, 0.0
    %216 = vadd.xlane.f32.xlu0 %v215
    %v217 = vpop.xlane.xlu0 %216
    %v218 = vmax.f32 %v193, 1e-24
    %v219 = vmax.f32 %v196, 1e-24
    %v220 = vmax.f32 %v199, 1e-24
    %v221 = vmax.f32 %v202, 1e-24
    %v222 = vmax.f32 %v205, 1e-24
    %v223 = vmax.f32 %v208, 1e-24
    %v224 = vmax.f32 %v211, 1e-24
    %v225 = vmax.f32 %v214, 1e-24
    %v226 = vmax.f32 %v217, 1e-24
    %v227 = vrsqrt.pop %v218
    %v228 = vrsqrt.pop %v219
    %v229 = vrsqrt.pop %v220
    %v230 = vrsqrt.pop %v221
    %v231 = vrsqrt.pop %v222
    %v232 = vrsqrt.pop %v223
    %v233 = vrsqrt.pop %v224
    %v234 = vrsqrt.pop %v225
    %v235 = vrsqrt.pop %v226
    %v236 = vmul.f32 %v144, %v227
    %v237 = vmul.f32 %v147, %v228
    %v238 = vmul.f32 %v152, %v229
    %v239 = vmul.f32 %v155, %v230
    %v240 = vmul.f32 %v160, %v231
    %v241 = vmul.f32 %v163, %v232
    %v242 = vmul.f32 %v168, %v233
    %v243 = vmul.f32 %v171, %v234
    %v244 = vmul.f32 %v176, %v235
    %254 = vrot.lane.b32.xlu0 %v181, 112
    %v255 = vpop.permute.xlu0 %254
    %256 = vrot.lane.b32.xlu0 %v182, 112
    %v257 = vpop.permute.xlu0 %256
    %258 = vrot.lane.b32.xlu0 %v183, 112
    %v259 = vpop.permute.xlu0 %258
    %260 = vrot.lane.b32.xlu0 %v184, 112
    %v261 = vpop.permute.xlu0 %260
    %262 = vrot.lane.b32.xlu0 %v185, 112
    %v263 = vpop.permute.xlu0 %262
    %264 = vrot.lane.b32.xlu0 %v186, 112
    %v265 = vpop.permute.xlu0 %264
    %266 = vrot.lane.b32.xlu0 %v187, 112
    %v267 = vpop.permute.xlu0 %266
    %268 = vrot.lane.b32.xlu0 %v188, 112
    %v269 = vpop.permute.xlu0 %268
    %270 = vrot.lane.b32.xlu0 %v189, 112
    %v271 = vpop.permute.xlu0 %270
    %v281 = vsel %vm190, %v255, 0.0
    %282 = vadd.xlane.f32.xlu0 %v281
    %v283 = vpop.xlane.xlu0 %282
    %v284 = vsel %vm190, %v257, 0.0
    %285 = vadd.xlane.f32.xlu0 %v284
    %v286 = vpop.xlane.xlu0 %285
    %v287 = vsel %vm190, %v259, 0.0
    %288 = vadd.xlane.f32.xlu0 %v287
    %v289 = vpop.xlane.xlu0 %288
    %v290 = vsel %vm190, %v261, 0.0
    %291 = vadd.xlane.f32.xlu0 %v290
    %v292 = vpop.xlane.xlu0 %291
    %v293 = vsel %vm190, %v263, 0.0
    %294 = vadd.xlane.f32.xlu0 %v293
    %v295 = vpop.xlane.xlu0 %294
    %v296 = vsel %vm190, %v265, 0.0
    %297 = vadd.xlane.f32.xlu0 %v296
    %v298 = vpop.xlane.xlu0 %297
    %v299 = vsel %vm190, %v267, 0.0
    %300 = vadd.xlane.f32.xlu0 %v299
    %v301 = vpop.xlane.xlu0 %300
    %v302 = vsel %vm190, %v269, 0.0
    %303 = vadd.xlane.f32.xlu0 %v302
    %v304 = vpop.xlane.xlu0 %303
    %v305 = vsel %vm190, %v271, 0.0
    %306 = vadd.xlane.f32.xlu0 %v305
    %v307 = vpop.xlane.xlu0 %306
    %v308 = vmax.f32 %v283, 1e-24
    %v309 = vmax.f32 %v286, 1e-24
    %v310 = vmax.f32 %v289, 1e-24
    %v311 = vmax.f32 %v292, 1e-24
    %v312 = vmax.f32 %v295, 1e-24
    %v313 = vmax.f32 %v298, 1e-24
    %v314 = vmax.f32 %v301, 1e-24
    %v315 = vmax.f32 %v304, 1e-24
    %v316 = vmax.f32 %v307, 1e-24
    %v317 = vrsqrt.pop %v308
    %v318 = vrsqrt.pop %v309
    %v319 = vrsqrt.pop %v310
    %v320 = vrsqrt.pop %v311
    %v321 = vrsqrt.pop %v312
    %v322 = vrsqrt.pop %v313
    %v323 = vrsqrt.pop %v314
    %v324 = vrsqrt.pop %v315
    %v325 = vrsqrt.pop %v316
    %v326 = vmul.f32 %v144, %v317
    %v327 = vmul.f32 %v147, %v318
    %v328 = vmul.f32 %v152, %v319
    %v329 = vmul.f32 %v155, %v320
    %v330 = vmul.f32 %v160, %v321
    %v331 = vmul.f32 %v163, %v322
    %v332 = vmul.f32 %v168, %v323
    %v333 = vmul.f32 %v171, %v324
    %v334 = vmul.f32 %v176, %v325
    %344 = vrot.lane.b32.xlu0 %v326, 112
    %v345 = vpop.permute.xlu0 %344
    %346 = vrot.lane.b32.xlu0 %v327, 112
    %v347 = vpop.permute.xlu0 %346
    %348 = vrot.lane.b32.xlu0 %v328, 112
    %v349 = vpop.permute.xlu0 %348
    %350 = vrot.lane.b32.xlu0 %v329, 112
    %v351 = vpop.permute.xlu0 %350
    %352 = vrot.lane.b32.xlu0 %v330, 112
    %v353 = vpop.permute.xlu0 %352
    %354 = vrot.lane.b32.xlu0 %v331, 112
    %v355 = vpop.permute.xlu0 %354
    %356 = vrot.lane.b32.xlu0 %v332, 112
    %v357 = vpop.permute.xlu0 %356
    %358 = vrot.lane.b32.xlu0 %v333, 112
    %v359 = vpop.permute.xlu0 %358
    %360 = vrot.lane.b32.xlu0 %v334, 112
    %v361 = vpop.permute.xlu0 %360
    %v363 = vsel %vm190, %v236, 0
    %v366 = vsel %vm190, %v237, 0
    %v369 = vsel %vm190, %v238, 0
    %v372 = vsel %vm190, %v239, 0
    %v375 = vsel %vm190, %v240, 0
    %v378 = vsel %vm190, %v241, 0
    %v381 = vsel %vm190, %v242, 0
    %v384 = vsel %vm190, %v243, 0
    %v387 = vsel %vm190, %v244, 0
    %v389 = vsel %vm190, %v345, 0
    %v391 = vsel %vm190, %v347, 0
    %v393 = vsel %vm190, %v349, 0
    %v395 = vsel %vm190, %v351, 0
    %v397 = vsel %vm190, %v353, 0
    %v399 = vsel %vm190, %v355, 0
    %v401 = vsel %vm190, %v357, 0
    %v403 = vsel %vm190, %v359, 0
    %v405 = vsel %vm190, %v361, 0
    %407 = vmatprep.subr.mxu0 0.0
    %408 = vmatpush1.xpose.msra.mxu0 %v389
    %409 = vmatprep.subr.mxu0 0.0
    %410 = vmatpush1.xpose.msra.mxu0 %v391
    %411 = vmatprep.subr.mxu0 0.0
    %412 = vmatpush1.xpose.msra.mxu0 %v393
    %413 = vmatprep.subr.mxu0 0.0
    %414 = vmatpush1.xpose.msra.mxu0 %v395
    %415 = vmatprep.subr.mxu0 0.0
    %416 = vmatpush1.xpose.msra.mxu0 %v397
    %417 = vmatprep.subr.mxu0 0.0
    %418 = vmatpush1.xpose.msra.mxu0 %v399
    %419 = vmatprep.subr.mxu0 0.0
    %420 = vmatpush1.xpose.msra.mxu0 %v401
    %421 = vmatprep.subr.mxu0 0.0
    %422 = vmatpush1.xpose.msra.mxu0 %v403
    %423 = vmatprep.subr.mxu0 0.0
    %424 = vmatpush1.xpose.msra.mxu0 %v405
    %425 = vmatprep.subr.mxu0 0.0
    %426 = vmatpush1.xpose.msra.mxu0 0.0
    %427 = vmatprep.subr.mxu0 0.0
    %428 = vmatpush1.xpose.msra.mxu0 0.0
    %429 = vmatprep.subr.mxu0 0.0
    %430 = vmatpush1.xpose.msra.mxu0 0.0
    %431 = vmatprep.subr.mxu0 0.0
    %432 = vmatpush1.xpose.msra.mxu0 0.0
    %433 = vmatprep.subr.mxu0 0.0
    %434 = vmatpush1.xpose.msra.mxu0 0.0
    %435 = vmatprep.subr.mxu0 0.0
    %436 = vmatpush1.xpose.msra.mxu0 0.0
    %437 = vmatprep.subr.mxu0 0.0
    %438 = vmatpush1.xpose.msra.mxu0 0.0
    %439 = vmatprep.subr.mxu0 0.0
    %440 = vmatpush1.xpose.msra.mxu0 0.0
    %441 = vmatprep.subr.mxu0 0.0
    %442 = vmatpush1.xpose.msra.mxu0 0.0
    %443 = vmatprep.subr.mxu0 0.0
    %444 = vmatpush1.xpose.msra.mxu0 0.0
    %445 = vmatprep.subr.mxu0 0.0
    %446 = vmatpush1.xpose.msra.mxu0 0.0
    %447 = vmatprep.subr.mxu0 0.0
    %448 = vmatpush1.xpose.msra.mxu0 0.0
    %449 = vmatprep.subr.mxu0 0.0
    %450 = vmatpush1.xpose.msra.mxu0 0.0
    %451 = vmatprep.subr.mxu0 0.0
    %452 = vmatpush1.xpose.msra.mxu0 0.0
    %453 = vmatprep.subr.mxu0 0.0
    %454 = vmatpush1.xpose.msra.mxu0 0.0
    %455 = vmatprep.subr.mxu0 0.0
    %456 = vmatpush1.xpose.msra.mxu0 0.0
    %457 = vmatprep.subr.mxu0 0.0
    %458 = vmatpush1.xpose.msra.mxu0 0.0
    %459 = vmatprep.subr.mxu0 0.0
    %460 = vmatpush1.xpose.msra.mxu0 0.0
    %461 = vmatprep.subr.mxu0 0.0
    %462 = vmatpush1.xpose.msra.mxu0 0.0
    %463 = vmatprep.subr.mxu0 0.0
    %464 = vmatpush1.xpose.msra.mxu0 0.0
    %465 = vmatprep.subr.mxu0 0.0
    %466 = vmatpush1.xpose.msra.mxu0 0.0
    %467 = vmatprep.subr.mxu0 0.0
    %468 = vmatpush1.xpose.msra.mxu0 0.0
    %469 = vmatprep.subr.mxu0 0.0
    %470 = vmatpush1.xpose.msra.mxu0 0.0
    %471 = vmatprep.mubr.f32.mxu0 0.0
    %472 = vmatmul.mubr.f32.gmra.mrb[0].mxu0 %v363
    %v473 = vpop.f32.mrb[0].mxu0
    %v474 = vadd.f32 0.0, %v473
    %v475 = vpop.f32.mrb[0].mxu0
    %476 = vmatprep.mubr.f32.mxu0 0.0
    %477 = vmatmul.mubr.f32.gmra.mrb[0].mxu0 %v366
    %v478 = vpop.f32.mrb[0].mxu0
    %v479 = vadd.f32 0.0, %v478
    %v480 = vpop.f32.mrb[0].mxu0
    %481 = vmatprep.mubr.f32.mxu0 0.0
    %482 = vmatmul.mubr.f32.gmra.mrb[0].mxu0 %v369
    %v483 = vpop.f32.mrb[0].mxu0
    %v484 = vadd.f32 0.0, %v483
    %v485 = vpop.f32.mrb[0].mxu0
    %486 = vmatprep.mubr.f32.mxu0 0.0
    %487 = vmatmul.mubr.f32.gmra.mrb[0].mxu0 %v372
    %v488 = vpop.f32.mrb[0].mxu0
    %v489 = vadd.f32 0.0, %v488
    %v490 = vpop.f32.mrb[0].mxu0
    %491 = vmatprep.mubr.f32.mxu0 0.0
    %492 = vmatmul.mubr.f32.gmra.mrb[0].mxu0 %v375
    %v493 = vpop.f32.mrb[0].mxu0
    %v494 = vadd.f32 0.0, %v493
    %v495 = vpop.f32.mrb[0].mxu0
    %496 = vmatprep.mubr.f32.mxu0 0.0
    %497 = vmatmul.mubr.f32.gmra.mrb[0].mxu0 %v378
    %v498 = vpop.f32.mrb[0].mxu0
    %v499 = vadd.f32 0.0, %v498
    %v500 = vpop.f32.mrb[0].mxu0
    %501 = vmatprep.mubr.f32.mxu0 0.0
    %502 = vmatmul.mubr.f32.gmra.mrb[0].mxu0 %v381
    %v503 = vpop.f32.mrb[0].mxu0
    %v504 = vadd.f32 0.0, %v503
    %v505 = vpop.f32.mrb[0].mxu0
    %506 = vmatprep.mubr.f32.mxu0 0.0
    %507 = vmatmul.mubr.f32.gmra.mrb[0].mxu0 %v384
    %v508 = vpop.f32.mrb[0].mxu0
    %v509 = vadd.f32 0.0, %v508
    %v510 = vpop.f32.mrb[0].mxu0
    %511 = vmatprep.mubr.f32.mxu0 0.0
    %512 = vmatmul.mubr.f32.gmra.mrb[0].mxu0 %v387
    %v513 = vpop.f32.mrb[0].mxu0
    %v514 = vadd.f32 0.0, %v513
    %v515 = vpop.f32.mrb[0].mxu0
    %516 = vdwg.mxu0
    %s517 = sld [smem:[#allocation2]]
    %v518 = vstv %s517
    %v519 = vmul.f32 %v474, %v518
    %v520 = vmul.f32 %v479, %v518
    %v521 = vmul.f32 %v484, %v518
    %v522 = vmul.f32 %v489, %v518
    %v523 = vmul.f32 %v494, %v518
    %v524 = vmul.f32 %v499, %v518
    %v525 = vmul.f32 %v504, %v518
    %v526 = vmul.f32 %v509, %v518
    %v527 = vmul.f32 %v514, %v518
    %v528 = vld [vmem:[%s5] sm:$0xff]
    %v529 = vld [vmem:[%s5 + $0x8] sm:$0xff]
    %v530 = vld [vmem:[%s5 + $0x10] sm:$0xff]
    %v531 = vld [vmem:[%s5 + $0x18] sm:$0xff]
    %v532 = vld [vmem:[%s5 + $0x20] sm:$0xff]
    %v533 = vld [vmem:[%s5 + $0x28] sm:$0xff]
    %v534 = vld [vmem:[%s5 + $0x30] sm:$0xff]
    %v535 = vld [vmem:[%s5 + $0x38] sm:$0xff]
    %v536 = vld [vmem:[%s5 + $0x40] sm:$0xff]
    %v537 = vadd.f32 %v519, %v528
    %v538 = vadd.f32 %v520, %v529
    %v539 = vadd.f32 %v521, %v530
    %v540 = vadd.f32 %v522, %v531
    %v541 = vadd.f32 %v523, %v532
    %v542 = vadd.f32 %v524, %v533
    %v543 = vadd.f32 %v525, %v534
    %v544 = vadd.f32 %v526, %v535
    %v545 = vadd.f32 %v527, %v536
    %vm546 = vcmask 588800
    %v547 = vsel %vm546, %v537, -inf
    %548 = vmax.xlane.f32.xlu0 %v547
    %v549 = vpop.xlane.xlu0 %548
    %v550 = vsel %vm546, %v538, -inf
    %551 = vmax.xlane.f32.xlu0 %v550
    %v552 = vpop.xlane.xlu0 %551
    %v553 = vsel %vm546, %v539, -inf
    %554 = vmax.xlane.f32.xlu0 %v553
    %v555 = vpop.xlane.xlu0 %554
    %v556 = vsel %vm546, %v540, -inf
    %557 = vmax.xlane.f32.xlu0 %v556
    %v558 = vpop.xlane.xlu0 %557
    %v559 = vsel %vm546, %v541, -inf
    %560 = vmax.xlane.f32.xlu0 %v559
    %v561 = vpop.xlane.xlu0 %560
    %v562 = vsel %vm546, %v542, -inf
    %563 = vmax.xlane.f32.xlu0 %v562
    %v564 = vpop.xlane.xlu0 %563
    %v565 = vsel %vm546, %v543, -inf
    %566 = vmax.xlane.f32.xlu0 %v565
    %v567 = vpop.xlane.xlu0 %566
    %v568 = vsel %vm546, %v544, -inf
    %569 = vmax.xlane.f32.xlu0 %v568
    %v570 = vpop.xlane.xlu0 %569
    %v571 = vsel %vm546, %v545, -inf
    %572 = vmax.xlane.f32.xlu0 %v571
    %v573 = vpop.xlane.xlu0 %572
    %v574 = vsub.f32 %v537, %v549
    %v575 = vsub.f32 %v538, %v552
    %v576 = vsub.f32 %v539, %v555
    %v577 = vsub.f32 %v540, %v558
    %v578 = vsub.f32 %v541, %v561
    %v579 = vsub.f32 %v542, %v564
    %v580 = vsub.f32 %v543, %v567
    %v581 = vsub.f32 %v544, %v570
    %v582 = vsub.f32 %v545, %v573
    %v583 = vmul.f32 %v574, 1.442695
    %v584 = vpow.pop %v583
    %v585 = vmul.f32 %v575, 1.442695
    %v586 = vpow.pop %v585
    %v587 = vmul.f32 %v576, 1.442695
    %v588 = vpow.pop %v587
    %v589 = vmul.f32 %v577, 1.442695
    %v590 = vpow.pop %v589
    %v591 = vmul.f32 %v578, 1.442695
    %v592 = vpow.pop %v591
    %v593 = vmul.f32 %v579, 1.442695
    %v594 = vpow.pop %v593
    %v595 = vmul.f32 %v580, 1.442695
    %v596 = vpow.pop %v595
    %v597 = vmul.f32 %v581, 1.442695
    %v598 = vpow.pop %v597
    %v599 = vmul.f32 %v582, 1.442695
    %v600 = vpow.pop %v599
    %v601 = vsel %vm546, %v584, 0.0
    %602 = vadd.xlane.f32.xlu0 %v601
    %v603 = vpop.xlane.xlu0 %602
    %v604 = vsel %vm546, %v586, 0.0
    %605 = vadd.xlane.f32.xlu0 %v604
    %v606 = vpop.xlane.xlu0 %605
    %v607 = vsel %vm546, %v588, 0.0
    %608 = vadd.xlane.f32.xlu0 %v607
    %v609 = vpop.xlane.xlu0 %608
    %v610 = vsel %vm546, %v590, 0.0
    %611 = vadd.xlane.f32.xlu0 %v610
    %v612 = vpop.xlane.xlu0 %611
    %v613 = vsel %vm546, %v592, 0.0
    %614 = vadd.xlane.f32.xlu0 %v613
    %v615 = vpop.xlane.xlu0 %614
    %v616 = vsel %vm546, %v594, 0.0
    %617 = vadd.xlane.f32.xlu0 %v616
    %v618 = vpop.xlane.xlu0 %617
    %v619 = vsel %vm546, %v596, 0.0
    %620 = vadd.xlane.f32.xlu0 %v619
    %v621 = vpop.xlane.xlu0 %620
    %v622 = vsel %vm546, %v598, 0.0
    %623 = vadd.xlane.f32.xlu0 %v622
    %v624 = vpop.xlane.xlu0 %623
    %v625 = vsel %vm546, %v600, 0.0
    %626 = vadd.xlane.f32.xlu0 %v625
    %v627 = vpop.xlane.xlu0 %626
    %v628 = vrcp.pop %v603
    %v629 = vrcp.pop %v606
    %v630 = vrcp.pop %v609
    %v631 = vrcp.pop %v612
    %v632 = vrcp.pop %v615
    %v633 = vrcp.pop %v618
    %v634 = vrcp.pop %v621
    %v635 = vrcp.pop %v624
    %v636 = vrcp.pop %v627
    %v637 = vmul.f32 %v584, %v628
    %v638 = vmul.f32 %v586, %v629
    %v639 = vmul.f32 %v588, %v630
    %v640 = vmul.f32 %v590, %v631
    %v641 = vmul.f32 %v592, %v632
    %v642 = vmul.f32 %v594, %v633
    %v643 = vmul.f32 %v596, %v634
    %v644 = vmul.f32 %v598, %v635
    %v645 = vmul.f32 %v600, %v636
    %v646 = vpack.c.bf16 %v638, %v637
    %v647 = vpack.c.bf16 %v640, %v639
    %v648 = vpack.c.bf16 %v642, %v641
    %v649 = vpack.c.bf16 %v644, %v643
    %v650 = vpack.c.bf16 %v645, %v645
    %v651 = vpack.c.bf16 %v147, %v144
    %v652 = vpack.c.bf16 %v155, %v152
    %v653 = vpack.c.bf16 %v163, %v160
    %v654 = vpack.c.bf16 %v171, %v168
    %v655 = vpack.c.bf16 %v176, %v176
    %661 = vrot.lane.b32.xlu0 %v651, 96
    %v662 = vpop.permute.xlu0 %661
    %663 = vrot.lane.b32.xlu0 %v652, 96
    %v664 = vpop.permute.xlu0 %663
    %665 = vrot.lane.b32.xlu0 %v653, 96
    %v666 = vpop.permute.xlu0 %665
    %667 = vrot.lane.b32.xlu0 %v654, 96
    %v668 = vpop.permute.xlu0 %667
    %669 = vrot.lane.b32.xlu0 %v655, 96
    %v670 = vpop.permute.xlu0 %669
    %v676 = vsel %vm546, %v646, 0
    %v679 = vsel %vm546, %v647, 0
    %v682 = vsel %vm546, %v648, 0
    %v685 = vsel %vm546, %v649, 0
    %v688 = vsel %vm546, %v650, 0
    %vm690 = vcmask 1043456
    %v692 = vsel %vm690, %v670, 0
    %694 = vmatprep.subr.bf16.mxu0 0
    %695 = vmatpush1.bf16.msra.mxu0 %v662
    %696 = vmatprep.subr.bf16.mxu0 0
    %697 = vmatpush1.bf16.msra.mxu0 %v664
    %698 = vmatprep.subr.bf16.mxu0 0
    %699 = vmatpush1.bf16.msra.mxu0 %v666
    %700 = vmatprep.subr.bf16.mxu0 0
    %701 = vmatpush1.bf16.msra.mxu0 %v668
    %702 = vmatprep.subr.bf16.mxu0 0
    %703 = vmatpush1.bf16.msra.mxu0 %v692
    %704 = vmatprep.subr.bf16.mxu0 0
    %705 = vmatpush1.bf16.msra.mxu0 0
    %706 = vmatprep.subr.bf16.mxu0 0
    %707 = vmatpush1.bf16.msra.mxu0 0
    %708 = vmatprep.subr.bf16.mxu0 0
    %709 = vmatpush1.bf16.msra.mxu0 0
    %710 = vmatprep.subr.bf16.mxu0 0
    %711 = vmatpush1.bf16.msra.mxu0 0
    %712 = vmatprep.subr.bf16.mxu0 0
    %713 = vmatpush1.bf16.msra.mxu0 0
    %714 = vmatprep.subr.bf16.mxu0 0
    %715 = vmatpush1.bf16.msra.mxu0 0
    %716 = vmatprep.subr.bf16.mxu0 0
    %717 = vmatpush1.bf16.msra.mxu0 0
    %718 = vmatprep.subr.bf16.mxu0 0
    %719 = vmatpush1.bf16.msra.mxu0 0
    %720 = vmatprep.subr.bf16.mxu0 0
    %721 = vmatpush1.bf16.msra.mxu0 0
    %722 = vmatprep.subr.bf16.mxu0 0
    %723 = vmatpush1.bf16.msra.mxu0 0
    %724 = vmatprep.subr.bf16.mxu0 0
    %725 = vmatpush1.bf16.msra.mxu0 0
    %726 = vmatprep.mubr.bf16.mxu0 0
    %727 = vmatmul.mubr.bf16.gmra.mrb[0].mxu0 %v676
    %v728 = vpop.f32.mrb[0].mxu0
    %v729 = vadd.f32 0.0, %v728
    %v730 = vpop.f32.mrb[0].mxu0
    %v731 = vpop.f32.mrb[0].mxu0
    %v732 = vadd.f32 0.0, %v731
    %v733 = vpop.f32.mrb[0].mxu0
    %734 = vmatprep.mubr.bf16.mxu0 0
    %735 = vmatmul.mubr.bf16.gmra.mrb[0].mxu0 %v679
    %v736 = vpop.f32.mrb[0].mxu0
    %v737 = vadd.f32 0.0, %v736
    %v738 = vpop.f32.mrb[0].mxu0
    %v739 = vpop.f32.mrb[0].mxu0
    %v740 = vadd.f32 0.0, %v739
    %v741 = vpop.f32.mrb[0].mxu0
    %742 = vmatprep.mubr.bf16.mxu0 0
    %743 = vmatmul.mubr.bf16.gmra.mrb[0].mxu0 %v682
    %v744 = vpop.f32.mrb[0].mxu0
    %v745 = vadd.f32 0.0, %v744
    %v746 = vpop.f32.mrb[0].mxu0
    %v747 = vpop.f32.mrb[0].mxu0
    %v748 = vadd.f32 0.0, %v747
    %v749 = vpop.f32.mrb[0].mxu0
    %750 = vmatprep.mubr.bf16.mxu0 0
    %751 = vmatmul.mubr.bf16.gmra.mrb[0].mxu0 %v685
    %v752 = vpop.f32.mrb[0].mxu0
    %v753 = vadd.f32 0.0, %v752
    %v754 = vpop.f32.mrb[0].mxu0
    %v755 = vpop.f32.mrb[0].mxu0
    %v756 = vadd.f32 0.0, %v755
    %v757 = vpop.f32.mrb[0].mxu0
    %758 = vmatprep.mubr.bf16.mxu0 0
    %759 = vmatmul.mubr.bf16.gmra.mrb[0].mxu0 %v688
    %v760 = vpop.f32.mrb[0].mxu0
    %v761 = vadd.f32 0.0, %v760
    %v762 = vpop.f32.mrb[0].mxu0
    %v763 = vpop.f32.mrb[0].mxu0
    %v764 = vpop.f32.mrb[0].mxu0
    %765 = vdwg.mxu0
    %v766 = vpack.c.bf16 %v732, %v729
    %v767 = vpack.c.bf16 %v740, %v737
    %v768 = vpack.c.bf16 %v748, %v745
    %v769 = vpack.c.bf16 %v756, %v753
    %v770 = vpack.c.bf16 %v761, %v761
    %v771 = vld [vmem:[%s3] sm:$0xf]
    %772 = vrot.lane.b32.xlu0 %v181, 120
    %v773 = vpop.permute.xlu0 %772
    %774 = vrot.lane.b32.xlu0 %v182, 120
    %v775 = vpop.permute.xlu0 %774
    %776 = vrot.lane.b32.xlu0 %v183, 120
    %v777 = vpop.permute.xlu0 %776
    %778 = vrot.lane.b32.xlu0 %v184, 120
    %v779 = vpop.permute.xlu0 %778
    %780 = vrot.lane.b32.xlu0 %v185, 120
    %v781 = vpop.permute.xlu0 %780
    %782 = vrot.lane.b32.xlu0 %v186, 120
    %v783 = vpop.permute.xlu0 %782
    %784 = vrot.lane.b32.xlu0 %v187, 120
    %v785 = vpop.permute.xlu0 %784
    %786 = vrot.lane.b32.xlu0 %v188, 120
    %v787 = vpop.permute.xlu0 %786
    %788 = vrot.lane.b32.xlu0 %v189, 120
    %v789 = vpop.permute.xlu0 %788
    %v799 = vsel %vm190, %v773, 0.0
    %800 = vadd.xlane.f32.xlu0 %v799
    %v801 = vpop.xlane.xlu0 %800
    %v802 = vsel %vm190, %v775, 0.0
    %803 = vadd.xlane.f32.xlu0 %v802
    %v804 = vpop.xlane.xlu0 %803
    %v805 = vsel %vm190, %v777, 0.0
    %806 = vadd.xlane.f32.xlu0 %v805
    %v807 = vpop.xlane.xlu0 %806
    %v808 = vsel %vm190, %v779, 0.0
    %809 = vadd.xlane.f32.xlu0 %v808
    %v810 = vpop.xlane.xlu0 %809
    %v811 = vsel %vm190, %v781, 0.0
    %812 = vadd.xlane.f32.xlu0 %v811
    %v813 = vpop.xlane.xlu0 %812
    %v814 = vsel %vm190, %v783, 0.0
    %815 = vadd.xlane.f32.xlu0 %v814
    %v816 = vpop.xlane.xlu0 %815
    %v817 = vsel %vm190, %v785, 0.0
    %818 = vadd.xlane.f32.xlu0 %v817
    %v819 = vpop.xlane.xlu0 %818
    %v820 = vsel %vm190, %v787, 0.0
    %821 = vadd.xlane.f32.xlu0 %v820
    %v822 = vpop.xlane.xlu0 %821
    %v823 = vsel %vm190, %v789, 0.0
    %824 = vadd.xlane.f32.xlu0 %v823
    %v825 = vpop.xlane.xlu0 %824
    %v826 = vmax.f32 %v801, 1e-24
    %v827 = vmax.f32 %v804, 1e-24
    %v828 = vmax.f32 %v807, 1e-24
    %v829 = vmax.f32 %v810, 1e-24
    %v830 = vmax.f32 %v813, 1e-24
    %v831 = vmax.f32 %v816, 1e-24
    %v832 = vmax.f32 %v819, 1e-24
    %v833 = vmax.f32 %v822, 1e-24
    %v834 = vmax.f32 %v825, 1e-24
    %v835 = vrsqrt.pop %v826
    %v836 = vrsqrt.pop %v827
    %v837 = vrsqrt.pop %v828
    %v838 = vrsqrt.pop %v829
    %v839 = vrsqrt.pop %v830
    %v840 = vrsqrt.pop %v831
    %v841 = vrsqrt.pop %v832
    %v842 = vrsqrt.pop %v833
    %v843 = vrsqrt.pop %v834
    %v844 = vmul.f32 %v144, %v835
    %v845 = vmul.f32 %v147, %v836
    %v846 = vmul.f32 %v152, %v837
    %v847 = vmul.f32 %v155, %v838
    %v848 = vmul.f32 %v160, %v839
    %v849 = vmul.f32 %v163, %v840
    %v850 = vmul.f32 %v168, %v841
    %v851 = vmul.f32 %v171, %v842
    %v852 = vmul.f32 %v176, %v843
    %853 = vrot.lane.b32.xlu0 %v181, 104
    %v854 = vpop.permute.xlu0 %853
    %855 = vrot.lane.b32.xlu0 %v182, 104
    %v856 = vpop.permute.xlu0 %855
    %857 = vrot.lane.b32.xlu0 %v183, 104
    %v858 = vpop.permute.xlu0 %857
    %859 = vrot.lane.b32.xlu0 %v184, 104
    %v860 = vpop.permute.xlu0 %859
    %861 = vrot.lane.b32.xlu0 %v185, 104
    %v862 = vpop.permute.xlu0 %861
    %863 = vrot.lane.b32.xlu0 %v186, 104
    %v864 = vpop.permute.xlu0 %863
    %865 = vrot.lane.b32.xlu0 %v187, 104
    %v866 = vpop.permute.xlu0 %865
    %867 = vrot.lane.b32.xlu0 %v188, 104
    %v868 = vpop.permute.xlu0 %867
    %869 = vrot.lane.b32.xlu0 %v189, 104
    %v870 = vpop.permute.xlu0 %869
    %v880 = vsel %vm190, %v854, 0.0
    %881 = vadd.xlane.f32.xlu0 %v880
    %v882 = vpop.xlane.xlu0 %881
    %v883 = vsel %vm190, %v856, 0.0
    %884 = vadd.xlane.f32.xlu0 %v883
    %v885 = vpop.xlane.xlu0 %884
    %v886 = vsel %vm190, %v858, 0.0
    %887 = vadd.xlane.f32.xlu0 %v886
    %v888 = vpop.xlane.xlu0 %887
    %v889 = vsel %vm190, %v860, 0.0
    %890 = vadd.xlane.f32.xlu0 %v889
    %v891 = vpop.xlane.xlu0 %890
    %v892 = vsel %vm190, %v862, 0.0
    %893 = vadd.xlane.f32.xlu0 %v892
    %v894 = vpop.xlane.xlu0 %893
    %v895 = vsel %vm190, %v864, 0.0
    %896 = vadd.xlane.f32.xlu0 %v895
    %v897 = vpop.xlane.xlu0 %896
    %v898 = vsel %vm190, %v866, 0.0
    %899 = vadd.xlane.f32.xlu0 %v898
    %v900 = vpop.xlane.xlu0 %899
    %v901 = vsel %vm190, %v868, 0.0
    %902 = vadd.xlane.f32.xlu0 %v901
    %v903 = vpop.xlane.xlu0 %902
    %v904 = vsel %vm190, %v870, 0.0
    %905 = vadd.xlane.f32.xlu0 %v904
    %v906 = vpop.xlane.xlu0 %905
    %v907 = vmax.f32 %v882, 1e-24
    %v908 = vmax.f32 %v885, 1e-24
    %v909 = vmax.f32 %v888, 1e-24
    %v910 = vmax.f32 %v891, 1e-24
    %v911 = vmax.f32 %v894, 1e-24
    %v912 = vmax.f32 %v897, 1e-24
    %v913 = vmax.f32 %v900, 1e-24
    %v914 = vmax.f32 %v903, 1e-24
    %v915 = vmax.f32 %v906, 1e-24
    %v916 = vrsqrt.pop %v907
    %v917 = vrsqrt.pop %v908
    %v918 = vrsqrt.pop %v909
    %v919 = vrsqrt.pop %v910
    %v920 = vrsqrt.pop %v911
    %v921 = vrsqrt.pop %v912
    %v922 = vrsqrt.pop %v913
    %v923 = vrsqrt.pop %v914
    %v924 = vrsqrt.pop %v915
    %v925 = vmul.f32 %v144, %v916
    %v926 = vmul.f32 %v147, %v917
    %v927 = vmul.f32 %v152, %v918
    %v928 = vmul.f32 %v155, %v919
    %v929 = vmul.f32 %v160, %v920
    %v930 = vmul.f32 %v163, %v921
    %v931 = vmul.f32 %v168, %v922
    %v932 = vmul.f32 %v171, %v923
    %v933 = vmul.f32 %v176, %v924
    %943 = vrot.lane.b32.xlu0 %v844, 120
    %v944 = vpop.permute.xlu0 %943
    %945 = vrot.lane.b32.xlu0 %v845, 120
    %v946 = vpop.permute.xlu0 %945
    %947 = vrot.lane.b32.xlu0 %v846, 120
    %v948 = vpop.permute.xlu0 %947
    %949 = vrot.lane.b32.xlu0 %v847, 120
    %v950 = vpop.permute.xlu0 %949
    %951 = vrot.lane.b32.xlu0 %v848, 120
    %v952 = vpop.permute.xlu0 %951
    %953 = vrot.lane.b32.xlu0 %v849, 120
    %v954 = vpop.permute.xlu0 %953
    %955 = vrot.lane.b32.xlu0 %v850, 120
    %v956 = vpop.permute.xlu0 %955
    %957 = vrot.lane.b32.xlu0 %v851, 120
    %v958 = vpop.permute.xlu0 %957
    %959 = vrot.lane.b32.xlu0 %v852, 120
    %v960 = vpop.permute.xlu0 %959
    %970 = vrot.lane.b32.xlu0 %v925, 104
    %v971 = vpop.permute.xlu0 %970
    %972 = vrot.lane.b32.xlu0 %v926, 104
    %v973 = vpop.permute.xlu0 %972
    %974 = vrot.lane.b32.xlu0 %v927, 104
    %v975 = vpop.permute.xlu0 %974
    %976 = vrot.lane.b32.xlu0 %v928, 104
    %v977 = vpop.permute.xlu0 %976
    %978 = vrot.lane.b32.xlu0 %v929, 104
    %v979 = vpop.permute.xlu0 %978
    %980 = vrot.lane.b32.xlu0 %v930, 104
    %v981 = vpop.permute.xlu0 %980
    %982 = vrot.lane.b32.xlu0 %v931, 104
    %v983 = vpop.permute.xlu0 %982
    %984 = vrot.lane.b32.xlu0 %v932, 104
    %v985 = vpop.permute.xlu0 %984
    %986 = vrot.lane.b32.xlu0 %v933, 104
    %v987 = vpop.permute.xlu0 %986
    %v988 = vsel %vm190, %v944, 0
    %v990 = vsel %vm190, %v946, 0
    %v992 = vsel %vm190, %v948, 0
    %v994 = vsel %vm190, %v950, 0
    %v996 = vsel %vm190, %v952, 0
    %v998 = vsel %vm190, %v954, 0
    %v1000 = vsel %vm190, %v956, 0
    %v1002 = vsel %vm190, %v958, 0
    %v1004 = vsel %vm190, %v960, 0
    %v1006 = vsel %vm190, %v971, 0
    %v1008 = vsel %vm190, %v973, 0
    %v1010 = vsel %vm190, %v975, 0
    %v1012 = vsel %vm190, %v977, 0
    %v1014 = vsel %vm190, %v979, 0
    %v1016 = vsel %vm190, %v981, 0
    %v1018 = vsel %vm190, %v983, 0
    %v1020 = vsel %vm190, %v985, 0
    %v1022 = vsel %vm190, %v987, 0
    %1024 = vmatprep.subr.mxu0 0.0
    %1025 = vmatpush1.xpose.msra.mxu0 %v1006
    %1026 = vmatprep.subr.mxu0 0.0
    %1027 = vmatpush1.xpose.msra.mxu0 %v1008
    %1028 = vmatprep.subr.mxu0 0.0
    %1029 = vmatpush1.xpose.msra.mxu0 %v1010
    %1030 = vmatprep.subr.mxu0 0.0
    %1031 = vmatpush1.xpose.msra.mxu0 %v1012
    %1032 = vmatprep.subr.mxu0 0.0
    %1033 = vmatpush1.xpose.msra.mxu0 %v1014
    %1034 = vmatprep.subr.mxu0 0.0
    %1035 = vmatpush1.xpose.msra.mxu0 %v1016
    %1036 = vmatprep.subr.mxu0 0.0
    %1037 = vmatpush1.xpose.msra.mxu0 %v1018
    %1038 = vmatprep.subr.mxu0 0.0
    %1039 = vmatpush1.xpose.msra.mxu0 %v1020
    %1040 = vmatprep.subr.mxu0 0.0
    %1041 = vmatpush1.xpose.msra.mxu0 %v1022
    %1042 = vmatprep.subr.mxu0 0.0
    %1043 = vmatpush1.xpose.msra.mxu0 0.0
    %1044 = vmatprep.subr.mxu0 0.0
    %1045 = vmatpush1.xpose.msra.mxu0 0.0
    %1046 = vmatprep.subr.mxu0 0.0
    %1047 = vmatpush1.xpose.msra.mxu0 0.0
    %1048 = vmatprep.subr.mxu0 0.0
    %1049 = vmatpush1.xpose.msra.mxu0 0.0
    %1050 = vmatprep.subr.mxu0 0.0
    %1051 = vmatpush1.xpose.msra.mxu0 0.0
    %1052 = vmatprep.subr.mxu0 0.0
    %1053 = vmatpush1.xpose.msra.mxu0 0.0
    %1054 = vmatprep.subr.mxu0 0.0
    %1055 = vmatpush1.xpose.msra.mxu0 0.0
    %1056 = vmatprep.subr.mxu0 0.0
    %1057 = vmatpush1.xpose.msra.mxu0 0.0
    %1058 = vmatprep.subr.mxu0 0.0
    %1059 = vmatpush1.xpose.msra.mxu0 0.0
    %1060 = vmatprep.subr.mxu0 0.0
    %1061 = vmatpush1.xpose.msra.mxu0 0.0
    %1062 = vmatprep.subr.mxu0 0.0
    %1063 = vmatpush1.xpose.msra.mxu0 0.0
    %1064 = vmatprep.subr.mxu0 0.0
    %1065 = vmatpush1.xpose.msra.mxu0 0.0
    %1066 = vmatprep.subr.mxu0 0.0
    %1067 = vmatpush1.xpose.msra.mxu0 0.0
    %1068 = vmatprep.subr.mxu0 0.0
    %1069 = vmatpush1.xpose.msra.mxu0 0.0
    %1070 = vmatprep.subr.mxu0 0.0
    %1071 = vmatpush1.xpose.msra.mxu0 0.0
    %1072 = vmatprep.subr.mxu0 0.0
    %1073 = vmatpush1.xpose.msra.mxu0 0.0
    %1074 = vmatprep.subr.mxu0 0.0
    %1075 = vmatpush1.xpose.msra.mxu0 0.0
    %1076 = vmatprep.subr.mxu0 0.0
    %1077 = vmatpush1.xpose.msra.mxu0 0.0
    %1078 = vmatprep.subr.mxu0 0.0
    %1079 = vmatpush1.xpose.msra.mxu0 0.0
    %1080 = vmatprep.subr.mxu0 0.0
    %1081 = vmatpush1.xpose.msra.mxu0 0.0
    %1082 = vmatprep.subr.mxu0 0.0
    %1083 = vmatpush1.xpose.msra.mxu0 0.0
    %1084 = vmatprep.subr.mxu0 0.0
    %1085 = vmatpush1.xpose.msra.mxu0 0.0
    %1086 = vmatprep.subr.mxu0 0.0
    %1087 = vmatpush1.xpose.msra.mxu0 0.0
    %1088 = vmatprep.mubr.f32.mxu0 0.0
    %1089 = vmatmul.mubr.f32.gmra.mrb[0].mxu0 %v988
    %v1090 = vpop.f32.mrb[0].mxu0
    %v1091 = vadd.f32 0.0, %v1090
    %v1092 = vpop.f32.mrb[0].mxu0
    %1093 = vmatprep.mubr.f32.mxu0 0.0
    %1094 = vmatmul.mubr.f32.gmra.mrb[0].mxu0 %v990
    %v1095 = vpop.f32.mrb[0].mxu0
    %v1096 = vadd.f32 0.0, %v1095
    %v1097 = vpop.f32.mrb[0].mxu0
    %1098 = vmatprep.mubr.f32.mxu0 0.0
    %1099 = vmatmul.mubr.f32.gmra.mrb[0].mxu0 %v992
    %v1100 = vpop.f32.mrb[0].mxu0
    %v1101 = vadd.f32 0.0, %v1100
    %v1102 = vpop.f32.mrb[0].mxu0
    %1103 = vmatprep.mubr.f32.mxu0 0.0
    %1104 = vmatmul.mubr.f32.gmra.mrb[0].mxu0 %v994
    %v1105 = vpop.f32.mrb[0].mxu0
    %v1106 = vadd.f32 0.0, %v1105
    %v1107 = vpop.f32.mrb[0].mxu0
    %1108 = vmatprep.mubr.f32.mxu0 0.0
    %1109 = vmatmul.mubr.f32.gmra.mrb[0].mxu0 %v996
    %v1110 = vpop.f32.mrb[0].mxu0
    %v1111 = vadd.f32 0.0, %v1110
    %v1112 = vpop.f32.mrb[0].mxu0
    %1113 = vmatprep.mubr.f32.mxu0 0.0
    %1114 = vmatmul.mubr.f32.gmra.mrb[0].mxu0 %v998
    %v1115 = vpop.f32.mrb[0].mxu0
    %v1116 = vadd.f32 0.0, %v1115
    %v1117 = vpop.f32.mrb[0].mxu0
    %1118 = vmatprep.mubr.f32.mxu0 0.0
    %1119 = vmatmul.mubr.f32.gmra.mrb[0].mxu0 %v1000
    %v1120 = vpop.f32.mrb[0].mxu0
    %v1121 = vadd.f32 0.0, %v1120
    %v1122 = vpop.f32.mrb[0].mxu0
    %1123 = vmatprep.mubr.f32.mxu0 0.0
    %1124 = vmatmul.mubr.f32.gmra.mrb[0].mxu0 %v1002
    %v1125 = vpop.f32.mrb[0].mxu0
    %v1126 = vadd.f32 0.0, %v1125
    %v1127 = vpop.f32.mrb[0].mxu0
    %1128 = vmatprep.mubr.f32.mxu0 0.0
    %1129 = vmatmul.mubr.f32.gmra.mrb[0].mxu0 %v1004
    %v1130 = vpop.f32.mrb[0].mxu0
    %v1131 = vadd.f32 0.0, %v1130
    %v1132 = vpop.f32.mrb[0].mxu0
    %1133 = vdwg.mxu0
    %s1134 = sld [smem:[#allocation2 + $0x1]]
    %v1135 = vstv %s1134
    %v1136 = vmul.f32 %v1091, %v1135
    %v1137 = vmul.f32 %v1096, %v1135
    %v1138 = vmul.f32 %v1101, %v1135
    %v1139 = vmul.f32 %v1106, %v1135
    %v1140 = vmul.f32 %v1111, %v1135
    %v1141 = vmul.f32 %v1116, %v1135
    %v1142 = vmul.f32 %v1121, %v1135
    %v1143 = vmul.f32 %v1126, %v1135
    %v1144 = vmul.f32 %v1131, %v1135
    %s1145 = scalar_lea.vmem %s5, 72
    %v1146 = vld [vmem:[%s1145] sm:$0xff]
    %v1147 = vld [vmem:[%s1145 + $0x8] sm:$0xff]
    %v1148 = vld [vmem:[%s1145 + $0x10] sm:$0xff]
    %v1149 = vld [vmem:[%s1145 + $0x18] sm:$0xff]
    %v1150 = vld [vmem:[%s1145 + $0x20] sm:$0xff]
    %v1151 = vld [vmem:[%s1145 + $0x28] sm:$0xff]
    %v1152 = vld [vmem:[%s1145 + $0x30] sm:$0xff]
    %v1153 = vld [vmem:[%s1145 + $0x38] sm:$0xff]
    %v1154 = vld [vmem:[%s1145 + $0x40] sm:$0xff]
    %v1155 = vadd.f32 %v1136, %v1146
    %v1156 = vadd.f32 %v1137, %v1147
    %v1157 = vadd.f32 %v1138, %v1148
    %v1158 = vadd.f32 %v1139, %v1149
    %v1159 = vadd.f32 %v1140, %v1150
    %v1160 = vadd.f32 %v1141, %v1151
    %v1161 = vadd.f32 %v1142, %v1152
    %v1162 = vadd.f32 %v1143, %v1153
    %v1163 = vadd.f32 %v1144, %v1154
    %v1164 = vsel %vm546, %v1155, -inf
    %1165 = vmax.xlane.f32.xlu0 %v1164
    %v1166 = vpop.xlane.xlu0 %1165
    %v1167 = vsel %vm546, %v1156, -inf
    %1168 = vmax.xlane.f32.xlu0 %v1167
    %v1169 = vpop.xlane.xlu0 %1168
    %v1170 = vsel %vm546, %v1157, -inf
    %1171 = vmax.xlane.f32.xlu0 %v1170
    %v1172 = vpop.xlane.xlu0 %1171
    %v1173 = vsel %vm546, %v1158, -inf
    %1174 = vmax.xlane.f32.xlu0 %v1173
    %v1175 = vpop.xlane.xlu0 %1174
    %v1176 = vsel %vm546, %v1159, -inf
    %1177 = vmax.xlane.f32.xlu0 %v1176
    %v1178 = vpop.xlane.xlu0 %1177
    %v1179 = vsel %vm546, %v1160, -inf
    %1180 = vmax.xlane.f32.xlu0 %v1179
    %v1181 = vpop.xlane.xlu0 %1180
    %v1182 = vsel %vm546, %v1161, -inf
    %1183 = vmax.xlane.f32.xlu0 %v1182
    %v1184 = vpop.xlane.xlu0 %1183
    %v1185 = vsel %vm546, %v1162, -inf
    %1186 = vmax.xlane.f32.xlu0 %v1185
    %v1187 = vpop.xlane.xlu0 %1186
    %v1188 = vsel %vm546, %v1163, -inf
    %1189 = vmax.xlane.f32.xlu0 %v1188
    %v1190 = vpop.xlane.xlu0 %1189
    %v1191 = vsub.f32 %v1155, %v1166
    %v1192 = vsub.f32 %v1156, %v1169
    %v1193 = vsub.f32 %v1157, %v1172
    %v1194 = vsub.f32 %v1158, %v1175
    %v1195 = vsub.f32 %v1159, %v1178
    %v1196 = vsub.f32 %v1160, %v1181
    %v1197 = vsub.f32 %v1161, %v1184
    %v1198 = vsub.f32 %v1162, %v1187
    %v1199 = vsub.f32 %v1163, %v1190
    %v1200 = vmul.f32 %v1191, 1.442695
    %v1201 = vpow.pop %v1200
    %v1202 = vmul.f32 %v1192, 1.442695
    %v1203 = vpow.pop %v1202
    %v1204 = vmul.f32 %v1193, 1.442695
    %v1205 = vpow.pop %v1204
    %v1206 = vmul.f32 %v1194, 1.442695
    %v1207 = vpow.pop %v1206
    %v1208 = vmul.f32 %v1195, 1.442695
    %v1209 = vpow.pop %v1208
    %v1210 = vmul.f32 %v1196, 1.442695
    %v1211 = vpow.pop %v1210
    %v1212 = vmul.f32 %v1197, 1.442695
    %v1213 = vpow.pop %v1212
    %v1214 = vmul.f32 %v1198, 1.442695
    %v1215 = vpow.pop %v1214
    %v1216 = vmul.f32 %v1199, 1.442695
    %v1217 = vpow.pop %v1216
    %v1218 = vsel %vm546, %v1201, 0.0
    %1219 = vadd.xlane.f32.xlu0 %v1218
    %v1220 = vpop.xlane.xlu0 %1219
    %v1221 = vsel %vm546, %v1203, 0.0
    %1222 = vadd.xlane.f32.xlu0 %v1221
    %v1223 = vpop.xlane.xlu0 %1222
    %v1224 = vsel %vm546, %v1205, 0.0
    %1225 = vadd.xlane.f32.xlu0 %v1224
    %v1226 = vpop.xlane.xlu0 %1225
    %v1227 = vsel %vm546, %v1207, 0.0
    %1228 = vadd.xlane.f32.xlu0 %v1227
    %v1229 = vpop.xlane.xlu0 %1228
    %v1230 = vsel %vm546, %v1209, 0.0
    %1231 = vadd.xlane.f32.xlu0 %v1230
    %v1232 = vpop.xlane.xlu0 %1231
    %v1233 = vsel %vm546, %v1211, 0.0
    %1234 = vadd.xlane.f32.xlu0 %v1233
    %v1235 = vpop.xlane.xlu0 %1234
    %v1236 = vsel %vm546, %v1213, 0.0
    %1237 = vadd.xlane.f32.xlu0 %v1236
    %v1238 = vpop.xlane.xlu0 %1237
    %v1239 = vsel %vm546, %v1215, 0.0
    %1240 = vadd.xlane.f32.xlu0 %v1239
    %v1241 = vpop.xlane.xlu0 %1240
    %v1242 = vsel %vm546, %v1217, 0.0
    %1243 = vadd.xlane.f32.xlu0 %v1242
    %v1244 = vpop.xlane.xlu0 %1243
    %v1245 = vrcp.pop %v1220
    %v1246 = vrcp.pop %v1223
    %v1247 = vrcp.pop %v1226
    %v1248 = vrcp.pop %v1229
    %v1249 = vrcp.pop %v1232
    %v1250 = vrcp.pop %v1235
    %v1251 = vrcp.pop %v1238
    %v1252 = vrcp.pop %v1241
    %v1253 = vrcp.pop %v1244
    %v1254 = vmul.f32 %v1201, %v1245
    %v1255 = vmul.f32 %v1203, %v1246
    %v1256 = vmul.f32 %v1205, %v1247
    %v1257 = vmul.f32 %v1207, %v1248
    %v1258 = vmul.f32 %v1209, %v1249
    %v1259 = vmul.f32 %v1211, %v1250
    %v1260 = vmul.f32 %v1213, %v1251
    %v1261 = vmul.f32 %v1215, %v1252
    %v1262 = vmul.f32 %v1217, %v1253
    %v1263 = vpack.c.bf16 %v1255, %v1254
    %v1264 = vpack.c.bf16 %v1257, %v1256
    %v1265 = vpack.c.bf16 %v1259, %v1258
    %v1266 = vpack.c.bf16 %v1261, %v1260
    %v1267 = vpack.c.bf16 %v1262, %v1262
    %1268 = vrot.lane.b32.xlu0 %v651, 88
    %v1269 = vpop.permute.xlu0 %1268
    %1270 = vrot.lane.b32.xlu0 %v652, 88
    %v1271 = vpop.permute.xlu0 %1270
    %1272 = vrot.lane.b32.xlu0 %v653, 88
    %v1273 = vpop.permute.xlu0 %1272
    %1274 = vrot.lane.b32.xlu0 %v654, 88
    %v1275 = vpop.permute.xlu0 %1274
    %1276 = vrot.lane.b32.xlu0 %v655, 88
    %v1277 = vpop.permute.xlu0 %1276
    %v1283 = vsel %vm546, %v1263, 0
    %v1286 = vsel %vm546, %v1264, 0
    %v1289 = vsel %vm546, %v1265, 0
    %v1292 = vsel %vm546, %v1266, 0
    %v1295 = vsel %vm546, %v1267, 0
    %v1298 = vsel %vm690, %v1277, 0
    %1300 = vmatprep.subr.bf16.mxu0 0
    %1301 = vmatpush1.bf16.msra.mxu0 %v1269
    %1302 = vmatprep.subr.bf16.mxu0 0
    %1303 = vmatpush1.bf16.msra.mxu0 %v1271
    %1304 = vmatprep.subr.bf16.mxu0 0
    %1305 = vmatpush1.bf16.msra.mxu0 %v1273
    %1306 = vmatprep.subr.bf16.mxu0 0
    %1307 = vmatpush1.bf16.msra.mxu0 %v1275
    %1308 = vmatprep.subr.bf16.mxu0 0
    %1309 = vmatpush1.bf16.msra.mxu0 %v1298
    %1310 = vmatprep.subr.bf16.mxu0 0
    %1311 = vmatpush1.bf16.msra.mxu0 0
    %1312 = vmatprep.subr.bf16.mxu0 0
    %1313 = vmatpush1.bf16.msra.mxu0 0
    %1314 = vmatprep.subr.bf16.mxu0 0
    %1315 = vmatpush1.bf16.msra.mxu0 0
    %1316 = vmatprep.subr.bf16.mxu0 0
    %1317 = vmatpush1.bf16.msra.mxu0 0
    %1318 = vmatprep.subr.bf16.mxu0 0
    %1319 = vmatpush1.bf16.msra.mxu0 0
    %1320 = vmatprep.subr.bf16.mxu0 0
    %1321 = vmatpush1.bf16.msra.mxu0 0
    %1322 = vmatprep.subr.bf16.mxu0 0
    %1323 = vmatpush1.bf16.msra.mxu0 0
    %1324 = vmatprep.subr.bf16.mxu0 0
    %1325 = vmatpush1.bf16.msra.mxu0 0
    %1326 = vmatprep.subr.bf16.mxu0 0
    %1327 = vmatpush1.bf16.msra.mxu0 0
    %1328 = vmatprep.subr.bf16.mxu0 0
    %1329 = vmatpush1.bf16.msra.mxu0 0
    %1330 = vmatprep.subr.bf16.mxu0 0
    %1331 = vmatpush1.bf16.msra.mxu0 0
    %1332 = vmatprep.mubr.bf16.mxu0 0
    %1333 = vmatmul.mubr.bf16.gmra.mrb[0].mxu0 %v1283
    %v1334 = vpop.f32.mrb[0].mxu0
    %v1335 = vadd.f32 0.0, %v1334
    %v1336 = vpop.f32.mrb[0].mxu0
    %v1337 = vpop.f32.mrb[0].mxu0
    %v1338 = vadd.f32 0.0, %v1337
    %v1339 = vpop.f32.mrb[0].mxu0
    %1340 = vmatprep.mubr.bf16.mxu0 0
    %1341 = vmatmul.mubr.bf16.gmra.mrb[0].mxu0 %v1286
    %v1342 = vpop.f32.mrb[0].mxu0
    %v1343 = vadd.f32 0.0, %v1342
    %v1344 = vpop.f32.mrb[0].mxu0
    %v1345 = vpop.f32.mrb[0].mxu0
    %v1346 = vadd.f32 0.0, %v1345
    %v1347 = vpop.f32.mrb[0].mxu0
    %1348 = vmatprep.mubr.bf16.mxu0 0
    %1349 = vmatmul.mubr.bf16.gmra.mrb[0].mxu0 %v1289
    %v1350 = vpop.f32.mrb[0].mxu0
    %v1351 = vadd.f32 0.0, %v1350
    %v1352 = vpop.f32.mrb[0].mxu0
    %v1353 = vpop.f32.mrb[0].mxu0
    %v1354 = vadd.f32 0.0, %v1353
    %v1355 = vpop.f32.mrb[0].mxu0
    %1356 = vmatprep.mubr.bf16.mxu0 0
    %1357 = vmatmul.mubr.bf16.gmra.mrb[0].mxu0 %v1292
    %v1358 = vpop.f32.mrb[0].mxu0
    %v1359 = vadd.f32 0.0, %v1358
    %v1360 = vpop.f32.mrb[0].mxu0
    %v1361 = vpop.f32.mrb[0].mxu0
    %v1362 = vadd.f32 0.0, %v1361
    %v1363 = vpop.f32.mrb[0].mxu0
    %1364 = vmatprep.mubr.bf16.mxu0 0
    %1365 = vmatmul.mubr.bf16.gmra.mrb[0].mxu0 %v1295
    %v1366 = vpop.f32.mrb[0].mxu0
    %v1367 = vadd.f32 0.0, %v1366
    %v1368 = vpop.f32.mrb[0].mxu0
    %v1369 = vpop.f32.mrb[0].mxu0
    %v1370 = vpop.f32.mrb[0].mxu0
    %1371 = vdwg.mxu0
    %v1372 = vpack.c.bf16 %v1338, %v1335
    %v1373 = vpack.c.bf16 %v1346, %v1343
    %v1374 = vpack.c.bf16 %v1354, %v1351
    %v1375 = vpack.c.bf16 %v1362, %v1359
    %v1376 = vpack.c.bf16 %v1367, %v1367
    %s1377 = scalar_lea.vmem %s3, 4
    %v1378 = vld [vmem:[%s1377] sm:$0xf]
    %v1380 = vsel %vm190, %v1372, 0
    %v1383 = vsel %vm190, %v1373, 0
    %v1386 = vsel %vm190, %v1374, 0
    %v1389 = vsel %vm190, %v1375, 0
    %v1392 = vsel %vm190, %v1376, 0
    %v1395 = vsel %vm690, %v1378, 0
    %1397 = vmatprep.subr.bf16.mxu0 0
    %1398 = vmatpush1.bf16.msra.mxu0 %v1395
    %1399 = vmatprep.subr.bf16.mxu0 0
    %1400 = vmatpush1.bf16.msra.mxu0 0
    %1401 = vmatprep.subr.bf16.mxu0 0
    %1402 = vmatpush1.bf16.msra.mxu0 0
    %1403 = vmatprep.subr.bf16.mxu0 0
    %1404 = vmatpush1.bf16.msra.mxu0 0
    %1405 = vmatprep.subr.bf16.mxu0 0
    %1406 = vmatpush1.bf16.msra.mxu0 0
    %1407 = vmatprep.subr.bf16.mxu0 0
    %1408 = vmatpush1.bf16.msra.mxu0 0
    %1409 = vmatprep.subr.bf16.mxu0 0
    %1410 = vmatpush1.bf16.msra.mxu0 0
    %1411 = vmatprep.subr.bf16.mxu0 0
    %1412 = vmatpush1.bf16.msra.mxu0 0
    %1413 = vmatprep.subr.bf16.mxu0 0
    %1414 = vmatpush1.bf16.msra.mxu0 0
    %1415 = vmatprep.subr.bf16.mxu0 0
    %1416 = vmatpush1.bf16.msra.mxu0 0
    %1417 = vmatprep.subr.bf16.mxu0 0
    %1418 = vmatpush1.bf16.msra.mxu0 0
    %1419 = vmatprep.subr.bf16.mxu0 0
    %1420 = vmatpush1.bf16.msra.mxu0 0
    %1421 = vmatprep.subr.bf16.mxu0 0
    %1422 = vmatpush1.bf16.msra.mxu0 0
    %1423 = vmatprep.subr.bf16.mxu0 0
    %1424 = vmatpush1.bf16.msra.mxu0 0
    %1425 = vmatprep.subr.bf16.mxu0 0
    %1426 = vmatpush1.bf16.msra.mxu0 0
    %1427 = vmatprep.subr.bf16.mxu0 0
    %1428 = vmatpush1.bf16.msra.mxu0 0
    %1429 = vmatprep.mubr.bf16.mxu0 0
    %1430 = vmatmul.mubr.bf16.gmra.mrb[0].mxu0 %v1380
    %v1431 = vpop.f32.mrb[0].mxu0
    %v1432 = vadd.f32 0.0, %v1431
    %v1433 = vpop.f32.mrb[0].mxu0
    %v1434 = vpop.f32.mrb[0].mxu0
    %v1435 = vadd.f32 0.0, %v1434
    %v1436 = vpop.f32.mrb[0].mxu0
    %1437 = vmatprep.mubr.bf16.mxu0 0
    %1438 = vmatmul.mubr.bf16.gmra.mrb[0].mxu0 %v1383
    %v1439 = vpop.f32.mrb[0].mxu0
    %v1440 = vadd.f32 0.0, %v1439
    %v1441 = vpop.f32.mrb[0].mxu0
    %v1442 = vpop.f32.mrb[0].mxu0
    %v1443 = vadd.f32 0.0, %v1442
    %v1444 = vpop.f32.mrb[0].mxu0
    %1445 = vmatprep.mubr.bf16.mxu0 0
    %1446 = vmatmul.mubr.bf16.gmra.mrb[0].mxu0 %v1386
    %v1447 = vpop.f32.mrb[0].mxu0
    %v1448 = vadd.f32 0.0, %v1447
    %v1449 = vpop.f32.mrb[0].mxu0
    %v1450 = vpop.f32.mrb[0].mxu0
    %v1451 = vadd.f32 0.0, %v1450
    %v1452 = vpop.f32.mrb[0].mxu0
    %1453 = vmatprep.mubr.bf16.mxu0 0
    %1454 = vmatmul.mubr.bf16.gmra.mrb[0].mxu0 %v1389
    %v1455 = vpop.f32.mrb[0].mxu0
    %v1456 = vadd.f32 0.0, %v1455
    %v1457 = vpop.f32.mrb[0].mxu0
    %v1458 = vpop.f32.mrb[0].mxu0
    %v1459 = vadd.f32 0.0, %v1458
    %v1460 = vpop.f32.mrb[0].mxu0
    %1461 = vmatprep.mubr.bf16.mxu0 0
    %1462 = vmatmul.mubr.bf16.gmra.mrb[0].mxu0 %v1392
    %v1463 = vpop.f32.mrb[0].mxu0
    %v1464 = vadd.f32 0.0, %v1463
    %v1465 = vpop.f32.mrb[0].mxu0
    %v1466 = vpop.f32.mrb[0].mxu0
    %v1467 = vpop.f32.mrb[0].mxu0
    %1468 = vdwg.mxu0
    %v1470 = vsel %vm190, %v766, 0
    %v1473 = vsel %vm190, %v767, 0
    %v1476 = vsel %vm190, %v768, 0
    %v1479 = vsel %vm190, %v769, 0
    %v1482 = vsel %vm190, %v770, 0
    %v1485 = vsel %vm690, %v771, 0
    %1487 = vmatprep.subr.bf16.mxu0 0
    %1488 = vmatpush1.bf16.msra.mxu0 %v1485
    %1489 = vmatprep.subr.bf16.mxu0 0
    %1490 = vmatpush1.bf16.msra.mxu0 0
    %1491 = vmatprep.subr.bf16.mxu0 0
    %1492 = vmatpush1.bf16.msra.mxu0 0
    %1493 = vmatprep.subr.bf16.mxu0 0
    %1494 = vmatpush1.bf16.msra.mxu0 0
    %1495 = vmatprep.subr.bf16.mxu0 0
    %1496 = vmatpush1.bf16.msra.mxu0 0
    %1497 = vmatprep.subr.bf16.mxu0 0
    %1498 = vmatpush1.bf16.msra.mxu0 0
    %1499 = vmatprep.subr.bf16.mxu0 0
    %1500 = vmatpush1.bf16.msra.mxu0 0
    %1501 = vmatprep.subr.bf16.mxu0 0
    %1502 = vmatpush1.bf16.msra.mxu0 0
    %1503 = vmatprep.subr.bf16.mxu0 0
    %1504 = vmatpush1.bf16.msra.mxu0 0
    %1505 = vmatprep.subr.bf16.mxu0 0
    %1506 = vmatpush1.bf16.msra.mxu0 0
    %1507 = vmatprep.subr.bf16.mxu0 0
    %1508 = vmatpush1.bf16.msra.mxu0 0
    %1509 = vmatprep.subr.bf16.mxu0 0
    %1510 = vmatpush1.bf16.msra.mxu0 0
    %1511 = vmatprep.subr.bf16.mxu0 0
    %1512 = vmatpush1.bf16.msra.mxu0 0
    %1513 = vmatprep.subr.bf16.mxu0 0
    %1514 = vmatpush1.bf16.msra.mxu0 0
    %1515 = vmatprep.subr.bf16.mxu0 0
    %1516 = vmatpush1.bf16.msra.mxu0 0
    %1517 = vmatprep.subr.bf16.mxu0 0
    %1518 = vmatpush1.bf16.msra.mxu0 0
    %1519 = vmatprep.mubr.bf16.mxu0 0
    %1520 = vmatmul.mubr.bf16.gmra.mrb[0].mxu0 %v1470
    %v1521 = vpop.f32.mrb[0].mxu0
    %v1522 = vadd.f32 %v1432, %v1521
    %v1523 = vpop.f32.mrb[0].mxu0
    %v1524 = vpop.f32.mrb[0].mxu0
    %v1525 = vadd.f32 %v1435, %v1524
    %v1526 = vpop.f32.mrb[0].mxu0
    %1527 = vmatprep.mubr.bf16.mxu0 0
    %1528 = vmatmul.mubr.bf16.gmra.mrb[0].mxu0 %v1473
    %v1529 = vpop.f32.mrb[0].mxu0
    %v1530 = vadd.f32 %v1440, %v1529
    %v1531 = vpop.f32.mrb[0].mxu0
    %v1532 = vpop.f32.mrb[0].mxu0
    %v1533 = vadd.f32 %v1443, %v1532
    %v1534 = vpop.f32.mrb[0].mxu0
    %1535 = vmatprep.mubr.bf16.mxu0 0
    %1536 = vmatmul.mubr.bf16.gmra.mrb[0].mxu0 %v1476
    %v1537 = vpop.f32.mrb[0].mxu0
    %v1538 = vadd.f32 %v1448, %v1537
    %v1539 = vpop.f32.mrb[0].mxu0
    %v1540 = vpop.f32.mrb[0].mxu0
    %v1541 = vadd.f32 %v1451, %v1540
    %v1542 = vpop.f32.mrb[0].mxu0
    %1543 = vmatprep.mubr.bf16.mxu0 0
    %1544 = vmatmul.mubr.bf16.gmra.mrb[0].mxu0 %v1479
    %v1545 = vpop.f32.mrb[0].mxu0
    %v1546 = vadd.f32 %v1456, %v1545
    %v1547 = vpop.f32.mrb[0].mxu0
    %v1548 = vpop.f32.mrb[0].mxu0
    %v1549 = vadd.f32 %v1459, %v1548
    %v1550 = vpop.f32.mrb[0].mxu0
    %1551 = vmatprep.mubr.bf16.mxu0 0
    %1552 = vmatmul.mubr.bf16.gmra.mrb[0].mxu0 %v1482
    %v1553 = vpop.f32.mrb[0].mxu0
    %v1554 = vadd.f32 %v1464, %v1553
    %v1555 = vpop.f32.mrb[0].mxu0
    %v1556 = vpop.f32.mrb[0].mxu0
    %v1557 = vpop.f32.mrb[0].mxu0
    %1558 = vdwg.mxu0
    %v1559 = vld [vmem:[%s4] sm:$0x1]
    %v1561 = vlaneseq
    %v1562 = vshrl.u32 %v1561, 7
    %v1563 = vsub.s32 0, %v1562
    %v1564 = vrot.slane %v1559, %v1563
    %v1566 = vadd.f32 %v1522, %v1564
    %v1567 = vadd.f32 %v1525, %v1564
    %v1568 = vadd.f32 %v1530, %v1564
    %v1569 = vadd.f32 %v1533, %v1564
    %v1570 = vadd.f32 %v1538, %v1564
    %v1571 = vadd.f32 %v1541, %v1564
    %v1572 = vadd.f32 %v1546, %v1564
    %v1573 = vadd.f32 %v1549, %v1564
    %v1574 = vadd.f32 %v1554, %v1564
    %v1575 = vld [vmem:[%s6] sm:$0x1]
    %v1576 = vld [vmem:[%s7] sm:$0x1]
    %v1577 = vsel %vm93, %v1566, 0.0
    %1578 = vadd.xlane.f32.xlu0 %v1577
    %v1579 = vpop.xlane.xlu0 %1578
    %v1580 = vsel %vm93, %v1567, 0.0
    %1581 = vadd.xlane.f32.xlu0 %v1580
    %v1582 = vpop.xlane.xlu0 %1581
    %v1583 = vsel %vm93, %v1568, 0.0
    %1584 = vadd.xlane.f32.xlu0 %v1583
    %v1585 = vpop.xlane.xlu0 %1584
    %v1586 = vsel %vm93, %v1569, 0.0
    %1587 = vadd.xlane.f32.xlu0 %v1586
    %v1588 = vpop.xlane.xlu0 %1587
    %v1589 = vsel %vm93, %v1570, 0.0
    %1590 = vadd.xlane.f32.xlu0 %v1589
    %v1591 = vpop.xlane.xlu0 %1590
    %v1592 = vsel %vm93, %v1571, 0.0
    %1593 = vadd.xlane.f32.xlu0 %v1592
    %v1594 = vpop.xlane.xlu0 %1593
    %v1595 = vsel %vm93, %v1572, 0.0
    %1596 = vadd.xlane.f32.xlu0 %v1595
    %v1597 = vpop.xlane.xlu0 %1596
    %v1598 = vsel %vm93, %v1573, 0.0
    %1599 = vadd.xlane.f32.xlu0 %v1598
    %v1600 = vpop.xlane.xlu0 %1599
    %v1601 = vsel %vm93, %v1574, 0.0
    %1602 = vadd.xlane.f32.xlu0 %v1601
    %v1603 = vpop.xlane.xlu0 %1602
    %v1604 = vrcp.pop 16.0
    %v1605 = vmul.f32 %v1579, %v1604
    %v1606 = vmul.f32 %v1582, %v1604
    %v1607 = vmul.f32 %v1585, %v1604
    %v1608 = vmul.f32 %v1588, %v1604
    %v1609 = vmul.f32 %v1591, %v1604
    %v1610 = vmul.f32 %v1594, %v1604
    %v1611 = vmul.f32 %v1597, %v1604
    %v1612 = vmul.f32 %v1600, %v1604
    %v1613 = vmul.f32 %v1603, %v1604
    %v1614 = vsub.f32 %v1566, %v1605
    %v1615 = vsub.f32 %v1567, %v1606
    %v1616 = vsub.f32 %v1568, %v1607
    %v1617 = vsub.f32 %v1569, %v1608
    %v1618 = vsub.f32 %v1570, %v1609
    %v1619 = vsub.f32 %v1571, %v1610
    %v1620 = vsub.f32 %v1572, %v1611
    %v1621 = vsub.f32 %v1573, %v1612
    %v1622 = vsub.f32 %v1574, %v1613
    %v1623 = vmul.f32 %v1614, %v1614
    %v1624 = vmul.f32 %v1615, %v1615
    %v1625 = vmul.f32 %v1616, %v1616
    %v1626 = vmul.f32 %v1617, %v1617
    %v1627 = vmul.f32 %v1618, %v1618
    %v1628 = vmul.f32 %v1619, %v1619
    %v1629 = vmul.f32 %v1620, %v1620
    %v1630 = vmul.f32 %v1621, %v1621
    %v1631 = vmul.f32 %v1622, %v1622
    %v1632 = vsel %vm93, %v1623, 0.0
    %1633 = vadd.xlane.f32.xlu0 %v1632
    %v1634 = vpop.xlane.xlu0 %1633
    %v1635 = vsel %vm93, %v1624, 0.0
    %1636 = vadd.xlane.f32.xlu0 %v1635
    %v1637 = vpop.xlane.xlu0 %1636
    %v1638 = vsel %vm93, %v1625, 0.0
    %1639 = vadd.xlane.f32.xlu0 %v1638
    %v1640 = vpop.xlane.xlu0 %1639
    %v1641 = vsel %vm93, %v1626, 0.0
    %1642 = vadd.xlane.f32.xlu0 %v1641
    %v1643 = vpop.xlane.xlu0 %1642
    %v1644 = vsel %vm93, %v1627, 0.0
    %1645 = vadd.xlane.f32.xlu0 %v1644
    %v1646 = vpop.xlane.xlu0 %1645
    %v1647 = vsel %vm93, %v1628, 0.0
    %1648 = vadd.xlane.f32.xlu0 %v1647
    %v1649 = vpop.xlane.xlu0 %1648
    %v1650 = vsel %vm93, %v1629, 0.0
    %1651 = vadd.xlane.f32.xlu0 %v1650
    %v1652 = vpop.xlane.xlu0 %1651
    %v1653 = vsel %vm93, %v1630, 0.0
    %1654 = vadd.xlane.f32.xlu0 %v1653
    %v1655 = vpop.xlane.xlu0 %1654
    %v1656 = vsel %vm93, %v1631, 0.0
    %1657 = vadd.xlane.f32.xlu0 %v1656
    %v1658 = vpop.xlane.xlu0 %1657
    %v1659 = vmul.f32 %v1634, %v1604
    %v1660 = vmul.f32 %v1637, %v1604
    %v1661 = vmul.f32 %v1640, %v1604
    %v1662 = vmul.f32 %v1643, %v1604
    %v1663 = vmul.f32 %v1646, %v1604
    %v1664 = vmul.f32 %v1649, %v1604
    %v1665 = vmul.f32 %v1652, %v1604
    %v1666 = vmul.f32 %v1655, %v1604
    %v1667 = vmul.f32 %v1658, %v1604
    %v1668 = vadd.f32 %v1659, 1e-05
    %v1669 = vadd.f32 %v1660, 1e-05
    %v1670 = vadd.f32 %v1661, 1e-05
    %v1671 = vadd.f32 %v1662, 1e-05
    %v1672 = vadd.f32 %v1663, 1e-05
    %v1673 = vadd.f32 %v1664, 1e-05
    %v1674 = vadd.f32 %v1665, 1e-05
    %v1675 = vadd.f32 %v1666, 1e-05
    %v1676 = vadd.f32 %v1667, 1e-05
    %v1677 = vrsqrt.pop %v1668
    %v1678 = vrsqrt.pop %v1669
    %v1679 = vrsqrt.pop %v1670
    %v1680 = vrsqrt.pop %v1671
    %v1681 = vrsqrt.pop %v1672
    %v1682 = vrsqrt.pop %v1673
    %v1683 = vrsqrt.pop %v1674
    %v1684 = vrsqrt.pop %v1675
    %v1685 = vrsqrt.pop %v1676
    %v1686 = vmul.f32 %v1614, %v1677
    %v1687 = vmul.f32 %v1615, %v1678
    %v1688 = vmul.f32 %v1616, %v1679
    %v1689 = vmul.f32 %v1617, %v1680
    %v1690 = vmul.f32 %v1618, %v1681
    %v1691 = vmul.f32 %v1619, %v1682
    %v1692 = vmul.f32 %v1620, %v1683
    %v1693 = vmul.f32 %v1621, %v1684
    %v1694 = vmul.f32 %v1622, %v1685
    %v1696 = vlaneseq
    %v1697 = vshrl.u32 %v1696, 7
    %v1698 = vsub.s32 0, %v1697
    %v1699 = vrot.slane %v1575, %v1698
    %v1701 = vmul.f32 %v1686, %v1699
    %v1702 = vmul.f32 %v1687, %v1699
    %v1703 = vmul.f32 %v1688, %v1699
    %v1704 = vmul.f32 %v1689, %v1699
    %v1705 = vmul.f32 %v1690, %v1699
    %v1706 = vmul.f32 %v1691, %v1699
    %v1707 = vmul.f32 %v1692, %v1699
    %v1708 = vmul.f32 %v1693, %v1699
    %v1709 = vmul.f32 %v1694, %v1699
    %v1711 = vlaneseq
    %v1712 = vshrl.u32 %v1711, 7
    %v1713 = vsub.s32 0, %v1712
    %v1714 = vrot.slane %v1576, %v1713
    %v1716 = vadd.f32 %v1701, %v1714
    %v1717 = vadd.f32 %v1702, %v1714
    %v1718 = vadd.f32 %v1703, %v1714
    %v1719 = vadd.f32 %v1704, %v1714
    %v1720 = vadd.f32 %v1705, %v1714
    %v1721 = vadd.f32 %v1706, %v1714
    %v1722 = vadd.f32 %v1707, %v1714
    %v1723 = vadd.f32 %v1708, %v1714
    %v1724 = vadd.f32 %v1709, %v1714
    %v1725 = vadd.f32 %v64, %v1716
    %v1726 = vadd.f32 %v65, %v1717
    %v1727 = vadd.f32 %v66, %v1718
    %v1728 = vadd.f32 %v67, %v1719
    %v1729 = vadd.f32 %v68, %v1720
    %v1730 = vadd.f32 %v69, %v1721
    %v1731 = vadd.f32 %v70, %v1722
    %v1732 = vadd.f32 %v71, %v1723
    %v1733 = vadd.f32 %v72, %v1724
    %v1734 = vpack.c.bf16 %v1726, %v1725
    %v1735 = vpack.c.bf16 %v1728, %v1727
    %v1736 = vpack.c.bf16 %v1730, %v1729
    %v1737 = vpack.c.bf16 %v1732, %v1731
    %v1738 = vpack.c.bf16 %v1733, %v1733
    %v1739 = vld [vmem:[%s8] sm:$0xf]
    %v1740 = vld [vmem:[%s8 + $0x4] sm:$0xf]
    %v1741 = vld [vmem:[%s9] sm:$0x1]
    %v1743 = vlaneseq
    %v1744 = vshrl.u32 %v1743, 7
    %v1745 = vsub.s32 0, %v1744
    %v1746 = vrot.slane %v1741, %v1745
    %v1750 = vunpack.c.l.b16 %v1739
    %v1751 = vunpack.c.l.b16 %v1740
    %v1752 = vpack.c.b16 %v1751, %v1750
    %v1755 = vsel %vm93, %v1734, 0
    %v1758 = vsel %vm93, %v1735, 0
    %v1761 = vsel %vm93, %v1736, 0
    %v1764 = vsel %vm93, %v1737, 0
    %v1767 = vsel %vm93, %v1738, 0
    %1769 = vmatprep.subr.bf16.mxu0 0
    %1770 = vmatpush1.bf16.msra.mxu0 %v1752
    %1771 = vmatprep.subr.bf16.mxu0 0
    %1772 = vmatpush1.bf16.msra.mxu0 0
    %1773 = vmatprep.subr.bf16.mxu0 0
    %1774 = vmatpush1.bf16.msra.mxu0 0
    %1775 = vmatprep.subr.bf16.mxu0 0
    %1776 = vmatpush1.bf16.msra.mxu0 0
    %1777 = vmatprep.subr.bf16.mxu0 0
    %1778 = vmatpush1.bf16.msra.mxu0 0
    %1779 = vmatprep.subr.bf16.mxu0 0
    %1780 = vmatpush1.bf16.msra.mxu0 0
    %1781 = vmatprep.subr.bf16.mxu0 0
    %1782 = vmatpush1.bf16.msra.mxu0 0
    %1783 = vmatprep.subr.bf16.mxu0 0
    %1784 = vmatpush1.bf16.msra.mxu0 0
    %1785 = vmatprep.subr.bf16.mxu0 0
    %1786 = vmatpush1.bf16.msra.mxu0 0
    %1787 = vmatprep.subr.bf16.mxu0 0
    %1788 = vmatpush1.bf16.msra.mxu0 0
    %1789 = vmatprep.subr.bf16.mxu0 0
    %1790 = vmatpush1.bf16.msra.mxu0 0
    %1791 = vmatprep.subr.bf16.mxu0 0
    %1792 = vmatpush1.bf16.msra.mxu0 0
    %1793 = vmatprep.subr.bf16.mxu0 0
    %1794 = vmatpush1.bf16.msra.mxu0 0
    %1795 = vmatprep.subr.bf16.mxu0 0
    %1796 = vmatpush1.bf16.msra.mxu0 0
    %1797 = vmatprep.subr.bf16.mxu0 0
    %1798 = vmatpush1.bf16.msra.mxu0 0
    %1799 = vmatprep.subr.bf16.mxu0 0
    %1800 = vmatpush1.bf16.msra.mxu0 0
    %1801 = vmatprep.mubr.bf16.mxu0 0
    %1802 = vmatmul.mubr.bf16.gmra.mrb[0].mxu0 %v1755
    %v1803 = vpop.f32.mrb[0].mxu0
    %v1804 = vadd.f32 %v1746, %v1803
    %v1805 = vpop.f32.mrb[0].mxu0
    %v1806 = vpop.f32.mrb[0].mxu0
    %v1807 = vadd.f32 %v1746, %v1806
    %v1808 = vpop.f32.mrb[0].mxu0
    %1809 = vmatprep.mubr.bf16.mxu0 0
    %1810 = vmatmul.mubr.bf16.gmra.mrb[0].mxu0 %v1758
    %v1811 = vpop.f32.mrb[0].mxu0
    %v1812 = vadd.f32 %v1746, %v1811
    %v1813 = vpop.f32.mrb[0].mxu0
    %v1814 = vpop.f32.mrb[0].mxu0
    %v1815 = vadd.f32 %v1746, %v1814
    %v1816 = vpop.f32.mrb[0].mxu0
    %1817 = vmatprep.mubr.bf16.mxu0 0
    %1818 = vmatmul.mubr.bf16.gmra.mrb[0].mxu0 %v1761
    %v1819 = vpop.f32.mrb[0].mxu0
    %v1820 = vadd.f32 %v1746, %v1819
    %v1821 = vpop.f32.mrb[0].mxu0
    %v1822 = vpop.f32.mrb[0].mxu0
    %v1823 = vadd.f32 %v1746, %v1822
    %v1824 = vpop.f32.mrb[0].mxu0
    %1825 = vmatprep.mubr.bf16.mxu0 0
    %1826 = vmatmul.mubr.bf16.gmra.mrb[0].mxu0 %v1764
    %v1827 = vpop.f32.mrb[0].mxu0
    %v1828 = vadd.f32 %v1746, %v1827
    %v1829 = vpop.f32.mrb[0].mxu0
    %v1830 = vpop.f32.mrb[0].mxu0
    %v1831 = vadd.f32 %v1746, %v1830
    %v1832 = vpop.f32.mrb[0].mxu0
    %1833 = vmatprep.mubr.bf16.mxu0 0
    %1834 = vmatmul.mubr.bf16.gmra.mrb[0].mxu0 %v1767
    %v1835 = vpop.f32.mrb[0].mxu0
    %v1836 = vadd.f32 %v1746, %v1835
    %v1837 = vpop.f32.mrb[0].mxu0
    %v1838 = vpop.f32.mrb[0].mxu0
    %v1839 = vpop.f32.mrb[0].mxu0
    %1840 = vdwg.mxu0
    %v1841 = vmul.f32 %v1804, 0.5
    %v1842 = vmul.f32 %v1807, 0.5
    %v1843 = vmul.f32 %v1812, 0.5
    %v1844 = vmul.f32 %v1815, 0.5
    %v1845 = vmul.f32 %v1820, 0.5
    %v1846 = vmul.f32 %v1823, 0.5
    %v1847 = vmul.f32 %v1828, 0.5
    %v1848 = vmul.f32 %v1831, 0.5
    %v1849 = vmul.f32 %v1836, 0.5
    %v1850 = vmul.f32 %v1804, 0.70710677
    %v1851 = vmul.f32 %v1807, 0.70710677
    %v1852 = vmul.f32 %v1812, 0.70710677
    %v1853 = vmul.f32 %v1815, 0.70710677
    %v1854 = vmul.f32 %v1820, 0.70710677
    %v1855 = vmul.f32 %v1823, 0.70710677
    %v1856 = vmul.f32 %v1828, 0.70710677
    %v1857 = vmul.f32 %v1831, 0.70710677
    %v1858 = vmul.f32 %v1836, 0.70710677
    %v1859 = verf.f32.pop %v1850
    %v1860 = verf.f32.pop %v1851
    %v1861 = verf.f32.pop %v1852
    %v1862 = verf.f32.pop %v1853
    %v1863 = verf.f32.pop %v1854
    %v1864 = verf.f32.pop %v1855
    %v1865 = verf.f32.pop %v1856
    %v1866 = verf.f32.pop %v1857
    %v1867 = verf.f32.pop %v1858
    %v1868 = vadd.f32 %v1859, 1.0
    %v1869 = vadd.f32 %v1860, 1.0
    %v1870 = vadd.f32 %v1861, 1.0
    %v1871 = vadd.f32 %v1862, 1.0
    %v1872 = vadd.f32 %v1863, 1.0
    %v1873 = vadd.f32 %v1864, 1.0
    %v1874 = vadd.f32 %v1865, 1.0
    %v1875 = vadd.f32 %v1866, 1.0
    %v1876 = vadd.f32 %v1867, 1.0
    %v1877 = vmul.f32 %v1841, %v1868
    %v1878 = vmul.f32 %v1842, %v1869
    %v1879 = vmul.f32 %v1843, %v1870
    %v1880 = vmul.f32 %v1844, %v1871
    %v1881 = vmul.f32 %v1845, %v1872
    %v1882 = vmul.f32 %v1846, %v1873
    %v1883 = vmul.f32 %v1847, %v1874
    %v1884 = vmul.f32 %v1848, %v1875
    %v1885 = vmul.f32 %v1849, %v1876
    %v1886 = vpack.c.bf16 %v1878, %v1877
    %v1887 = vpack.c.bf16 %v1880, %v1879
    %v1888 = vpack.c.bf16 %v1882, %v1881
    %v1889 = vpack.c.bf16 %v1884, %v1883
    %v1890 = vpack.c.bf16 %v1885, %v1885
    %v1891 = vld [vmem:[%s10] sm:$0xf]
    %v1892 = vld [vmem:[%s10 + $0x4] sm:$0xf]
    %v1893 = vld [vmem:[%s10 + $0x8] sm:$0xf]
    %v1894 = vld [vmem:[%s10 + $0xc] sm:$0xf]
    %v1895 = vld [vmem:[%s10 + $0x10] sm:$0xf]
    %v1896 = vld [vmem:[%s10 + $0x14] sm:$0xf]
    %v1897 = vld [vmem:[%s10 + $0x18] sm:$0xf]
    %v1898 = vld [vmem:[%s10 + $0x1c] sm:$0xf]
    %v1899 = vld [vmem:[%s11] sm:$0x1]
    %v1901 = vlaneseq
    %v1902 = vshrl.u32 %v1901, 7
    %v1903 = vsub.s32 0, %v1902
    %v1904 = vrot.slane %v1899, %v1903
    %v1914 = vunpack.c.l.b16 %v1891
    %v1915 = vunpack.c.l.b16 %v1892
    %v1916 = vunpack.c.l.b16 %v1893
    %v1917 = vunpack.c.l.b16 %v1894
    %v1918 = vunpack.c.l.b16 %v1895
    %v1919 = vunpack.c.l.b16 %v1896
    %v1920 = vunpack.c.l.b16 %v1897
    %v1921 = vunpack.c.l.b16 %v1898
    %v1922 = vpack.c.b16 %v1915, %v1914
    %v1923 = vpack.c.b16 %v1917, %v1916
    %v1924 = vpack.c.b16 %v1919, %v1918
    %v1925 = vpack.c.b16 %v1921, %v1920
    %vm1930 = vcmask 523264
    %v1932 = vsel %vm1930, %v1886, 0
    %v1935 = vsel %vm1930, %v1887, 0
    %v1938 = vsel %vm1930, %v1888, 0
    %v1941 = vsel %vm1930, %v1889, 0
    %v1944 = vsel %vm1930, %v1890, 0
    %1946 = vmatprep.subr.bf16.mxu0 0
    %1947 = vmatpush1.bf16.msra.mxu0 %v1922
    %1948 = vmatprep.subr.bf16.mxu0 0
    %1949 = vmatpush1.bf16.msra.mxu0 %v1923
    %1950 = vmatprep.subr.bf16.mxu0 0
    %1951 = vmatpush1.bf16.msra.mxu0 %v1924
    %1952 = vmatprep.subr.bf16.mxu0 0
    %1953 = vmatpush1.bf16.msra.mxu0 %v1925
    %1954 = vmatprep.subr.bf16.mxu0 0
    %1955 = vmatpush1.bf16.msra.mxu0 0
    %1956 = vmatprep.subr.bf16.mxu0 0
    %1957 = vmatpush1.bf16.msra.mxu0 0
    %1958 = vmatprep.subr.bf16.mxu0 0
    %1959 = vmatpush1.bf16.msra.mxu0 0
    %1960 = vmatprep.subr.bf16.mxu0 0
    %1961 = vmatpush1.bf16.msra.mxu0 0
    %1962 = vmatprep.subr.bf16.mxu0 0
    %1963 = vmatpush1.bf16.msra.mxu0 0
    %1964 = vmatprep.subr.bf16.mxu0 0
    %1965 = vmatpush1.bf16.msra.mxu0 0
    %1966 = vmatprep.subr.bf16.mxu0 0
    %1967 = vmatpush1.bf16.msra.mxu0 0
    %1968 = vmatprep.subr.bf16.mxu0 0
    %1969 = vmatpush1.bf16.msra.mxu0 0
    %1970 = vmatprep.subr.bf16.mxu0 0
    %1971 = vmatpush1.bf16.msra.mxu0 0
    %1972 = vmatprep.subr.bf16.mxu0 0
    %1973 = vmatpush1.bf16.msra.mxu0 0
    %1974 = vmatprep.subr.bf16.mxu0 0
    %1975 = vmatpush1.bf16.msra.mxu0 0
    %1976 = vmatprep.subr.bf16.mxu0 0
    %1977 = vmatpush1.bf16.msra.mxu0 0
    %1978 = vmatprep.mubr.bf16.mxu0 0
    %1979 = vmatmul.mubr.bf16.gmra.mrb[0].mxu0 %v1932
    %v1980 = vpop.f32.mrb[0].mxu0
    %v1981 = vadd.f32 %v1904, %v1980
    %v1982 = vpop.f32.mrb[0].mxu0
    %v1983 = vpop.f32.mrb[0].mxu0
    %v1984 = vadd.f32 %v1904, %v1983
    %v1985 = vpop.f32.mrb[0].mxu0
    %1986 = vmatprep.mubr.bf16.mxu0 0
    %1987 = vmatmul.mubr.bf16.gmra.mrb[0].mxu0 %v1935
    %v1988 = vpop.f32.mrb[0].mxu0
    %v1989 = vadd.f32 %v1904, %v1988
    %v1990 = vpop.f32.mrb[0].mxu0
    %v1991 = vpop.f32.mrb[0].mxu0
    %v1992 = vadd.f32 %v1904, %v1991
    %v1993 = vpop.f32.mrb[0].mxu0
    %1994 = vmatprep.mubr.bf16.mxu0 0
    %1995 = vmatmul.mubr.bf16.gmra.mrb[0].mxu0 %v1938
    %v1996 = vpop.f32.mrb[0].mxu0
    %v1997 = vadd.f32 %v1904, %v1996
    %v1998 = vpop.f32.mrb[0].mxu0
    %v1999 = vpop.f32.mrb[0].mxu0
    %v2000 = vadd.f32 %v1904, %v1999
    %v2001 = vpop.f32.mrb[0].mxu0
    %2002 = vmatprep.mubr.bf16.mxu0 0
    %2003 = vmatmul.mubr.bf16.gmra.mrb[0].mxu0 %v1941
    %v2004 = vpop.f32.mrb[0].mxu0
    %v2005 = vadd.f32 %v1904, %v2004
    %v2006 = vpop.f32.mrb[0].mxu0
    %v2007 = vpop.f32.mrb[0].mxu0
    %v2008 = vadd.f32 %v1904, %v2007
    %v2009 = vpop.f32.mrb[0].mxu0
    %2010 = vmatprep.mubr.bf16.mxu0 0
    %2011 = vmatmul.mubr.bf16.gmra.mrb[0].mxu0 %v1944
    %v2012 = vpop.f32.mrb[0].mxu0
    %v2013 = vadd.f32 %v1904, %v2012
    %v2014 = vpop.f32.mrb[0].mxu0
    %v2015 = vpop.f32.mrb[0].mxu0
    %v2016 = vpop.f32.mrb[0].mxu0
    %2017 = vdwg.mxu0
    %v2018 = vld [vmem:[%s12] sm:$0x1]
    %v2019 = vld [vmem:[%s13] sm:$0x1]
    %v2020 = vsel %vm93, %v1981, 0.0
    %2021 = vadd.xlane.f32.xlu0 %v2020
    %v2022 = vpop.xlane.xlu0 %2021
    %v2023 = vsel %vm93, %v1984, 0.0
    %2024 = vadd.xlane.f32.xlu0 %v2023
    %v2025 = vpop.xlane.xlu0 %2024
    %v2026 = vsel %vm93, %v1989, 0.0
    %2027 = vadd.xlane.f32.xlu0 %v2026
    %v2028 = vpop.xlane.xlu0 %2027
    %v2029 = vsel %vm93, %v1992, 0.0
    %2030 = vadd.xlane.f32.xlu0 %v2029
    %v2031 = vpop.xlane.xlu0 %2030
    %v2032 = vsel %vm93, %v1997, 0.0
    %2033 = vadd.xlane.f32.xlu0 %v2032
    %v2034 = vpop.xlane.xlu0 %2033
    %v2035 = vsel %vm93, %v2000, 0.0
    %2036 = vadd.xlane.f32.xlu0 %v2035
    %v2037 = vpop.xlane.xlu0 %2036
    %v2038 = vsel %vm93, %v2005, 0.0
    %2039 = vadd.xlane.f32.xlu0 %v2038
    %v2040 = vpop.xlane.xlu0 %2039
    %v2041 = vsel %vm93, %v2008, 0.0
    %2042 = vadd.xlane.f32.xlu0 %v2041
    %v2043 = vpop.xlane.xlu0 %2042
    %v2044 = vsel %vm93, %v2013, 0.0
    %2045 = vadd.xlane.f32.xlu0 %v2044
    %v2046 = vpop.xlane.xlu0 %2045
    %v2047 = vmul.f32 %v2022, %v1604
    %v2048 = vmul.f32 %v2025, %v1604
    %v2049 = vmul.f32 %v2028, %v1604
    %v2050 = vmul.f32 %v2031, %v1604
    %v2051 = vmul.f32 %v2034, %v1604
    %v2052 = vmul.f32 %v2037, %v1604
    %v2053 = vmul.f32 %v2040, %v1604
    %v2054 = vmul.f32 %v2043, %v1604
    %v2055 = vmul.f32 %v2046, %v1604
    %v2056 = vsub.f32 %v1981, %v2047
    %v2057 = vsub.f32 %v1984, %v2048
    %v2058 = vsub.f32 %v1989, %v2049
    %v2059 = vsub.f32 %v1992, %v2050
    %v2060 = vsub.f32 %v1997, %v2051
    %v2061 = vsub.f32 %v2000, %v2052
    %v2062 = vsub.f32 %v2005, %v2053
    %v2063 = vsub.f32 %v2008, %v2054
    %v2064 = vsub.f32 %v2013, %v2055
    %v2065 = vmul.f32 %v2056, %v2056
    %v2066 = vmul.f32 %v2057, %v2057
    %v2067 = vmul.f32 %v2058, %v2058
    %v2068 = vmul.f32 %v2059, %v2059
    %v2069 = vmul.f32 %v2060, %v2060
    %v2070 = vmul.f32 %v2061, %v2061
    %v2071 = vmul.f32 %v2062, %v2062
    %v2072 = vmul.f32 %v2063, %v2063
    %v2073 = vmul.f32 %v2064, %v2064
    %v2074 = vsel %vm93, %v2065, 0.0
    %2075 = vadd.xlane.f32.xlu0 %v2074
    %v2076 = vpop.xlane.xlu0 %2075
    %v2077 = vsel %vm93, %v2066, 0.0
    %2078 = vadd.xlane.f32.xlu0 %v2077
    %v2079 = vpop.xlane.xlu0 %2078
    %v2080 = vsel %vm93, %v2067, 0.0
    %2081 = vadd.xlane.f32.xlu0 %v2080
    %v2082 = vpop.xlane.xlu0 %2081
    %v2083 = vsel %vm93, %v2068, 0.0
    %2084 = vadd.xlane.f32.xlu0 %v2083
    %v2085 = vpop.xlane.xlu0 %2084
    %v2086 = vsel %vm93, %v2069, 0.0
    %2087 = vadd.xlane.f32.xlu0 %v2086
    %v2088 = vpop.xlane.xlu0 %2087
    %v2089 = vsel %vm93, %v2070, 0.0
    %2090 = vadd.xlane.f32.xlu0 %v2089
    %v2091 = vpop.xlane.xlu0 %2090
    %v2092 = vsel %vm93, %v2071, 0.0
    %2093 = vadd.xlane.f32.xlu0 %v2092
    %v2094 = vpop.xlane.xlu0 %2093
    %v2095 = vsel %vm93, %v2072, 0.0
    %2096 = vadd.xlane.f32.xlu0 %v2095
    %v2097 = vpop.xlane.xlu0 %2096
    %v2098 = vsel %vm93, %v2073, 0.0
    %2099 = vadd.xlane.f32.xlu0 %v2098
    %v2100 = vpop.xlane.xlu0 %2099
    %v2101 = vmul.f32 %v2076, %v1604
    %v2102 = vmul.f32 %v2079, %v1604
    %v2103 = vmul.f32 %v2082, %v1604
    %v2104 = vmul.f32 %v2085, %v1604
    %v2105 = vmul.f32 %v2088, %v1604
    %v2106 = vmul.f32 %v2091, %v1604
    %v2107 = vmul.f32 %v2094, %v1604
    %v2108 = vmul.f32 %v2097, %v1604
    %v2109 = vmul.f32 %v2100, %v1604
    %v2110 = vadd.f32 %v2101, 1e-05
    %v2111 = vadd.f32 %v2102, 1e-05
    %v2112 = vadd.f32 %v2103, 1e-05
    %v2113 = vadd.f32 %v2104, 1e-05
    %v2114 = vadd.f32 %v2105, 1e-05
    %v2115 = vadd.f32 %v2106, 1e-05
    %v2116 = vadd.f32 %v2107, 1e-05
    %v2117 = vadd.f32 %v2108, 1e-05
    %v2118 = vadd.f32 %v2109, 1e-05
    %v2119 = vrsqrt.pop %v2110
    %v2120 = vrsqrt.pop %v2111
    %v2121 = vrsqrt.pop %v2112
    %v2122 = vrsqrt.pop %v2113
    %v2123 = vrsqrt.pop %v2114
    %v2124 = vrsqrt.pop %v2115
    %v2125 = vrsqrt.pop %v2116
    %v2126 = vrsqrt.pop %v2117
    %v2127 = vrsqrt.pop %v2118
    %v2128 = vmul.f32 %v2056, %v2119
    %v2129 = vmul.f32 %v2057, %v2120
    %v2130 = vmul.f32 %v2058, %v2121
    %v2131 = vmul.f32 %v2059, %v2122
    %v2132 = vmul.f32 %v2060, %v2123
    %v2133 = vmul.f32 %v2061, %v2124
    %v2134 = vmul.f32 %v2062, %v2125
    %v2135 = vmul.f32 %v2063, %v2126
    %v2136 = vmul.f32 %v2064, %v2127
    %v2138 = vlaneseq
    %v2139 = vshrl.u32 %v2138, 7
    %v2140 = vsub.s32 0, %v2139
    %v2141 = vrot.slane %v2018, %v2140
    %v2143 = vmul.f32 %v2128, %v2141
    %v2144 = vmul.f32 %v2129, %v2141
    %v2145 = vmul.f32 %v2130, %v2141
    %v2146 = vmul.f32 %v2131, %v2141
    %v2147 = vmul.f32 %v2132, %v2141
    %v2148 = vmul.f32 %v2133, %v2141
    %v2149 = vmul.f32 %v2134, %v2141
    %v2150 = vmul.f32 %v2135, %v2141
    %v2151 = vmul.f32 %v2136, %v2141
    %v2153 = vlaneseq
    %v2154 = vshrl.u32 %v2153, 7
    %v2155 = vsub.s32 0, %v2154
    %v2156 = vrot.slane %v2019, %v2155
    %v2158 = vadd.f32 %v2143, %v2156
    %v2159 = vadd.f32 %v2144, %v2156
    %v2160 = vadd.f32 %v2145, %v2156
    %v2161 = vadd.f32 %v2146, %v2156
    %v2162 = vadd.f32 %v2147, %v2156
    %v2163 = vadd.f32 %v2148, %v2156
    %v2164 = vadd.f32 %v2149, %v2156
    %v2165 = vadd.f32 %v2150, %v2156
    %v2166 = vadd.f32 %v2151, %v2156
    %v2167 = vadd.f32 %v1725, %v2158
    %v2168 = vadd.f32 %v1726, %v2159
    %v2169 = vadd.f32 %v1727, %v2160
    %v2170 = vadd.f32 %v1728, %v2161
    %v2171 = vadd.f32 %v1729, %v2162
    %v2172 = vadd.f32 %v1730, %v2163
    %v2173 = vadd.f32 %v1731, %v2164
    %v2174 = vadd.f32 %v1732, %v2165
    %v2175 = vadd.f32 %v1733, %v2166
    %2176 = vst.msk [vmem:[%s15] sm:$0xff] %vm93, %v2167
    %2177 = vst.msk [vmem:[%s15 + $0x8] sm:$0xff] %vm93, %v2168
    %2178 = vst.msk [vmem:[%s15 + $0x10] sm:$0xff] %vm93, %v2169
    %2179 = vst.msk [vmem:[%s15 + $0x18] sm:$0xff] %vm93, %v2170
    %2180 = vst.msk [vmem:[%s15 + $0x20] sm:$0xff] %vm93, %v2171
    %2181 = vst.msk [vmem:[%s15 + $0x28] sm:$0xff] %vm93, %v2172
    %2182 = vst.msk [vmem:[%s15 + $0x30] sm:$0xff] %vm93, %v2173
    %2183 = vst.msk [vmem:[%s15 + $0x38] sm:$0xff] %vm93, %v2174
    %2184 = vst.msk [vmem:[%s15 + $0x40] sm:$0xff] %vm93, %v2175
    // Predicated region
    $region66: #{swin_forward.8} parent=1 // pred_check
      _
    $region67: #{swin_forward.8} parent=1 // pred_check_branch
      %2186 = sbr.rel (0) target = $region69
    $region68: #{swin_forward.8} parent=1 // pred_region
      _
    $region69: #{swin_forward.8} parent=1 // pred_fallthru
      _
    // Predicated region
    $region70: #{swin_forward.8} parent=1 // pred_check
      _
    $region71: #{swin_forward.8} parent=1 // pred_check_branch
      %2188 = sbr.rel (0) target = $region73
    $region72: #{swin_forward.8} parent=1 // pred_region
      _
    $region73: #{swin_forward.8} parent=1 // pred_fallthru
      _
    %2189 = vsyncpa [#allocation3], 1

// kernel: swin_forward.10
$region0: #{swin_forward.10}
  #allocation0 [shape = 'u32[]', space=smem, size = 0x4, offset = 0x4, fixed_abs, tag = 'smem constant byte address 0x4 - core index']
  #allocation1 [shape = 'u32[144,128]{1,0:T(1,128)}', space=vmem, size = 0x12000, scoped, tag = 'internal scratch']
  %s0 = inlined_call_operand.vmem [shape: f32[18,64], index: 0, kind: input, shape index: {}]
  %s1 = inlined_call_operand.vmem [shape: bf16[64,32], index: 1, kind: input, shape index: {}]
  %s2 = inlined_call_operand.vmem [shape: f32[1,32], index: 2, kind: input, shape index: {}]
  %s3 = inlined_call_operand.vmem [shape: f32[1,32], index: 3, kind: input, shape index: {}]
  %s4 = inlined_call_operand.vmem [shape: f32[1,32], index: 4, kind: input, shape index: {}]
  %s5 = inlined_call_operand.vmem [shape: f32[18,32], index: 5, kind: output, shape index: {}]
  %s6 = sld [smem:[#allocation0]]
  $region30: #{swin_forward.10} parent=0
    _
  %s8 = ssub.s32 1, %s6
  %s9 = scalar_select 0, %s8, %s6
  // Predicated region
  $region2: #{swin_forward.10} parent=0 // pred_check
    _
  $region3: #{swin_forward.10} parent=0 // pred_check_branch
    %11 = sbr.rel (0) target = $region5
  $region4: #{swin_forward.10} parent=0 // pred_region
    _
  $region5: #{swin_forward.10} parent=0 // pred_fallthru
    _
  // Predicated region
  $region6: #{swin_forward.10} parent=0 // pred_check
    _
  $region7: #{swin_forward.10} parent=0 // pred_check_branch
    %13 = sbr.rel (0) target = $region9
  $region8: #{swin_forward.10} parent=0 // pred_region
    _
  $region9: #{swin_forward.10} parent=0 // pred_fallthru
    _
  // Predicated region
  $region10: #{swin_forward.10} parent=0 // pred_check
    _
  $region11: #{swin_forward.10} parent=0 // pred_check_branch
    %15 = sbr.rel (0) target = $region13
  $region12: #{swin_forward.10} parent=0 // pred_region
    _
  $region13: #{swin_forward.10} parent=0 // pred_fallthru
    _
  // Predicated region
  $region14: #{swin_forward.10} parent=0 // pred_check
    _
  $region15: #{swin_forward.10} parent=0 // pred_check_branch
    %17 = sbr.rel (0) target = $region17
  $region16: #{swin_forward.10} parent=0 // pred_region
    _
  $region17: #{swin_forward.10} parent=0 // pred_fallthru
    _
  // Predicated region
  $region18: #{swin_forward.10} parent=0 // pred_check
    _
  $region19: #{swin_forward.10} parent=0 // pred_check_branch
    %19 = sbr.rel (0) target = $region21
  $region20: #{swin_forward.10} parent=0 // pred_region
    _
  $region21: #{swin_forward.10} parent=0 // pred_fallthru
    _
  %v21 = vld [vmem:[%s0] sm:$0xff]
  %v22 = vld [vmem:[%s0 + $0x8] sm:$0xff]
  %v23 = vld [vmem:[%s0 + $0x10] sm:$0x3]
  %v24 = vpack.c.bf16 %v22, %v21
  %v25 = vpack.c.bf16 %v23, %v23
  %v26 = vld [vmem:[%s1] sm:$0xf]
  %v27 = vld [vmem:[%s1 + $0x4] sm:$0xf]
  %v28 = vld [vmem:[%s1 + $0x8] sm:$0xf]
  %v29 = vld [vmem:[%s1 + $0xc] sm:$0xf]
  %v30 = vld [vmem:[%s1 + $0x10] sm:$0xf]
  %v31 = vld [vmem:[%s1 + $0x14] sm:$0xf]
  %v32 = vld [vmem:[%s1 + $0x18] sm:$0xf]
  %v33 = vld [vmem:[%s1 + $0x1c] sm:$0xf]
  %v34 = vld [vmem:[%s2] sm:$0x1]
  %v36 = vlaneseq
  %v37 = vshrl.u32 %v36, 7
  %v38 = vsub.s32 0, %v37
  %v39 = vrot.slane %v34, %v38
  %v49 = vunpack.c.l.b16 %v26
  %v50 = vunpack.c.l.b16 %v27
  %v51 = vunpack.c.l.b16 %v28
  %v52 = vunpack.c.l.b16 %v29
  %v53 = vunpack.c.l.b16 %v30
  %v54 = vunpack.c.l.b16 %v31
  %v55 = vunpack.c.l.b16 %v32
  %v56 = vunpack.c.l.b16 %v33
  %v57 = vpack.c.b16 %v50, %v49
  %v58 = vpack.c.b16 %v52, %v51
  %v59 = vpack.c.b16 %v54, %v53
  %v60 = vpack.c.b16 %v56, %v55
  %vm65 = vcmask 523264
  %v67 = vsel %vm65, %v24, 0
  %v70 = vsel %vm65, %v25, 0
  %72 = vmatprep.subr.bf16.mxu0 0
  %73 = vmatpush1.bf16.msra.mxu0 %v57
  %74 = vmatprep.subr.bf16.mxu0 0
  %75 = vmatpush1.bf16.msra.mxu0 %v58
  %76 = vmatprep.subr.bf16.mxu0 0
  %77 = vmatpush1.bf16.msra.mxu0 %v59
  %78 = vmatprep.subr.bf16.mxu0 0
  %79 = vmatpush1.bf16.msra.mxu0 %v60
  %80 = vmatprep.subr.bf16.mxu0 0
  %81 = vmatpush1.bf16.msra.mxu0 0
  %82 = vmatprep.subr.bf16.mxu0 0
  %83 = vmatpush1.bf16.msra.mxu0 0
  %84 = vmatprep.subr.bf16.mxu0 0
  %85 = vmatpush1.bf16.msra.mxu0 0
  %86 = vmatprep.subr.bf16.mxu0 0
  %87 = vmatpush1.bf16.msra.mxu0 0
  %88 = vmatprep.subr.bf16.mxu0 0
  %89 = vmatpush1.bf16.msra.mxu0 0
  %90 = vmatprep.subr.bf16.mxu0 0
  %91 = vmatpush1.bf16.msra.mxu0 0
  %92 = vmatprep.subr.bf16.mxu0 0
  %93 = vmatpush1.bf16.msra.mxu0 0
  %94 = vmatprep.subr.bf16.mxu0 0
  %95 = vmatpush1.bf16.msra.mxu0 0
  %96 = vmatprep.subr.bf16.mxu0 0
  %97 = vmatpush1.bf16.msra.mxu0 0
  %98 = vmatprep.subr.bf16.mxu0 0
  %99 = vmatpush1.bf16.msra.mxu0 0
  %100 = vmatprep.subr.bf16.mxu0 0
  %101 = vmatpush1.bf16.msra.mxu0 0
  %102 = vmatprep.subr.bf16.mxu0 0
  %103 = vmatpush1.bf16.msra.mxu0 0
  %104 = vmatprep.mubr.bf16.mxu0 0
  %105 = vmatmul.mubr.bf16.gmra.mrb[0].mxu0 %v67
  %v106 = vpop.f32.mrb[0].mxu0
  %v107 = vadd.f32 %v39, %v106
  %v108 = vpop.f32.mrb[0].mxu0
  %v109 = vpop.f32.mrb[0].mxu0
  %v110 = vadd.f32 %v39, %v109
  %v111 = vpop.f32.mrb[0].mxu0
  %112 = vmatprep.mubr.bf16.mxu0 0
  %113 = vmatmul.mubr.bf16.gmra.mrb[0].mxu0 %v70
  %v114 = vpop.f32.mrb[0].mxu0
  %v115 = vadd.f32 %v39, %v114
  %v116 = vpop.f32.mrb[0].mxu0
  %v117 = vpop.f32.mrb[0].mxu0
  %v118 = vpop.f32.mrb[0].mxu0
  %119 = vdwg.mxu0
  %v120 = vld [vmem:[%s3] sm:$0x1]
  %v121 = vld [vmem:[%s4] sm:$0x1]
  %vm122 = vcmask 261120
  %v123 = vsel %vm122, %v107, 0.0
  %124 = vadd.xlane.f32.xlu0 %v123
  %v125 = vpop.xlane.xlu0 %124
  %v126 = vsel %vm122, %v110, 0.0
  %127 = vadd.xlane.f32.xlu0 %v126
  %v128 = vpop.xlane.xlu0 %127
  %vm129 = vcmask 254976
  %v130 = vsel %vm129, %v115, 0.0
  %131 = vadd.xlane.f32.xlu0 %v130
  %v132 = vpop.xlane.xlu0 %131
  %v133 = vrcp.pop 32.0
  %v134 = vmul.f32 %v125, %v133
  %v135 = vmul.f32 %v128, %v133
  %v136 = vmul.f32 %v132, %v133
  %v137 = vsub.f32 %v107, %v134
  %v138 = vsub.f32 %v110, %v135
  %v139 = vsub.f32 %v115, %v136
  %v140 = vmul.f32 %v137, %v137
  %v141 = vmul.f32 %v138, %v138
  %v142 = vmul.f32 %v139, %v139
  %v143 = vsel %vm122, %v140, 0.0
  %144 = vadd.xlane.f32.xlu0 %v143
  %v145 = vpop.xlane.xlu0 %144
  %v146 = vsel %vm122, %v141, 0.0
  %147 = vadd.xlane.f32.xlu0 %v146
  %v148 = vpop.xlane.xlu0 %147
  %v149 = vsel %vm129, %v142, 0.0
  %150 = vadd.xlane.f32.xlu0 %v149
  %v151 = vpop.xlane.xlu0 %150
  %v152 = vmul.f32 %v145, %v133
  %v153 = vmul.f32 %v148, %v133
  %v154 = vmul.f32 %v151, %v133
  %v155 = vadd.f32 %v152, 1e-05
  %v156 = vadd.f32 %v153, 1e-05
  %v157 = vadd.f32 %v154, 1e-05
  %v158 = vrsqrt.pop %v155
  %v159 = vrsqrt.pop %v156
  %v160 = vrsqrt.pop %v157
  %v161 = vmul.f32 %v137, %v158
  %v162 = vmul.f32 %v138, %v159
  %v163 = vmul.f32 %v139, %v160
  %v165 = vlaneseq
  %v166 = vshrl.u32 %v165, 7
  %v167 = vsub.s32 0, %v166
  %v168 = vrot.slane %v120, %v167
  %v170 = vmul.f32 %v161, %v168
  %v171 = vmul.f32 %v162, %v168
  %v172 = vmul.f32 %v163, %v168
  %v174 = vlaneseq
  %v175 = vshrl.u32 %v174, 7
  %v176 = vsub.s32 0, %v175
  %v177 = vrot.slane %v121, %v176
  %v179 = vadd.f32 %v170, %v177
  %v180 = vadd.f32 %v171, %v177
  %v181 = vadd.f32 %v172, %v177
  %182 = vst.msk [vmem:[%s5] sm:$0xff] %vm122, %v179
  %183 = vst.msk [vmem:[%s5 + $0x8] sm:$0xff] %vm122, %v180
  %184 = vst.msk [vmem:[%s5 + $0x10] sm:$0x3] %vm129, %v181
  // Predicated region
  $region22: #{swin_forward.10} parent=0 // pred_check
    _
  $region23: #{swin_forward.10} parent=0 // pred_check_branch
    %186 = sbr.rel (0) target = $region25
  $region24: #{swin_forward.10} parent=0 // pred_region
    _
  $region25: #{swin_forward.10} parent=0 // pred_fallthru
    _
  // Predicated region
  $region26: #{swin_forward.10} parent=0 // pred_check
    _
  $region27: #{swin_forward.10} parent=0 // pred_check_branch
    %188 = sbr.rel (0) target = $region29
  $region28: #{swin_forward.10} parent=0 // pred_region
    _
  $region29: #{swin_forward.10} parent=0 // pred_fallthru
    _

// kernel: swin_forward.13
$region0: #{swin_forward.13}
  #allocation0 [shape = 'u32[]', space=smem, size = 0x4, offset = 0x4, fixed_abs, tag = 'smem constant byte address 0x4 - core index']
  #allocation1 [shape = 'u32[144,128]{1,0:T(1,128)}', space=vmem, size = 0x12000, scoped, tag = 'internal scratch']
  %s0 = inlined_call_operand.vmem [shape: f32[18,32], index: 0, kind: input, shape index: {}]
  %s1 = inlined_call_operand.vmem [shape: f32[1,32], index: 1, kind: input, shape index: {}]
  %s2 = inlined_call_operand.vmem [shape: f32[1,32], index: 2, kind: input, shape index: {}]
  %s3 = inlined_call_operand.vmem [shape: bf16[32,8], index: 3, kind: input, shape index: {}]
  %s4 = inlined_call_operand.vmem [shape: f32[1,8], index: 4, kind: input, shape index: {}]
  %s5 = inlined_call_operand.vmem [shape: f32[18,8], index: 5, kind: output, shape index: {}]
  %s6 = sld [smem:[#allocation0]]
  $region30: #{swin_forward.13} parent=0
    _
  %s8 = ssub.s32 1, %s6
  %s9 = scalar_select 0, %s8, %s6
  // Predicated region
  $region2: #{swin_forward.13} parent=0 // pred_check
    _
  $region3: #{swin_forward.13} parent=0 // pred_check_branch
    %11 = sbr.rel (0) target = $region5
  $region4: #{swin_forward.13} parent=0 // pred_region
    _
  $region5: #{swin_forward.13} parent=0 // pred_fallthru
    _
  // Predicated region
  $region6: #{swin_forward.13} parent=0 // pred_check
    _
  $region7: #{swin_forward.13} parent=0 // pred_check_branch
    %13 = sbr.rel (0) target = $region9
  $region8: #{swin_forward.13} parent=0 // pred_region
    _
  $region9: #{swin_forward.13} parent=0 // pred_fallthru
    _
  // Predicated region
  $region10: #{swin_forward.13} parent=0 // pred_check
    _
  $region11: #{swin_forward.13} parent=0 // pred_check_branch
    %15 = sbr.rel (0) target = $region13
  $region12: #{swin_forward.13} parent=0 // pred_region
    _
  $region13: #{swin_forward.13} parent=0 // pred_fallthru
    _
  // Predicated region
  $region14: #{swin_forward.13} parent=0 // pred_check
    _
  $region15: #{swin_forward.13} parent=0 // pred_check_branch
    %17 = sbr.rel (0) target = $region17
  $region16: #{swin_forward.13} parent=0 // pred_region
    _
  $region17: #{swin_forward.13} parent=0 // pred_fallthru
    _
  // Predicated region
  $region18: #{swin_forward.13} parent=0 // pred_check
    _
  $region19: #{swin_forward.13} parent=0 // pred_check_branch
    %19 = sbr.rel (0) target = $region21
  $region20: #{swin_forward.13} parent=0 // pred_region
    _
  $region21: #{swin_forward.13} parent=0 // pred_fallthru
    _
  %v21 = vld [vmem:[%s0] sm:$0xff]
  %v22 = vld [vmem:[%s0 + $0x8] sm:$0xff]
  %v23 = vld [vmem:[%s0 + $0x10] sm:$0x3]
  %v24 = vld [vmem:[%s1] sm:$0x1]
  %v25 = vld [vmem:[%s2] sm:$0x1]
  %vm26 = vcmask 261120
  %v27 = vsel %vm26, %v21, 0.0
  %28 = vadd.xlane.f32.xlu0 %v27
  %v29 = vpop.xlane.xlu0 %28
  %v30 = vsel %vm26, %v22, 0.0
  %31 = vadd.xlane.f32.xlu0 %v30
  %v32 = vpop.xlane.xlu0 %31
  %vm33 = vcmask 254976
  %v34 = vsel %vm33, %v23, 0.0
  %35 = vadd.xlane.f32.xlu0 %v34
  %v36 = vpop.xlane.xlu0 %35
  %v37 = vrcp.pop 32.0
  %v38 = vmul.f32 %v29, %v37
  %v39 = vmul.f32 %v32, %v37
  %v40 = vmul.f32 %v36, %v37
  %v41 = vsub.f32 %v21, %v38
  %v42 = vsub.f32 %v22, %v39
  %v43 = vsub.f32 %v23, %v40
  %v44 = vmul.f32 %v41, %v41
  %v45 = vmul.f32 %v42, %v42
  %v46 = vmul.f32 %v43, %v43
  %v47 = vsel %vm26, %v44, 0.0
  %48 = vadd.xlane.f32.xlu0 %v47
  %v49 = vpop.xlane.xlu0 %48
  %v50 = vsel %vm26, %v45, 0.0
  %51 = vadd.xlane.f32.xlu0 %v50
  %v52 = vpop.xlane.xlu0 %51
  %v53 = vsel %vm33, %v46, 0.0
  %54 = vadd.xlane.f32.xlu0 %v53
  %v55 = vpop.xlane.xlu0 %54
  %v56 = vmul.f32 %v49, %v37
  %v57 = vmul.f32 %v52, %v37
  %v58 = vmul.f32 %v55, %v37
  %v59 = vadd.f32 %v56, 1e-05
  %v60 = vadd.f32 %v57, 1e-05
  %v61 = vadd.f32 %v58, 1e-05
  %v62 = vrsqrt.pop %v59
  %v63 = vrsqrt.pop %v60
  %v64 = vrsqrt.pop %v61
  %v65 = vmul.f32 %v41, %v62
  %v66 = vmul.f32 %v42, %v63
  %v67 = vmul.f32 %v43, %v64
  %v69 = vlaneseq
  %v70 = vshrl.u32 %v69, 7
  %v71 = vsub.s32 0, %v70
  %v72 = vrot.slane %v24, %v71
  %v74 = vmul.f32 %v65, %v72
  %v75 = vmul.f32 %v66, %v72
  %v76 = vmul.f32 %v67, %v72
  %v78 = vlaneseq
  %v79 = vshrl.u32 %v78, 7
  %v80 = vsub.s32 0, %v79
  %v81 = vrot.slane %v25, %v80
  %v83 = vadd.f32 %v74, %v81
  %v84 = vadd.f32 %v75, %v81
  %v85 = vadd.f32 %v76, %v81
  %v86 = vpack.c.bf16 %v84, %v83
  %v87 = vpack.c.bf16 %v85, %v85
  %v88 = vld [vmem:[%s3] sm:$0xf]
  %v89 = vld [vmem:[%s3 + $0x4] sm:$0xf]
  %v90 = vld [vmem:[%s3 + $0x8] sm:$0xf]
  %v91 = vld [vmem:[%s3 + $0xc] sm:$0xf]
  %v92 = vld [vmem:[%s4] sm:$0x1]
  %v94 = vlaneseq
  %v95 = vshrl.u32 %v94, 7
  %v96 = vsub.s32 0, %v95
  %v97 = vrot.slane %v92, %v96
  %v103 = vunpack.c.l.b16 %v88
  %v104 = vunpack.c.l.b16 %v89
  %v105 = vunpack.c.l.b16 %v90
  %v106 = vunpack.c.l.b16 %v91
  %v107 = vpack.c.b16 %v104, %v103
  %v108 = vpack.c.b16 %v106, %v105
  %v112 = vsel %vm26, %v86, 0
  %v115 = vsel %vm26, %v87, 0
  %117 = vmatprep.subr.bf16.mxu0 0
  %118 = vmatpush1.bf16.msra.mxu0 %v107
  %119 = vmatprep.subr.bf16.mxu0 0
  %120 = vmatpush1.bf16.msra.mxu0 %v108
  %121 = vmatprep.subr.bf16.mxu0 0
  %122 = vmatpush1.bf16.msra.mxu0 0
  %123 = vmatprep.subr.bf16.mxu0 0
  %124 = vmatpush1.bf16.msra.mxu0 0
  %125 = vmatprep.subr.bf16.mxu0 0
  %126 = vmatpush1.bf16.msra.mxu0 0
  %127 = vmatprep.subr.bf16.mxu0 0
  %128 = vmatpush1.bf16.msra.mxu0 0
  %129 = vmatprep.subr.bf16.mxu0 0
  %130 = vmatpush1.bf16.msra.mxu0 0
  %131 = vmatprep.subr.bf16.mxu0 0
  %132 = vmatpush1.bf16.msra.mxu0 0
  %133 = vmatprep.subr.bf16.mxu0 0
  %134 = vmatpush1.bf16.msra.mxu0 0
  %135 = vmatprep.subr.bf16.mxu0 0
  %136 = vmatpush1.bf16.msra.mxu0 0
  %137 = vmatprep.subr.bf16.mxu0 0
  %138 = vmatpush1.bf16.msra.mxu0 0
  %139 = vmatprep.subr.bf16.mxu0 0
  %140 = vmatpush1.bf16.msra.mxu0 0
  %141 = vmatprep.subr.bf16.mxu0 0
  %142 = vmatpush1.bf16.msra.mxu0 0
  %143 = vmatprep.subr.bf16.mxu0 0
  %144 = vmatpush1.bf16.msra.mxu0 0
  %145 = vmatprep.subr.bf16.mxu0 0
  %146 = vmatpush1.bf16.msra.mxu0 0
  %147 = vmatprep.subr.bf16.mxu0 0
  %148 = vmatpush1.bf16.msra.mxu0 0
  %149 = vmatprep.mubr.bf16.mxu0 0
  %150 = vmatmul.mubr.bf16.gmra.mrb[0].mxu0 %v112
  %v151 = vpop.f32.mrb[0].mxu0
  %v152 = vadd.f32 %v97, %v151
  %v153 = vpop.f32.mrb[0].mxu0
  %v154 = vpop.f32.mrb[0].mxu0
  %v155 = vadd.f32 %v97, %v154
  %v156 = vpop.f32.mrb[0].mxu0
  %157 = vmatprep.mubr.bf16.mxu0 0
  %158 = vmatmul.mubr.bf16.gmra.mrb[0].mxu0 %v115
  %v159 = vpop.f32.mrb[0].mxu0
  %v160 = vadd.f32 %v97, %v159
  %v161 = vpop.f32.mrb[0].mxu0
  %v162 = vpop.f32.mrb[0].mxu0
  %v163 = vpop.f32.mrb[0].mxu0
  %164 = vdwg.mxu0
  %vm165 = vcmask 64512
  %166 = vst.msk [vmem:[%s5] sm:$0xff] %vm165, %v152
  %167 = vst.msk [vmem:[%s5 + $0x8] sm:$0xff] %vm165, %v155
  %vm168 = vcmask 58368
  %169 = vst.msk [vmem:[%s5 + $0x10] sm:$0x3] %vm168, %v160
  // Predicated region
  $region22: #{swin_forward.13} parent=0 // pred_check
    _
  $region23: #{swin_forward.13} parent=0 // pred_check_branch
    %171 = sbr.rel (0) target = $region25
  $region24: #{swin_forward.13} parent=0 // pred_region
    _
  $region25: #{swin_forward.13} parent=0 // pred_fallthru
    _
  // Predicated region
  $region26: #{swin_forward.13} parent=0 // pred_check
    _
  $region27: #{swin_forward.13} parent=0 // pred_check_branch
    %173 = sbr.rel (0) target = $region29
  $region28: #{swin_forward.13} parent=0 // pred_region
    _
  $region29: #{swin_forward.13} parent=0 // pred_fallthru
    _

// kernel: swin_forward.11
$region0: #{swin_forward.11}
  #allocation0 [shape = 'u32[]', space=smem, size = 0x4, offset = 0x4, fixed_abs, tag = 'smem constant byte address 0x4 - core index']
  #allocation1 [shape = 'u32[144,128]{1,0:T(1,128)}', space=vmem, size = 0x12000, scoped, tag = 'internal scratch']
  %s0 = inlined_call_operand.vmem [shape: f32[18,32], index: 0, kind: input, shape index: {}]
  %s1 = inlined_call_operand.vmem [shape: bf16[32,96], index: 1, kind: input, shape index: {}]
  %s2 = inlined_call_operand.vmem [shape: f32[1,96], index: 2, kind: input, shape index: {}]
  %s3 = inlined_call_operand.vmem [shape: bf16[4,8,32], index: 3, kind: input, shape index: {}]
  %s4 = inlined_call_operand.vmem [shape: f32[1,32], index: 4, kind: input, shape index: {}]
  %s5 = inlined_call_operand.vmem [shape: f32[4,18,18], index: 5, kind: input, shape index: {}]
  %s6 = inlined_call_operand.vmem [shape: f32[1,32], index: 6, kind: input, shape index: {}]
  %s7 = inlined_call_operand.vmem [shape: f32[1,32], index: 7, kind: input, shape index: {}]
  %s8 = inlined_call_operand.vmem [shape: bf16[32,128], index: 8, kind: input, shape index: {}]
  %s9 = inlined_call_operand.vmem [shape: f32[1,128], index: 9, kind: input, shape index: {}]
  %s10 = inlined_call_operand.vmem [shape: bf16[128,32], index: 10, kind: input, shape index: {}]
  %s11 = inlined_call_operand.vmem [shape: f32[1,32], index: 11, kind: input, shape index: {}]
  %s12 = inlined_call_operand.vmem [shape: f32[1,32], index: 12, kind: input, shape index: {}]
  %s13 = inlined_call_operand.vmem [shape: f32[1,32], index: 13, kind: input, shape index: {}]
  %s14 = inlined_call_operand.vmem [shape: f32[4], index: 14, kind: input, shape index: {}]
  %s15 = inlined_call_operand.vmem [shape: f32[18,32], index: 15, kind: output, shape index: {}]
  %s16 = sld [smem:[#allocation0]]
  $region74: #{swin_forward.11} parent=0
    _
  %s18 = ssub.s32 1, %s16
  %s19 = scalar_select 0, %s18, %s16
  $region1: #{swin_forward.11} parent=0
    #allocation2 [shape = 'u8[512]{0}', space=smem, size = 0x200, scoped, tag = 'input window, operand 14, single buffered']
    #allocation3 [shape = 's32[1]{0}', space=sflag, size = 0x4, scoped, tag = 'scoped memory for swin_forward.11']
    %20 = vsyncpa [#allocation3], 0
    // Predicated region
    $region2: #{swin_forward.11} parent=1 // pred_check
      _
    $region3: #{swin_forward.11} parent=1 // pred_check_branch
      %22 = sbr.rel (0) target = $region5
    $region4: #{swin_forward.11} parent=1 // pred_region
      _
    $region5: #{swin_forward.11} parent=1 // pred_fallthru
      _
    // Predicated region
    $region6: #{swin_forward.11} parent=1 // pred_check
      _
    $region7: #{swin_forward.11} parent=1 // pred_check_branch
      %24 = sbr.rel (0) target = $region9
    $region8: #{swin_forward.11} parent=1 // pred_region
      _
    $region9: #{swin_forward.11} parent=1 // pred_fallthru
      _
    // Predicated region
    $region10: #{swin_forward.11} parent=1 // pred_check
      _
    $region11: #{swin_forward.11} parent=1 // pred_check_branch
      %26 = sbr.rel (0) target = $region13
    $region12: #{swin_forward.11} parent=1 // pred_region
      _
    $region13: #{swin_forward.11} parent=1 // pred_fallthru
      _
    // Predicated region
    $region14: #{swin_forward.11} parent=1 // pred_check
      _
    $region15: #{swin_forward.11} parent=1 // pred_check_branch
      %28 = sbr.rel (0) target = $region17
    $region16: #{swin_forward.11} parent=1 // pred_region
      _
    $region17: #{swin_forward.11} parent=1 // pred_fallthru
      _
    // Predicated region
    $region18: #{swin_forward.11} parent=1 // pred_check
      _
    $region19: #{swin_forward.11} parent=1 // pred_check_branch
      %30 = sbr.rel (0) target = $region21
    $region20: #{swin_forward.11} parent=1 // pred_region
      _
    $region21: #{swin_forward.11} parent=1 // pred_fallthru
      _
    // Predicated region
    $region22: #{swin_forward.11} parent=1 // pred_check
      _
    $region23: #{swin_forward.11} parent=1 // pred_check_branch
      %32 = sbr.rel (0) target = $region25
    $region24: #{swin_forward.11} parent=1 // pred_region
      _
    $region25: #{swin_forward.11} parent=1 // pred_fallthru
      _
    // Predicated region
    $region26: #{swin_forward.11} parent=1 // pred_check
      _
    $region27: #{swin_forward.11} parent=1 // pred_check_branch
      %34 = sbr.rel (0) target = $region29
    $region28: #{swin_forward.11} parent=1 // pred_region
      _
    $region29: #{swin_forward.11} parent=1 // pred_fallthru
      _
    // Predicated region
    $region30: #{swin_forward.11} parent=1 // pred_check
      _
    $region31: #{swin_forward.11} parent=1 // pred_check_branch
      %36 = sbr.rel (0) target = $region33
    $region32: #{swin_forward.11} parent=1 // pred_region
      _
    $region33: #{swin_forward.11} parent=1 // pred_fallthru
      _
    // Predicated region
    $region34: #{swin_forward.11} parent=1 // pred_check
      _
    $region35: #{swin_forward.11} parent=1 // pred_check_branch
      %38 = sbr.rel (0) target = $region37
    $region36: #{swin_forward.11} parent=1 // pred_region
      _
    $region37: #{swin_forward.11} parent=1 // pred_fallthru
      _
    // Predicated region
    $region38: #{swin_forward.11} parent=1 // pred_check
      _
    $region39: #{swin_forward.11} parent=1 // pred_check_branch
      %40 = sbr.rel (0) target = $region41
    $region40: #{swin_forward.11} parent=1 // pred_region
      _
    $region41: #{swin_forward.11} parent=1 // pred_fallthru
      _
    // Predicated region
    $region42: #{swin_forward.11} parent=1 // pred_check
      _
    $region43: #{swin_forward.11} parent=1 // pred_check_branch
      %42 = sbr.rel (0) target = $region45
    $region44: #{swin_forward.11} parent=1 // pred_region
      _
    $region45: #{swin_forward.11} parent=1 // pred_fallthru
      _
    // Predicated region
    $region46: #{swin_forward.11} parent=1 // pred_check
      _
    $region47: #{swin_forward.11} parent=1 // pred_check_branch
      %44 = sbr.rel (0) target = $region49
    $region48: #{swin_forward.11} parent=1 // pred_region
      _
    $region49: #{swin_forward.11} parent=1 // pred_fallthru
      _
    // Predicated region
    $region50: #{swin_forward.11} parent=1 // pred_check
      _
    $region51: #{swin_forward.11} parent=1 // pred_check_branch
      %46 = sbr.rel (0) target = $region53
    $region52: #{swin_forward.11} parent=1 // pred_region
      _
    $region53: #{swin_forward.11} parent=1 // pred_fallthru
      _
    // Predicated region
    $region54: #{swin_forward.11} parent=1 // pred_check
      _
    $region55: #{swin_forward.11} parent=1 // pred_check_branch
      %48 = sbr.rel (0) target = $region57
    $region56: #{swin_forward.11} parent=1 // pred_region
      _
    $region57: #{swin_forward.11} parent=1 // pred_fallthru
      _
    // Predicated region
    $region58: #{swin_forward.11} parent=1 // pred_check
      _
    $region59: #{swin_forward.11} parent=1 // pred_check_branch
      %50 = sbr.rel (0) target = $region61
    $region60: #{swin_forward.11} parent=1 // pred_region
      %s52 = ssub.s32 16, 16
      %53 = vsyncadd [#allocation3], %s52
      %s55 = sshll.u32 %s14, 4
      %s56 = int_to_ptr.vmem [resolvable:$true] %s55
      %58 = dma.vmem_to_smem %s56, 16, [#allocation2], [#allocation3]
    $region61: #{swin_forward.11} parent=1 // pred_fallthru
      _
    // Predicated region
    $region62: #{swin_forward.11} parent=1 // pred_check
      _
    $region63: #{swin_forward.11} parent=1 // pred_check_branch
      %60 = sbr.rel (0) target = $region65
    $region64: #{swin_forward.11} parent=1 // pred_region
      %61 = dma.done [#allocation3], 16
    $region65: #{swin_forward.11} parent=1 // pred_fallthru
      _
    %62 = sfence
    %v64 = vld [vmem:[%s0] sm:$0xff]
    %v65 = vld [vmem:[%s0 + $0x8] sm:$0xff]
    %v66 = vld [vmem:[%s0 + $0x10] sm:$0x3]
    %v67 = vpack.c.bf16 %v65, %v64
    %v68 = vpack.c.bf16 %v66, %v66
    %v69 = vld [vmem:[%s1] sm:$0xf]
    %v70 = vld [vmem:[%s1 + $0x4] sm:$0xf]
    %v71 = vld [vmem:[%s1 + $0x8] sm:$0xf]
    %v72 = vld [vmem:[%s1 + $0xc] sm:$0xf]
    %v73 = vld [vmem:[%s2] sm:$0x1]
    %v75 = vlaneseq
    %v76 = vshrl.u32 %v75, 7
    %v77 = vsub.s32 0, %v76
    %v78 = vrot.slane %v73, %v77
    %v84 = vunpack.c.l.b16 %v69
    %v85 = vunpack.c.l.b16 %v70
    %v86 = vunpack.c.l.b16 %v71
    %v87 = vunpack.c.l.b16 %v72
    %v88 = vpack.c.b16 %v85, %v84
    %v89 = vpack.c.b16 %v87, %v86
    %vm92 = vcmask 261120
    %v94 = vsel %vm92, %v67, 0
    %v97 = vsel %vm92, %v68, 0
    %99 = vmatprep.subr.bf16.mxu0 0
    %100 = vmatpush1.bf16.msra.mxu0 %v88
    %101 = vmatprep.subr.bf16.mxu0 0
    %102 = vmatpush1.bf16.msra.mxu0 %v89
    %103 = vmatprep.subr.bf16.mxu0 0
    %104 = vmatpush1.bf16.msra.mxu0 0
    %105 = vmatprep.subr.bf16.mxu0 0
    %106 = vmatpush1.bf16.msra.mxu0 0
    %107 = vmatprep.subr.bf16.mxu0 0
    %108 = vmatpush1.bf16.msra.mxu0 0
    %109 = vmatprep.subr.bf16.mxu0 0
    %110 = vmatpush1.bf16.msra.mxu0 0
    %111 = vmatprep.subr.bf16.mxu0 0
    %112 = vmatpush1.bf16.msra.mxu0 0
    %113 = vmatprep.subr.bf16.mxu0 0
    %114 = vmatpush1.bf16.msra.mxu0 0
    %115 = vmatprep.subr.bf16.mxu0 0
    %116 = vmatpush1.bf16.msra.mxu0 0
    %117 = vmatprep.subr.bf16.mxu0 0
    %118 = vmatpush1.bf16.msra.mxu0 0
    %119 = vmatprep.subr.bf16.mxu0 0
    %120 = vmatpush1.bf16.msra.mxu0 0
    %121 = vmatprep.subr.bf16.mxu0 0
    %122 = vmatpush1.bf16.msra.mxu0 0
    %123 = vmatprep.subr.bf16.mxu0 0
    %124 = vmatpush1.bf16.msra.mxu0 0
    %125 = vmatprep.subr.bf16.mxu0 0
    %126 = vmatpush1.bf16.msra.mxu0 0
    %127 = vmatprep.subr.bf16.mxu0 0
    %128 = vmatpush1.bf16.msra.mxu0 0
    %129 = vmatprep.subr.bf16.mxu0 0
    %130 = vmatpush1.bf16.msra.mxu0 0
    %131 = vmatprep.mubr.bf16.mxu0 0
    %132 = vmatmul.mubr.bf16.gmra.mrb[0].mxu0 %v94
    %v133 = vpop.f32.mrb[0].mxu0
    %v134 = vadd.f32 %v78, %v133
    %v135 = vpop.f32.mrb[0].mxu0
    %v136 = vpop.f32.mrb[0].mxu0
    %v137 = vadd.f32 %v78, %v136
    %v138 = vpop.f32.mrb[0].mxu0
    %139 = vmatprep.mubr.bf16.mxu0 0
    %140 = vmatmul.mubr.bf16.gmra.mrb[0].mxu0 %v97
    %v141 = vpop.f32.mrb[0].mxu0
    %v142 = vadd.f32 %v78, %v141
    %v143 = vpop.f32.mrb[0].mxu0
    %v144 = vpop.f32.mrb[0].mxu0
    %v145 = vpop.f32.mrb[0].mxu0
    %146 = vdwg.mxu0
    %v147 = vmul.f32 %v134, %v134
    %v148 = vmul.f32 %v137, %v137
    %v149 = vmul.f32 %v142, %v142
    %vm150 = vcmask 64512
    %v151 = vsel %vm150, %v147, 0.0
    %152 = vadd.xlane.f32.xlu0 %v151
    %v153 = vpop.xlane.xlu0 %152
    %v154 = vsel %vm150, %v148, 0.0
    %155 = vadd.xlane.f32.xlu0 %v154
    %v156 = vpop.xlane.xlu0 %155
    %vm157 = vcmask 58368
    %v158 = vsel %vm157, %v149, 0.0
    %159 = vadd.xlane.f32.xlu0 %v158
    %v160 = vpop.xlane.xlu0 %159
    %v161 = vmax.f32 %v153, 1e-24
    %v162 = vmax.f32 %v156, 1e-24
    %v163 = vmax.f32 %v160, 1e-24
    %v164 = vrsqrt.pop %v161
    %v165 = vrsqrt.pop %v162
    %v166 = vrsqrt.pop %v163
    %v167 = vmul.f32 %v134, %v164
    %v168 = vmul.f32 %v137, %v165
    %v169 = vmul.f32 %v142, %v166
    %173 = vrot.lane.b32.xlu0 %v147, 96
    %v174 = vpop.permute.xlu0 %173
    %175 = vrot.lane.b32.xlu0 %v148, 96
    %v176 = vpop.permute.xlu0 %175
    %177 = vrot.lane.b32.xlu0 %v149, 96
    %v178 = vpop.permute.xlu0 %177
    %v182 = vsel %vm150, %v174, 0.0
    %183 = vadd.xlane.f32.xlu0 %v182
    %v184 = vpop.xlane.xlu0 %183
    %v185 = vsel %vm150, %v176, 0.0
    %186 = vadd.xlane.f32.xlu0 %v185
    %v187 = vpop.xlane.xlu0 %186
    %v188 = vsel %vm157, %v178, 0.0
    %189 = vadd.xlane.f32.xlu0 %v188
    %v190 = vpop.xlane.xlu0 %189
    %v191 = vmax.f32 %v184, 1e-24
    %v192 = vmax.f32 %v187, 1e-24
    %v193 = vmax.f32 %v190, 1e-24
    %v194 = vrsqrt.pop %v191
    %v195 = vrsqrt.pop %v192
    %v196 = vrsqrt.pop %v193
    %v197 = vmul.f32 %v134, %v194
    %v198 = vmul.f32 %v137, %v195
    %v199 = vmul.f32 %v142, %v196
    %203 = vrot.lane.b32.xlu0 %v197, 96
    %v204 = vpop.permute.xlu0 %203
    %205 = vrot.lane.b32.xlu0 %v198, 96
    %v206 = vpop.permute.xlu0 %205
    %207 = vrot.lane.b32.xlu0 %v199, 96
    %v208 = vpop.permute.xlu0 %207
    %v210 = vsel %vm150, %v167, 0
    %v213 = vsel %vm150, %v168, 0
    %v216 = vsel %vm150, %v169, 0
    %v218 = vsel %vm150, %v204, 0
    %v220 = vsel %vm150, %v206, 0
    %v222 = vsel %vm150, %v208, 0
    %224 = vmatprep.subr.mxu0 0.0
    %225 = vmatpush1.xpose.msra.mxu0 %v218
    %226 = vmatprep.subr.mxu0 0.0
    %227 = vmatpush1.xpose.msra.mxu0 %v220
    %228 = vmatprep.subr.mxu0 0.0
    %229 = vmatpush1.xpose.msra.mxu0 %v222
    %230 = vmatprep.subr.mxu0 0.0
    %231 = vmatpush1.xpose.msra.mxu0 0.0
    %232 = vmatprep.subr.mxu0 0.0
    %233 = vmatpush1.xpose.msra.mxu0 0.0
    %234 = vmatprep.subr.mxu0 0.0
    %235 = vmatpush1.xpose.msra.mxu0 0.0
    %236 = vmatprep.subr.mxu0 0.0
    %237 = vmatpush1.xpose.msra.mxu0 0.0
    %238 = vmatprep.subr.mxu0 0.0
    %239 = vmatpush1.xpose.msra.mxu0 0.0
    %240 = vmatprep.subr.mxu0 0.0
    %241 = vmatpush1.xpose.msra.mxu0 0.0
    %242 = vmatprep.subr.mxu0 0.0
    %243 = vmatpush1.xpose.msra.mxu0 0.0
    %244 = vmatprep.subr.mxu0 0.0
    %245 = vmatpush1.xpose.msra.mxu0 0.0
    %246 = vmatprep.subr.mxu0 0.0
    %247 = vmatpush1.xpose.msra.mxu0 0.0
    %248 = vmatprep.subr.mxu0 0.0
    %249 = vmatpush1.xpose.msra.mxu0 0.0
    %250 = vmatprep.subr.mxu0 0.0
    %251 = vmatpush1.xpose.msra.mxu0 0.0
    %252 = vmatprep.subr.mxu0 0.0
    %253 = vmatpush1.xpose.msra.mxu0 0.0
    %254 = vmatprep.subr.mxu0 0.0
    %255 = vmatpush1.xpose.msra.mxu0 0.0
    %256 = vmatprep.subr.mxu0 0.0
    %257 = vmatpush1.xpose.msra.mxu0 0.0
    %258 = vmatprep.subr.mxu0 0.0
    %259 = vmatpush1.xpose.msra.mxu0 0.0
    %260 = vmatprep.subr.mxu0 0.0
    %261 = vmatpush1.xpose.msra.mxu0 0.0
    %262 = vmatprep.subr.mxu0 0.0
    %263 = vmatpush1.xpose.msra.mxu0 0.0
    %264 = vmatprep.subr.mxu0 0.0
    %265 = vmatpush1.xpose.msra.mxu0 0.0
    %266 = vmatprep.subr.mxu0 0.0
    %267 = vmatpush1.xpose.msra.mxu0 0.0
    %268 = vmatprep.subr.mxu0 0.0
    %269 = vmatpush1.xpose.msra.mxu0 0.0
    %270 = vmatprep.subr.mxu0 0.0
    %271 = vmatpush1.xpose.msra.mxu0 0.0
    %272 = vmatprep.subr.mxu0 0.0
    %273 = vmatpush1.xpose.msra.mxu0 0.0
    %274 = vmatprep.subr.mxu0 0.0
    %275 = vmatpush1.xpose.msra.mxu0 0.0
    %276 = vmatprep.subr.mxu0 0.0
    %277 = vmatpush1.xpose.msra.mxu0 0.0
    %278 = vmatprep.subr.mxu0 0.0
    %279 = vmatpush1.xpose.msra.mxu0 0.0
    %280 = vmatprep.subr.mxu0 0.0
    %281 = vmatpush1.xpose.msra.mxu0 0.0
    %282 = vmatprep.subr.mxu0 0.0
    %283 = vmatpush1.xpose.msra.mxu0 0.0
    %284 = vmatprep.subr.mxu0 0.0
    %285 = vmatpush1.xpose.msra.mxu0 0.0
    %286 = vmatprep.subr.mxu0 0.0
    %287 = vmatpush1.xpose.msra.mxu0 0.0
    %288 = vmatprep.mubr.f32.mxu0 0.0
    %289 = vmatmul.mubr.f32.gmra.mrb[0].mxu0 %v210
    %v290 = vpop.f32.mrb[0].mxu0
    %v291 = vadd.f32 0.0, %v290
    %v292 = vpop.f32.mrb[0].mxu0
    %293 = vmatprep.mubr.f32.mxu0 0.0
    %294 = vmatmul.mubr.f32.gmra.mrb[0].mxu0 %v213
    %v295 = vpop.f32.mrb[0].mxu0
    %v296 = vadd.f32 0.0, %v295
    %v297 = vpop.f32.mrb[0].mxu0
    %298 = vmatprep.mubr.f32.mxu0 0.0
    %299 = vmatmul.mubr.f32.gmra.mrb[0].mxu0 %v216
    %v300 = vpop.f32.mrb[0].mxu0
    %v301 = vadd.f32 0.0, %v300
    %v302 = vpop.f32.mrb[0].mxu0
    %303 = vdwg.mxu0
    %s304 = sld [smem:[#allocation2]]
    %v305 = vstv %s304
    %v306 = vmul.f32 %v291, %v305
    %v307 = vmul.f32 %v296, %v305
    %v308 = vmul.f32 %v301, %v305
    %v309 = vld [vmem:[%s5] sm:$0xff]
    %v310 = vld [vmem:[%s5 + $0x8] sm:$0xff]
    %v311 = vld [vmem:[%s5 + $0x10] sm:$0x3]
    %v312 = vadd.f32 %v306, %v309
    %v313 = vadd.f32 %v307, %v310
    %v314 = vadd.f32 %v308, %v311
    %vm315 = vcmask 146432
    %v316 = vsel %vm315, %v312, -inf
    %317 = vmax.xlane.f32.xlu0 %v316
    %v318 = vpop.xlane.xlu0 %317
    %v319 = vsel %vm315, %v313, -inf
    %320 = vmax.xlane.f32.xlu0 %v319
    %v321 = vpop.xlane.xlu0 %320
    %vm322 = vcmask 140288
    %v323 = vsel %vm322, %v314, -inf
    %324 = vmax.xlane.f32.xlu0 %v323
    %v325 = vpop.xlane.xlu0 %324
    %v326 = vsub.f32 %v312, %v318
    %v327 = vsub.f32 %v313, %v321
    %v328 = vsub.f32 %v314, %v325
    %v329 = vmul.f32 %v326, 1.442695
    %v330 = vpow.pop %v329
    %v331 = vmul.f32 %v327, 1.442695
    %v332 = vpow.pop %v331
    %v333 = vmul.f32 %v328, 1.442695
    %v334 = vpow.pop %v333
    %v335 = vsel %vm315, %v330, 0.0
    %336 = vadd.xlane.f32.xlu0 %v335
    %v337 = vpop.xlane.xlu0 %336
    %v338 = vsel %vm315, %v332, 0.0
    %339 = vadd.xlane.f32.xlu0 %v338
    %v340 = vpop.xlane.xlu0 %339
    %v341 = vsel %vm322, %v334, 0.0
    %342 = vadd.xlane.f32.xlu0 %v341
    %v343 = vpop.xlane.xlu0 %342
    %v344 = vrcp.pop %v337
    %v345 = vrcp.pop %v340
    %v346 = vrcp.pop %v343
    %v347 = vmul.f32 %v330, %v344
    %v348 = vmul.f32 %v332, %v345
    %v349 = vmul.f32 %v334, %v346
    %v350 = vpack.c.bf16 %v348, %v347
    %v351 = vpack.c.bf16 %v349, %v349
    %v352 = vpack.c.bf16 %v137, %v134
    %v353 = vpack.c.bf16 %v142, %v142
    %356 = vrot.lane.b32.xlu0 %v352, 64
    %v357 = vpop.permute.xlu0 %356
    %358 = vrot.lane.b32.xlu0 %v353, 64
    %v359 = vpop.permute.xlu0 %358
    %v362 = vsel %vm315, %v350, 0
    %v365 = vsel %vm315, %v351, 0
    %vm367 = vcmask 1040384
    %v369 = vsel %vm367, %v359, 0
    %371 = vmatprep.subr.bf16.mxu0 0
    %372 = vmatpush1.bf16.msra.mxu0 %v357
    %373 = vmatprep.subr.bf16.mxu0 0
    %374 = vmatpush1.bf16.msra.mxu0 %v369
    %375 = vmatprep.subr.bf16.mxu0 0
    %376 = vmatpush1.bf16.msra.mxu0 0
    %377 = vmatprep.subr.bf16.mxu0 0
    %378 = vmatpush1.bf16.msra.mxu0 0
    %379 = vmatprep.subr.bf16.mxu0 0
    %380 = vmatpush1.bf16.msra.mxu0 0
    %381 = vmatprep.subr.bf16.mxu0 0
    %382 = vmatpush1.bf16.msra.mxu0 0
    %383 = vmatprep.subr.bf16.mxu0 0
    %384 = vmatpush1.bf16.msra.mxu0 0
    %385 = vmatprep.subr.bf16.mxu0 0
    %386 = vmatpush1.bf16.msra.mxu0 0
    %387 = vmatprep.subr.bf16.mxu0 0
    %388 = vmatpush1.bf16.msra.mxu0 0
    %389 = vmatprep.subr.bf16.mxu0 0
    %390 = vmatpush1.bf16.msra.mxu0 0
    %391 = vmatprep.subr.bf16.mxu0 0
    %392 = vmatpush1.bf16.msra.mxu0 0
    %393 = vmatprep.subr.bf16.mxu0 0
    %394 = vmatpush1.bf16.msra.mxu0 0
    %395 = vmatprep.subr.bf16.mxu0 0
    %396 = vmatpush1.bf16.msra.mxu0 0
    %397 = vmatprep.subr.bf16.mxu0 0
    %398 = vmatpush1.bf16.msra.mxu0 0
    %399 = vmatprep.subr.bf16.mxu0 0
    %400 = vmatpush1.bf16.msra.mxu0 0
    %401 = vmatprep.subr.bf16.mxu0 0
    %402 = vmatpush1.bf16.msra.mxu0 0
    %403 = vmatprep.mubr.bf16.mxu0 0
    %404 = vmatmul.mubr.bf16.gmra.mrb[0].mxu0 %v362
    %v405 = vpop.f32.mrb[0].mxu0
    %v406 = vadd.f32 0.0, %v405
    %v407 = vpop.f32.mrb[0].mxu0
    %v408 = vpop.f32.mrb[0].mxu0
    %v409 = vadd.f32 0.0, %v408
    %v410 = vpop.f32.mrb[0].mxu0
    %411 = vmatprep.mubr.bf16.mxu0 0
    %412 = vmatmul.mubr.bf16.gmra.mrb[0].mxu0 %v365
    %v413 = vpop.f32.mrb[0].mxu0
    %v414 = vadd.f32 0.0, %v413
    %v415 = vpop.f32.mrb[0].mxu0
    %v416 = vpop.f32.mrb[0].mxu0
    %v417 = vpop.f32.mrb[0].mxu0
    %418 = vdwg.mxu0
    %v419 = vpack.c.bf16 %v409, %v406
    %v420 = vpack.c.bf16 %v414, %v414
    %v421 = vld [vmem:[%s3] sm:$0xf]
    %422 = vrot.lane.b32.xlu0 %v147, 120
    %v423 = vpop.permute.xlu0 %422
    %424 = vrot.lane.b32.xlu0 %v148, 120
    %v425 = vpop.permute.xlu0 %424
    %426 = vrot.lane.b32.xlu0 %v149, 120
    %v427 = vpop.permute.xlu0 %426
    %v431 = vsel %vm150, %v423, 0.0
    %432 = vadd.xlane.f32.xlu0 %v431
    %v433 = vpop.xlane.xlu0 %432
    %v434 = vsel %vm150, %v425, 0.0
    %435 = vadd.xlane.f32.xlu0 %v434
    %v436 = vpop.xlane.xlu0 %435
    %v437 = vsel %vm157, %v427, 0.0
    %438 = vadd.xlane.f32.xlu0 %v437
    %v439 = vpop.xlane.xlu0 %438
    %v440 = vmax.f32 %v433, 1e-24
    %v441 = vmax.f32 %v436, 1e-24
    %v442 = vmax.f32 %v439, 1e-24
    %v443 = vrsqrt.pop %v440
    %v444 = vrsqrt.pop %v441
    %v445 = vrsqrt.pop %v442
    %v446 = vmul.f32 %v134, %v443
    %v447 = vmul.f32 %v137, %v444
    %v448 = vmul.f32 %v142, %v445
    %449 = vrot.lane.b32.xlu0 %v147, 88
    %v450 = vpop.permute.xlu0 %449
    %451 = vrot.lane.b32.xlu0 %v148, 88
    %v452 = vpop.permute.xlu0 %451
    %453 = vrot.lane.b32.xlu0 %v149, 88
    %v454 = vpop.permute.xlu0 %453
    %v458 = vsel %vm150, %v450, 0.0
    %459 = vadd.xlane.f32.xlu0 %v458
    %v460 = vpop.xlane.xlu0 %459
    %v461 = vsel %vm150, %v452, 0.0
    %462 = vadd.xlane.f32.xlu0 %v461
    %v463 = vpop.xlane.xlu0 %462
    %v464 = vsel %vm157, %v454, 0.0
    %465 = vadd.xlane.f32.xlu0 %v464
    %v466 = vpop.xlane.xlu0 %465
    %v467 = vmax.f32 %v460, 1e-24
    %v468 = vmax.f32 %v463, 1e-24
    %v469 = vmax.f32 %v466, 1e-24
    %v470 = vrsqrt.pop %v467
    %v471 = vrsqrt.pop %v468
    %v472 = vrsqrt.pop %v469
    %v473 = vmul.f32 %v134, %v470
    %v474 = vmul.f32 %v137, %v471
    %v475 = vmul.f32 %v142, %v472
    %479 = vrot.lane.b32.xlu0 %v446, 120
    %v480 = vpop.permute.xlu0 %479
    %481 = vrot.lane.b32.xlu0 %v447, 120
    %v482 = vpop.permute.xlu0 %481
    %483 = vrot.lane.b32.xlu0 %v448, 120
    %v484 = vpop.permute.xlu0 %483
    %488 = vrot.lane.b32.xlu0 %v473, 88
    %v489 = vpop.permute.xlu0 %488
    %490 = vrot.lane.b32.xlu0 %v474, 88
    %v491 = vpop.permute.xlu0 %490
    %492 = vrot.lane.b32.xlu0 %v475, 88
    %v493 = vpop.permute.xlu0 %492
    %v494 = vsel %vm150, %v480, 0
    %v496 = vsel %vm150, %v482, 0
    %v498 = vsel %vm150, %v484, 0
    %v500 = vsel %vm150, %v489, 0
    %v502 = vsel %vm150, %v491, 0
    %v504 = vsel %vm150, %v493, 0
    %506 = vmatprep.subr.mxu0 0.0
    %507 = vmatpush1.xpose.msra.mxu0 %v500
    %508 = vmatprep.subr.mxu0 0.0
    %509 = vmatpush1.xpose.msra.mxu0 %v502
    %510 = vmatprep.subr.mxu0 0.0
    %511 = vmatpush1.xpose.msra.mxu0 %v504
    %512 = vmatprep.subr.mxu0 0.0
    %513 = vmatpush1.xpose.msra.mxu0 0.0
    %514 = vmatprep.subr.mxu0 0.0
    %515 = vmatpush1.xpose.msra.mxu0 0.0
    %516 = vmatprep.subr.mxu0 0.0
    %517 = vmatpush1.xpose.msra.mxu0 0.0
    %518 = vmatprep.subr.mxu0 0.0
    %519 = vmatpush1.xpose.msra.mxu0 0.0
    %520 = vmatprep.subr.mxu0 0.0
    %521 = vmatpush1.xpose.msra.mxu0 0.0
    %522 = vmatprep.subr.mxu0 0.0
    %523 = vmatpush1.xpose.msra.mxu0 0.0
    %524 = vmatprep.subr.mxu0 0.0
    %525 = vmatpush1.xpose.msra.mxu0 0.0
    %526 = vmatprep.subr.mxu0 0.0
    %527 = vmatpush1.xpose.msra.mxu0 0.0
    %528 = vmatprep.subr.mxu0 0.0
    %529 = vmatpush1.xpose.msra.mxu0 0.0
    %530 = vmatprep.subr.mxu0 0.0
    %531 = vmatpush1.xpose.msra.mxu0 0.0
    %532 = vmatprep.subr.mxu0 0.0
    %533 = vmatpush1.xpose.msra.mxu0 0.0
    %534 = vmatprep.subr.mxu0 0.0
    %535 = vmatpush1.xpose.msra.mxu0 0.0
    %536 = vmatprep.subr.mxu0 0.0
    %537 = vmatpush1.xpose.msra.mxu0 0.0
    %538 = vmatprep.subr.mxu0 0.0
    %539 = vmatpush1.xpose.msra.mxu0 0.0
    %540 = vmatprep.subr.mxu0 0.0
    %541 = vmatpush1.xpose.msra.mxu0 0.0
    %542 = vmatprep.subr.mxu0 0.0
    %543 = vmatpush1.xpose.msra.mxu0 0.0
    %544 = vmatprep.subr.mxu0 0.0
    %545 = vmatpush1.xpose.msra.mxu0 0.0
    %546 = vmatprep.subr.mxu0 0.0
    %547 = vmatpush1.xpose.msra.mxu0 0.0
    %548 = vmatprep.subr.mxu0 0.0
    %549 = vmatpush1.xpose.msra.mxu0 0.0
    %550 = vmatprep.subr.mxu0 0.0
    %551 = vmatpush1.xpose.msra.mxu0 0.0
    %552 = vmatprep.subr.mxu0 0.0
    %553 = vmatpush1.xpose.msra.mxu0 0.0
    %554 = vmatprep.subr.mxu0 0.0
    %555 = vmatpush1.xpose.msra.mxu0 0.0
    %556 = vmatprep.subr.mxu0 0.0
    %557 = vmatpush1.xpose.msra.mxu0 0.0
    %558 = vmatprep.subr.mxu0 0.0
    %559 = vmatpush1.xpose.msra.mxu0 0.0
    %560 = vmatprep.subr.mxu0 0.0
    %561 = vmatpush1.xpose.msra.mxu0 0.0
    %562 = vmatprep.subr.mxu0 0.0
    %563 = vmatpush1.xpose.msra.mxu0 0.0
    %564 = vmatprep.subr.mxu0 0.0
    %565 = vmatpush1.xpose.msra.mxu0 0.0
    %566 = vmatprep.subr.mxu0 0.0
    %567 = vmatpush1.xpose.msra.mxu0 0.0
    %568 = vmatprep.subr.mxu0 0.0
    %569 = vmatpush1.xpose.msra.mxu0 0.0
    %570 = vmatprep.mubr.f32.mxu0 0.0
    %571 = vmatmul.mubr.f32.gmra.mrb[0].mxu0 %v494
    %v572 = vpop.f32.mrb[0].mxu0
    %v573 = vadd.f32 0.0, %v572
    %v574 = vpop.f32.mrb[0].mxu0
    %575 = vmatprep.mubr.f32.mxu0 0.0
    %576 = vmatmul.mubr.f32.gmra.mrb[0].mxu0 %v496
    %v577 = vpop.f32.mrb[0].mxu0
    %v578 = vadd.f32 0.0, %v577
    %v579 = vpop.f32.mrb[0].mxu0
    %580 = vmatprep.mubr.f32.mxu0 0.0
    %581 = vmatmul.mubr.f32.gmra.mrb[0].mxu0 %v498
    %v582 = vpop.f32.mrb[0].mxu0
    %v583 = vadd.f32 0.0, %v582
    %v584 = vpop.f32.mrb[0].mxu0
    %585 = vdwg.mxu0
    %s586 = sld [smem:[#allocation2 + $0x1]]
    %v587 = vstv %s586
    %v588 = vmul.f32 %v573, %v587
    %v589 = vmul.f32 %v578, %v587
    %v590 = vmul.f32 %v583, %v587
    %s591 = scalar_lea.vmem %s5, 24
    %v592 = vld [vmem:[%s591] sm:$0xff]
    %v593 = vld [vmem:[%s591 + $0x8] sm:$0xff]
    %v594 = vld [vmem:[%s591 + $0x10] sm:$0x3]
    %v595 = vadd.f32 %v588, %v592
    %v596 = vadd.f32 %v589, %v593
    %v597 = vadd.f32 %v590, %v594
    %v598 = vsel %vm315, %v595, -inf
    %599 = vmax.xlane.f32.xlu0 %v598
    %v600 = vpop.xlane.xlu0 %599
    %v601 = vsel %vm315, %v596, -inf
    %602 = vmax.xlane.f32.xlu0 %v601
    %v603 = vpop.xlane.xlu0 %602
    %v604 = vsel %vm322, %v597, -inf
    %605 = vmax.xlane.f32.xlu0 %v604
    %v606 = vpop.xlane.xlu0 %605
    %v607 = vsub.f32 %v595, %v600
    %v608 = vsub.f32 %v596, %v603
    %v609 = vsub.f32 %v597, %v606
    %v610 = vmul.f32 %v607, 1.442695
    %v611 = vpow.pop %v610
    %v612 = vmul.f32 %v608, 1.442695
    %v613 = vpow.pop %v612
    %v614 = vmul.f32 %v609, 1.442695
    %v615 = vpow.pop %v614
    %v616 = vsel %vm315, %v611, 0.0
    %617 = vadd.xlane.f32.xlu0 %v616
    %v618 = vpop.xlane.xlu0 %617
    %v619 = vsel %vm315, %v613, 0.0
    %620 = vadd.xlane.f32.xlu0 %v619
    %v621 = vpop.xlane.xlu0 %620
    %v622 = vsel %vm322, %v615, 0.0
    %623 = vadd.xlane.f32.xlu0 %v622
    %v624 = vpop.xlane.xlu0 %623
    %v625 = vrcp.pop %v618
    %v626 = vrcp.pop %v621
    %v627 = vrcp.pop %v624
    %v628 = vmul.f32 %v611, %v625
    %v629 = vmul.f32 %v613, %v626
    %v630 = vmul.f32 %v615, %v627
    %v631 = vpack.c.bf16 %v629, %v628
    %v632 = vpack.c.bf16 %v630, %v630
    %633 = vrot.lane.b32.xlu0 %v352, 56
    %v634 = vpop.permute.xlu0 %633
    %635 = vrot.lane.b32.xlu0 %v353, 56
    %v636 = vpop.permute.xlu0 %635
    %v639 = vsel %vm315, %v631, 0
    %v642 = vsel %vm315, %v632, 0
    %v645 = vsel %vm367, %v636, 0
    %647 = vmatprep.subr.bf16.mxu0 0
    %648 = vmatpush1.bf16.msra.mxu0 %v634
    %649 = vmatprep.subr.bf16.mxu0 0
    %650 = vmatpush1.bf16.msra.mxu0 %v645
    %651 = vmatprep.subr.bf16.mxu0 0
    %652 = vmatpush1.bf16.msra.mxu0 0
    %653 = vmatprep.subr.bf16.mxu0 0
    %654 = vmatpush1.bf16.msra.mxu0 0
    %655 = vmatprep.subr.bf16.mxu0 0
    %656 = vmatpush1.bf16.msra.mxu0 0
    %657 = vmatprep.subr.bf16.mxu0 0
    %658 = vmatpush1.bf16.msra.mxu0 0
    %659 = vmatprep.subr.bf16.mxu0 0
    %660 = vmatpush1.bf16.msra.mxu0 0
    %661 = vmatprep.subr.bf16.mxu0 0
    %662 = vmatpush1.bf16.msra.mxu0 0
    %663 = vmatprep.subr.bf16.mxu0 0
    %664 = vmatpush1.bf16.msra.mxu0 0
    %665 = vmatprep.subr.bf16.mxu0 0
    %666 = vmatpush1.bf16.msra.mxu0 0
    %667 = vmatprep.subr.bf16.mxu0 0
    %668 = vmatpush1.bf16.msra.mxu0 0
    %669 = vmatprep.subr.bf16.mxu0 0
    %670 = vmatpush1.bf16.msra.mxu0 0
    %671 = vmatprep.subr.bf16.mxu0 0
    %672 = vmatpush1.bf16.msra.mxu0 0
    %673 = vmatprep.subr.bf16.mxu0 0
    %674 = vmatpush1.bf16.msra.mxu0 0
    %675 = vmatprep.subr.bf16.mxu0 0
    %676 = vmatpush1.bf16.msra.mxu0 0
    %677 = vmatprep.subr.bf16.mxu0 0
    %678 = vmatpush1.bf16.msra.mxu0 0
    %679 = vmatprep.mubr.bf16.mxu0 0
    %680 = vmatmul.mubr.bf16.gmra.mrb[0].mxu0 %v639
    %v681 = vpop.f32.mrb[0].mxu0
    %v682 = vadd.f32 0.0, %v681
    %v683 = vpop.f32.mrb[0].mxu0
    %v684 = vpop.f32.mrb[0].mxu0
    %v685 = vadd.f32 0.0, %v684
    %v686 = vpop.f32.mrb[0].mxu0
    %687 = vmatprep.mubr.bf16.mxu0 0
    %688 = vmatmul.mubr.bf16.gmra.mrb[0].mxu0 %v642
    %v689 = vpop.f32.mrb[0].mxu0
    %v690 = vadd.f32 0.0, %v689
    %v691 = vpop.f32.mrb[0].mxu0
    %v692 = vpop.f32.mrb[0].mxu0
    %v693 = vpop.f32.mrb[0].mxu0
    %694 = vdwg.mxu0
    %v695 = vpack.c.bf16 %v685, %v682
    %v696 = vpack.c.bf16 %v690, %v690
    %s697 = scalar_lea.vmem %s3, 4
    %v698 = vld [vmem:[%s697] sm:$0xf]
    %v700 = vsel %vm150, %v695, 0
    %v703 = vsel %vm150, %v696, 0
    %vm705 = vcmask 1043456
    %v707 = vsel %vm705, %v698, 0
    %709 = vmatprep.subr.bf16.mxu0 0
    %710 = vmatpush1.bf16.msra.mxu0 %v707
    %711 = vmatprep.subr.bf16.mxu0 0
    %712 = vmatpush1.bf16.msra.mxu0 0
    %713 = vmatprep.subr.bf16.mxu0 0
    %714 = vmatpush1.bf16.msra.mxu0 0
    %715 = vmatprep.subr.bf16.mxu0 0
    %716 = vmatpush1.bf16.msra.mxu0 0
    %717 = vmatprep.subr.bf16.mxu0 0
    %718 = vmatpush1.bf16.msra.mxu0 0
    %719 = vmatprep.subr.bf16.mxu0 0
    %720 = vmatpush1.bf16.msra.mxu0 0
    %721 = vmatprep.subr.bf16.mxu0 0
    %722 = vmatpush1.bf16.msra.mxu0 0
    %723 = vmatprep.subr.bf16.mxu0 0
    %724 = vmatpush1.bf16.msra.mxu0 0
    %725 = vmatprep.subr.bf16.mxu0 0
    %726 = vmatpush1.bf16.msra.mxu0 0
    %727 = vmatprep.subr.bf16.mxu0 0
    %728 = vmatpush1.bf16.msra.mxu0 0
    %729 = vmatprep.subr.bf16.mxu0 0
    %730 = vmatpush1.bf16.msra.mxu0 0
    %731 = vmatprep.subr.bf16.mxu0 0
    %732 = vmatpush1.bf16.msra.mxu0 0
    %733 = vmatprep.subr.bf16.mxu0 0
    %734 = vmatpush1.bf16.msra.mxu0 0
    %735 = vmatprep.subr.bf16.mxu0 0
    %736 = vmatpush1.bf16.msra.mxu0 0
    %737 = vmatprep.subr.bf16.mxu0 0
    %738 = vmatpush1.bf16.msra.mxu0 0
    %739 = vmatprep.subr.bf16.mxu0 0
    %740 = vmatpush1.bf16.msra.mxu0 0
    %741 = vmatprep.mubr.bf16.mxu0 0
    %742 = vmatmul.mubr.bf16.gmra.mrb[0].mxu0 %v700
    %v743 = vpop.f32.mrb[0].mxu0
    %v744 = vadd.f32 0.0, %v743
    %v745 = vpop.f32.mrb[0].mxu0
    %v746 = vpop.f32.mrb[0].mxu0
    %v747 = vadd.f32 0.0, %v746
    %v748 = vpop.f32.mrb[0].mxu0
    %749 = vmatprep.mubr.bf16.mxu0 0
    %750 = vmatmul.mubr.bf16.gmra.mrb[0].mxu0 %v703
    %v751 = vpop.f32.mrb[0].mxu0
    %v752 = vadd.f32 0.0, %v751
    %v753 = vpop.f32.mrb[0].mxu0
    %v754 = vpop.f32.mrb[0].mxu0
    %v755 = vpop.f32.mrb[0].mxu0
    %756 = vdwg.mxu0
    %v758 = vsel %vm150, %v419, 0
    %v761 = vsel %vm150, %v420, 0
    %v764 = vsel %vm705, %v421, 0
    %766 = vmatprep.subr.bf16.mxu0 0
    %767 = vmatpush1.bf16.msra.mxu0 %v764
    %768 = vmatprep.subr.bf16.mxu0 0
    %769 = vmatpush1.bf16.msra.mxu0 0
    %770 = vmatprep.subr.bf16.mxu0 0
    %771 = vmatpush1.bf16.msra.mxu0 0
    %772 = vmatprep.subr.bf16.mxu0 0
    %773 = vmatpush1.bf16.msra.mxu0 0
    %774 = vmatprep.subr.bf16.mxu0 0
    %775 = vmatpush1.bf16.msra.mxu0 0
    %776 = vmatprep.subr.bf16.mxu0 0
    %777 = vmatpush1.bf16.msra.mxu0 0
    %778 = vmatprep.subr.bf16.mxu0 0
    %779 = vmatpush1.bf16.msra.mxu0 0
    %780 = vmatprep.subr.bf16.mxu0 0
    %781 = vmatpush1.bf16.msra.mxu0 0
    %782 = vmatprep.subr.bf16.mxu0 0
    %783 = vmatpush1.bf16.msra.mxu0 0
    %784 = vmatprep.subr.bf16.mxu0 0
    %785 = vmatpush1.bf16.msra.mxu0 0
    %786 = vmatprep.subr.bf16.mxu0 0
    %787 = vmatpush1.bf16.msra.mxu0 0
    %788 = vmatprep.subr.bf16.mxu0 0
    %789 = vmatpush1.bf16.msra.mxu0 0
    %790 = vmatprep.subr.bf16.mxu0 0
    %791 = vmatpush1.bf16.msra.mxu0 0
    %792 = vmatprep.subr.bf16.mxu0 0
    %793 = vmatpush1.bf16.msra.mxu0 0
    %794 = vmatprep.subr.bf16.mxu0 0
    %795 = vmatpush1.bf16.msra.mxu0 0
    %796 = vmatprep.subr.bf16.mxu0 0
    %797 = vmatpush1.bf16.msra.mxu0 0
    %798 = vmatprep.mubr.bf16.mxu0 0
    %799 = vmatmul.mubr.bf16.gmra.mrb[0].mxu0 %v758
    %v800 = vpop.f32.mrb[0].mxu0
    %v801 = vadd.f32 %v744, %v800
    %v802 = vpop.f32.mrb[0].mxu0
    %v803 = vpop.f32.mrb[0].mxu0
    %v804 = vadd.f32 %v747, %v803
    %v805 = vpop.f32.mrb[0].mxu0
    %806 = vmatprep.mubr.bf16.mxu0 0
    %807 = vmatmul.mubr.bf16.gmra.mrb[0].mxu0 %v761
    %v808 = vpop.f32.mrb[0].mxu0
    %v809 = vadd.f32 %v752, %v808
    %v810 = vpop.f32.mrb[0].mxu0
    %v811 = vpop.f32.mrb[0].mxu0
    %v812 = vpop.f32.mrb[0].mxu0
    %813 = vdwg.mxu0
    %814 = vrot.lane.b32.xlu0 %v147, 112
    %v815 = vpop.permute.xlu0 %814
    %816 = vrot.lane.b32.xlu0 %v148, 112
    %v817 = vpop.permute.xlu0 %816
    %818 = vrot.lane.b32.xlu0 %v149, 112
    %v819 = vpop.permute.xlu0 %818
    %v823 = vsel %vm150, %v815, 0.0
    %824 = vadd.xlane.f32.xlu0 %v823
    %v825 = vpop.xlane.xlu0 %824
    %v826 = vsel %vm150, %v817, 0.0
    %827 = vadd.xlane.f32.xlu0 %v826
    %v828 = vpop.xlane.xlu0 %827
    %v829 = vsel %vm157, %v819, 0.0
    %830 = vadd.xlane.f32.xlu0 %v829
    %v831 = vpop.xlane.xlu0 %830
    %v832 = vmax.f32 %v825, 1e-24
    %v833 = vmax.f32 %v828, 1e-24
    %v834 = vmax.f32 %v831, 1e-24
    %v835 = vrsqrt.pop %v832
    %v836 = vrsqrt.pop %v833
    %v837 = vrsqrt.pop %v834
    %v838 = vmul.f32 %v134, %v835
    %v839 = vmul.f32 %v137, %v836
    %v840 = vmul.f32 %v142, %v837
    %841 = vrot.lane.b32.xlu0 %v147, 80
    %v842 = vpop.permute.xlu0 %841
    %843 = vrot.lane.b32.xlu0 %v148, 80
    %v844 = vpop.permute.xlu0 %843
    %845 = vrot.lane.b32.xlu0 %v149, 80
    %v846 = vpop.permute.xlu0 %845
    %v850 = vsel %vm150, %v842, 0.0
    %851 = vadd.xlane.f32.xlu0 %v850
    %v852 = vpop.xlane.xlu0 %851
    %v853 = vsel %vm150, %v844, 0.0
    %854 = vadd.xlane.f32.xlu0 %v853
    %v855 = vpop.xlane.xlu0 %854
    %v856 = vsel %vm157, %v846, 0.0
    %857 = vadd.xlane.f32.xlu0 %v856
    %v858 = vpop.xlane.xlu0 %857
    %v859 = vmax.f32 %v852, 1e-24
    %v860 = vmax.f32 %v855, 1e-24
    %v861 = vmax.f32 %v858, 1e-24
    %v862 = vrsqrt.pop %v859
    %v863 = vrsqrt.pop %v860
    %v864 = vrsqrt.pop %v861
    %v865 = vmul.f32 %v134, %v862
    %v866 = vmul.f32 %v137, %v863
    %v867 = vmul.f32 %v142, %v864
    %871 = vrot.lane.b32.xlu0 %v838, 112
    %v872 = vpop.permute.xlu0 %871
    %873 = vrot.lane.b32.xlu0 %v839, 112
    %v874 = vpop.permute.xlu0 %873
    %875 = vrot.lane.b32.xlu0 %v840, 112
    %v876 = vpop.permute.xlu0 %875
    %880 = vrot.lane.b32.xlu0 %v865, 80
    %v881 = vpop.permute.xlu0 %880
    %882 = vrot.lane.b32.xlu0 %v866, 80
    %v883 = vpop.permute.xlu0 %882
    %884 = vrot.lane.b32.xlu0 %v867, 80
    %v885 = vpop.permute.xlu0 %884
    %v886 = vsel %vm150, %v872, 0
    %v888 = vsel %vm150, %v874, 0
    %v890 = vsel %vm150, %v876, 0
    %v892 = vsel %vm150, %v881, 0
    %v894 = vsel %vm150, %v883, 0
    %v896 = vsel %vm150, %v885, 0
    %898 = vmatprep.subr.mxu0 0.0
    %899 = vmatpush1.xpose.msra.mxu0 %v892
    %900 = vmatprep.subr.mxu0 0.0
    %901 = vmatpush1.xpose.msra.mxu0 %v894
    %902 = vmatprep.subr.mxu0 0.0
    %903 = vmatpush1.xpose.msra.mxu0 %v896
    %904 = vmatprep.subr.mxu0 0.0
    %905 = vmatpush1.xpose.msra.mxu0 0.0
    %906 = vmatprep.subr.mxu0 0.0
    %907 = vmatpush1.xpose.msra.mxu0 0.0
    %908 = vmatprep.subr.mxu0 0.0
    %909 = vmatpush1.xpose.msra.mxu0 0.0
    %910 = vmatprep.subr.mxu0 0.0
    %911 = vmatpush1.xpose.msra.mxu0 0.0
    %912 = vmatprep.subr.mxu0 0.0
    %913 = vmatpush1.xpose.msra.mxu0 0.0
    %914 = vmatprep.subr.mxu0 0.0
    %915 = vmatpush1.xpose.msra.mxu0 0.0
    %916 = vmatprep.subr.mxu0 0.0
    %917 = vmatpush1.xpose.msra.mxu0 0.0
    %918 = vmatprep.subr.mxu0 0.0
    %919 = vmatpush1.xpose.msra.mxu0 0.0
    %920 = vmatprep.subr.mxu0 0.0
    %921 = vmatpush1.xpose.msra.mxu0 0.0
    %922 = vmatprep.subr.mxu0 0.0
    %923 = vmatpush1.xpose.msra.mxu0 0.0
    %924 = vmatprep.subr.mxu0 0.0
    %925 = vmatpush1.xpose.msra.mxu0 0.0
    %926 = vmatprep.subr.mxu0 0.0
    %927 = vmatpush1.xpose.msra.mxu0 0.0
    %928 = vmatprep.subr.mxu0 0.0
    %929 = vmatpush1.xpose.msra.mxu0 0.0
    %930 = vmatprep.subr.mxu0 0.0
    %931 = vmatpush1.xpose.msra.mxu0 0.0
    %932 = vmatprep.subr.mxu0 0.0
    %933 = vmatpush1.xpose.msra.mxu0 0.0
    %934 = vmatprep.subr.mxu0 0.0
    %935 = vmatpush1.xpose.msra.mxu0 0.0
    %936 = vmatprep.subr.mxu0 0.0
    %937 = vmatpush1.xpose.msra.mxu0 0.0
    %938 = vmatprep.subr.mxu0 0.0
    %939 = vmatpush1.xpose.msra.mxu0 0.0
    %940 = vmatprep.subr.mxu0 0.0
    %941 = vmatpush1.xpose.msra.mxu0 0.0
    %942 = vmatprep.subr.mxu0 0.0
    %943 = vmatpush1.xpose.msra.mxu0 0.0
    %944 = vmatprep.subr.mxu0 0.0
    %945 = vmatpush1.xpose.msra.mxu0 0.0
    %946 = vmatprep.subr.mxu0 0.0
    %947 = vmatpush1.xpose.msra.mxu0 0.0
    %948 = vmatprep.subr.mxu0 0.0
    %949 = vmatpush1.xpose.msra.mxu0 0.0
    %950 = vmatprep.subr.mxu0 0.0
    %951 = vmatpush1.xpose.msra.mxu0 0.0
    %952 = vmatprep.subr.mxu0 0.0
    %953 = vmatpush1.xpose.msra.mxu0 0.0
    %954 = vmatprep.subr.mxu0 0.0
    %955 = vmatpush1.xpose.msra.mxu0 0.0
    %956 = vmatprep.subr.mxu0 0.0
    %957 = vmatpush1.xpose.msra.mxu0 0.0
    %958 = vmatprep.subr.mxu0 0.0
    %959 = vmatpush1.xpose.msra.mxu0 0.0
    %960 = vmatprep.subr.mxu0 0.0
    %961 = vmatpush1.xpose.msra.mxu0 0.0
    %962 = vmatprep.mubr.f32.mxu0 0.0
    %963 = vmatmul.mubr.f32.gmra.mrb[0].mxu0 %v886
    %v964 = vpop.f32.mrb[0].mxu0
    %v965 = vadd.f32 0.0, %v964
    %v966 = vpop.f32.mrb[0].mxu0
    %967 = vmatprep.mubr.f32.mxu0 0.0
    %968 = vmatmul.mubr.f32.gmra.mrb[0].mxu0 %v888
    %v969 = vpop.f32.mrb[0].mxu0
    %v970 = vadd.f32 0.0, %v969
    %v971 = vpop.f32.mrb[0].mxu0
    %972 = vmatprep.mubr.f32.mxu0 0.0
    %973 = vmatmul.mubr.f32.gmra.mrb[0].mxu0 %v890
    %v974 = vpop.f32.mrb[0].mxu0
    %v975 = vadd.f32 0.0, %v974
    %v976 = vpop.f32.mrb[0].mxu0
    %977 = vdwg.mxu0
    %s978 = sld [smem:[#allocation2 + $0x2]]
    %v979 = vstv %s978
    %v980 = vmul.f32 %v965, %v979
    %v981 = vmul.f32 %v970, %v979
    %v982 = vmul.f32 %v975, %v979
    %s983 = scalar_lea.vmem %s5, 48
    %v984 = vld [vmem:[%s983] sm:$0xff]
    %v985 = vld [vmem:[%s983 + $0x8] sm:$0xff]
    %v986 = vld [vmem:[%s983 + $0x10] sm:$0x3]
    %v987 = vadd.f32 %v980, %v984
    %v988 = vadd.f32 %v981, %v985
    %v989 = vadd.f32 %v982, %v986
    %v990 = vsel %vm315, %v987, -inf
    %991 = vmax.xlane.f32.xlu0 %v990
    %v992 = vpop.xlane.xlu0 %991
    %v993 = vsel %vm315, %v988, -inf
    %994 = vmax.xlane.f32.xlu0 %v993
    %v995 = vpop.xlane.xlu0 %994
    %v996 = vsel %vm322, %v989, -inf
    %997 = vmax.xlane.f32.xlu0 %v996
    %v998 = vpop.xlane.xlu0 %997
    %v999 = vsub.f32 %v987, %v992
    %v1000 = vsub.f32 %v988, %v995
    %v1001 = vsub.f32 %v989, %v998
    %v1002 = vmul.f32 %v999, 1.442695
    %v1003 = vpow.pop %v1002
    %v1004 = vmul.f32 %v1000, 1.442695
    %v1005 = vpow.pop %v1004
    %v1006 = vmul.f32 %v1001, 1.442695
    %v1007 = vpow.pop %v1006
    %v1008 = vsel %vm315, %v1003, 0.0
    %1009 = vadd.xlane.f32.xlu0 %v1008
    %v1010 = vpop.xlane.xlu0 %1009
    %v1011 = vsel %vm315, %v1005, 0.0
    %1012 = vadd.xlane.f32.xlu0 %v1011
    %v1013 = vpop.xlane.xlu0 %1012
    %v1014 = vsel %vm322, %v1007, 0.0
    %1015 = vadd.xlane.f32.xlu0 %v1014
    %v1016 = vpop.xlane.xlu0 %1015
    %v1017 = vrcp.pop %v1010
    %v1018 = vrcp.pop %v1013
    %v1019 = vrcp.pop %v1016
    %v1020 = vmul.f32 %v1003, %v1017
    %v1021 = vmul.f32 %v1005, %v1018
    %v1022 = vmul.f32 %v1007, %v1019
    %v1023 = vpack.c.bf16 %v1021, %v1020
    %v1024 = vpack.c.bf16 %v1022, %v1022
    %1025 = vrot.lane.b32.xlu0 %v352, 48
    %v1026 = vpop.permute.xlu0 %1025
    %1027 = vrot.lane.b32.xlu0 %v353, 48
    %v1028 = vpop.permute.xlu0 %1027
    %v1031 = vsel %vm315, %v1023, 0
    %v1034 = vsel %vm315, %v1024, 0
    %v1037 = vsel %vm367, %v1028, 0
    %1039 = vmatprep.subr.bf16.mxu0 0
    %1040 = vmatpush1.bf16.msra.mxu0 %v1026
    %1041 = vmatprep.subr.bf16.mxu0 0
    %1042 = vmatpush1.bf16.msra.mxu0 %v1037
    %1043 = vmatprep.subr.bf16.mxu0 0
    %1044 = vmatpush1.bf16.msra.mxu0 0
    %1045 = vmatprep.subr.bf16.mxu0 0
    %1046 = vmatpush1.bf16.msra.mxu0 0
    %1047 = vmatprep.subr.bf16.mxu0 0
    %1048 = vmatpush1.bf16.msra.mxu0 0
    %1049 = vmatprep.subr.bf16.mxu0 0
    %1050 = vmatpush1.bf16.msra.mxu0 0
    %1051 = vmatprep.subr.bf16.mxu0 0
    %1052 = vmatpush1.bf16.msra.mxu0 0
    %1053 = vmatprep.subr.bf16.mxu0 0
    %1054 = vmatpush1.bf16.msra.mxu0 0
    %1055 = vmatprep.subr.bf16.mxu0 0
    %1056 = vmatpush1.bf16.msra.mxu0 0
    %1057 = vmatprep.subr.bf16.mxu0 0
    %1058 = vmatpush1.bf16.msra.mxu0 0
    %1059 = vmatprep.subr.bf16.mxu0 0
    %1060 = vmatpush1.bf16.msra.mxu0 0
    %1061 = vmatprep.subr.bf16.mxu0 0
    %1062 = vmatpush1.bf16.msra.mxu0 0
    %1063 = vmatprep.subr.bf16.mxu0 0
    %1064 = vmatpush1.bf16.msra.mxu0 0
    %1065 = vmatprep.subr.bf16.mxu0 0
    %1066 = vmatpush1.bf16.msra.mxu0 0
    %1067 = vmatprep.subr.bf16.mxu0 0
    %1068 = vmatpush1.bf16.msra.mxu0 0
    %1069 = vmatprep.subr.bf16.mxu0 0
    %1070 = vmatpush1.bf16.msra.mxu0 0
    %1071 = vmatprep.mubr.bf16.mxu0 0
    %1072 = vmatmul.mubr.bf16.gmra.mrb[0].mxu0 %v1031
    %v1073 = vpop.f32.mrb[0].mxu0
    %v1074 = vadd.f32 0.0, %v1073
    %v1075 = vpop.f32.mrb[0].mxu0
    %v1076 = vpop.f32.mrb[0].mxu0
    %v1077 = vadd.f32 0.0, %v1076
    %v1078 = vpop.f32.mrb[0].mxu0
    %1079 = vmatprep.mubr.bf16.mxu0 0
    %1080 = vmatmul.mubr.bf16.gmra.mrb[0].mxu0 %v1034
    %v1081 = vpop.f32.mrb[0].mxu0
    %v1082 = vadd.f32 0.0, %v1081
    %v1083 = vpop.f32.mrb[0].mxu0
    %v1084 = vpop.f32.mrb[0].mxu0
    %v1085 = vpop.f32.mrb[0].mxu0
    %1086 = vdwg.mxu0
    %v1087 = vpack.c.bf16 %v1077, %v1074
    %v1088 = vpack.c.bf16 %v1082, %v1082
    %s1089 = scalar_lea.vmem %s3, 8
    %v1090 = vld [vmem:[%s1089] sm:$0xf]
    %v1092 = vsel %vm150, %v1087, 0
    %v1095 = vsel %vm150, %v1088, 0
    %v1098 = vsel %vm705, %v1090, 0
    %1100 = vmatprep.subr.bf16.mxu0 0
    %1101 = vmatpush1.bf16.msra.mxu0 %v1098
    %1102 = vmatprep.subr.bf16.mxu0 0
    %1103 = vmatpush1.bf16.msra.mxu0 0
    %1104 = vmatprep.subr.bf16.mxu0 0
    %1105 = vmatpush1.bf16.msra.mxu0 0
    %1106 = vmatprep.subr.bf16.mxu0 0
    %1107 = vmatpush1.bf16.msra.mxu0 0
    %1108 = vmatprep.subr.bf16.mxu0 0
    %1109 = vmatpush1.bf16.msra.mxu0 0
    %1110 = vmatprep.subr.bf16.mxu0 0
    %1111 = vmatpush1.bf16.msra.mxu0 0
    %1112 = vmatprep.subr.bf16.mxu0 0
    %1113 = vmatpush1.bf16.msra.mxu0 0
    %1114 = vmatprep.subr.bf16.mxu0 0
    %1115 = vmatpush1.bf16.msra.mxu0 0
    %1116 = vmatprep.subr.bf16.mxu0 0
    %1117 = vmatpush1.bf16.msra.mxu0 0
    %1118 = vmatprep.subr.bf16.mxu0 0
    %1119 = vmatpush1.bf16.msra.mxu0 0
    %1120 = vmatprep.subr.bf16.mxu0 0
    %1121 = vmatpush1.bf16.msra.mxu0 0
    %1122 = vmatprep.subr.bf16.mxu0 0
    %1123 = vmatpush1.bf16.msra.mxu0 0
    %1124 = vmatprep.subr.bf16.mxu0 0
    %1125 = vmatpush1.bf16.msra.mxu0 0
    %1126 = vmatprep.subr.bf16.mxu0 0
    %1127 = vmatpush1.bf16.msra.mxu0 0
    %1128 = vmatprep.subr.bf16.mxu0 0
    %1129 = vmatpush1.bf16.msra.mxu0 0
    %1130 = vmatprep.subr.bf16.mxu0 0
    %1131 = vmatpush1.bf16.msra.mxu0 0
    %1132 = vmatprep.mubr.bf16.mxu0 0
    %1133 = vmatmul.mubr.bf16.gmra.mrb[0].mxu0 %v1092
    %v1134 = vpop.f32.mrb[0].mxu0
    %v1135 = vadd.f32 0.0, %v1134
    %v1136 = vpop.f32.mrb[0].mxu0
    %v1137 = vpop.f32.mrb[0].mxu0
    %v1138 = vadd.f32 0.0, %v1137
    %v1139 = vpop.f32.mrb[0].mxu0
    %1140 = vmatprep.mubr.bf16.mxu0 0
    %1141 = vmatmul.mubr.bf16.gmra.mrb[0].mxu0 %v1095
    %v1142 = vpop.f32.mrb[0].mxu0
    %v1143 = vadd.f32 0.0, %v1142
    %v1144 = vpop.f32.mrb[0].mxu0
    %v1145 = vpop.f32.mrb[0].mxu0
    %v1146 = vpop.f32.mrb[0].mxu0
    %1147 = vdwg.mxu0
    %v1148 = vadd.f32 %v801, %v1135
    %v1149 = vadd.f32 %v804, %v1138
    %v1150 = vadd.f32 %v809, %v1143
    %1151 = vrot.lane.b32.xlu0 %v147, 104
    %v1152 = vpop.permute.xlu0 %1151
    %1153 = vrot.lane.b32.xlu0 %v148, 104
    %v1154 = vpop.permute.xlu0 %1153
    %1155 = vrot.lane.b32.xlu0 %v149, 104
    %v1156 = vpop.permute.xlu0 %1155
    %v1160 = vsel %vm150, %v1152, 0.0
    %1161 = vadd.xlane.f32.xlu0 %v1160
    %v1162 = vpop.xlane.xlu0 %1161
    %v1163 = vsel %vm150, %v1154, 0.0
    %1164 = vadd.xlane.f32.xlu0 %v1163
    %v1165 = vpop.xlane.xlu0 %1164
    %v1166 = vsel %vm157, %v1156, 0.0
    %1167 = vadd.xlane.f32.xlu0 %v1166
    %v1168 = vpop.xlane.xlu0 %1167
    %v1169 = vmax.f32 %v1162, 1e-24
    %v1170 = vmax.f32 %v1165, 1e-24
    %v1171 = vmax.f32 %v1168, 1e-24
    %v1172 = vrsqrt.pop %v1169
    %v1173 = vrsqrt.pop %v1170
    %v1174 = vrsqrt.pop %v1171
    %v1175 = vmul.f32 %v134, %v1172
    %v1176 = vmul.f32 %v137, %v1173
    %v1177 = vmul.f32 %v142, %v1174
    %1178 = vrot.lane.b32.xlu0 %v147, 72
    %v1179 = vpop.permute.xlu0 %1178
    %1180 = vrot.lane.b32.xlu0 %v148, 72
    %v1181 = vpop.permute.xlu0 %1180
    %1182 = vrot.lane.b32.xlu0 %v149, 72
    %v1183 = vpop.permute.xlu0 %1182
    %v1187 = vsel %vm150, %v1179, 0.0
    %1188 = vadd.xlane.f32.xlu0 %v1187
    %v1189 = vpop.xlane.xlu0 %1188
    %v1190 = vsel %vm150, %v1181, 0.0
    %1191 = vadd.xlane.f32.xlu0 %v1190
    %v1192 = vpop.xlane.xlu0 %1191
    %v1193 = vsel %vm157, %v1183, 0.0
    %1194 = vadd.xlane.f32.xlu0 %v1193
    %v1195 = vpop.xlane.xlu0 %1194
    %v1196 = vmax.f32 %v1189, 1e-24
    %v1197 = vmax.f32 %v1192, 1e-24
    %v1198 = vmax.f32 %v1195, 1e-24
    %v1199 = vrsqrt.pop %v1196
    %v1200 = vrsqrt.pop %v1197
    %v1201 = vrsqrt.pop %v1198
    %v1202 = vmul.f32 %v134, %v1199
    %v1203 = vmul.f32 %v137, %v1200
    %v1204 = vmul.f32 %v142, %v1201
    %1208 = vrot.lane.b32.xlu0 %v1175, 104
    %v1209 = vpop.permute.xlu0 %1208
    %1210 = vrot.lane.b32.xlu0 %v1176, 104
    %v1211 = vpop.permute.xlu0 %1210
    %1212 = vrot.lane.b32.xlu0 %v1177, 104
    %v1213 = vpop.permute.xlu0 %1212
    %1217 = vrot.lane.b32.xlu0 %v1202, 72
    %v1218 = vpop.permute.xlu0 %1217
    %1219 = vrot.lane.b32.xlu0 %v1203, 72
    %v1220 = vpop.permute.xlu0 %1219
    %1221 = vrot.lane.b32.xlu0 %v1204, 72
    %v1222 = vpop.permute.xlu0 %1221
    %v1223 = vsel %vm150, %v1209, 0
    %v1225 = vsel %vm150, %v1211, 0
    %v1227 = vsel %vm150, %v1213, 0
    %v1229 = vsel %vm150, %v1218, 0
    %v1231 = vsel %vm150, %v1220, 0
    %v1233 = vsel %vm150, %v1222, 0
    %1235 = vmatprep.subr.mxu0 0.0
    %1236 = vmatpush1.xpose.msra.mxu0 %v1229
    %1237 = vmatprep.subr.mxu0 0.0
    %1238 = vmatpush1.xpose.msra.mxu0 %v1231
    %1239 = vmatprep.subr.mxu0 0.0
    %1240 = vmatpush1.xpose.msra.mxu0 %v1233
    %1241 = vmatprep.subr.mxu0 0.0
    %1242 = vmatpush1.xpose.msra.mxu0 0.0
    %1243 = vmatprep.subr.mxu0 0.0
    %1244 = vmatpush1.xpose.msra.mxu0 0.0
    %1245 = vmatprep.subr.mxu0 0.0
    %1246 = vmatpush1.xpose.msra.mxu0 0.0
    %1247 = vmatprep.subr.mxu0 0.0
    %1248 = vmatpush1.xpose.msra.mxu0 0.0
    %1249 = vmatprep.subr.mxu0 0.0
    %1250 = vmatpush1.xpose.msra.mxu0 0.0
    %1251 = vmatprep.subr.mxu0 0.0
    %1252 = vmatpush1.xpose.msra.mxu0 0.0
    %1253 = vmatprep.subr.mxu0 0.0
    %1254 = vmatpush1.xpose.msra.mxu0 0.0
    %1255 = vmatprep.subr.mxu0 0.0
    %1256 = vmatpush1.xpose.msra.mxu0 0.0
    %1257 = vmatprep.subr.mxu0 0.0
    %1258 = vmatpush1.xpose.msra.mxu0 0.0
    %1259 = vmatprep.subr.mxu0 0.0
    %1260 = vmatpush1.xpose.msra.mxu0 0.0
    %1261 = vmatprep.subr.mxu0 0.0
    %1262 = vmatpush1.xpose.msra.mxu0 0.0
    %1263 = vmatprep.subr.mxu0 0.0
    %1264 = vmatpush1.xpose.msra.mxu0 0.0
    %1265 = vmatprep.subr.mxu0 0.0
    %1266 = vmatpush1.xpose.msra.mxu0 0.0
    %1267 = vmatprep.subr.mxu0 0.0
    %1268 = vmatpush1.xpose.msra.mxu0 0.0
    %1269 = vmatprep.subr.mxu0 0.0
    %1270 = vmatpush1.xpose.msra.mxu0 0.0
    %1271 = vmatprep.subr.mxu0 0.0
    %1272 = vmatpush1.xpose.msra.mxu0 0.0
    %1273 = vmatprep.subr.mxu0 0.0
    %1274 = vmatpush1.xpose.msra.mxu0 0.0
    %1275 = vmatprep.subr.mxu0 0.0
    %1276 = vmatpush1.xpose.msra.mxu0 0.0
    %1277 = vmatprep.subr.mxu0 0.0
    %1278 = vmatpush1.xpose.msra.mxu0 0.0
    %1279 = vmatprep.subr.mxu0 0.0
    %1280 = vmatpush1.xpose.msra.mxu0 0.0
    %1281 = vmatprep.subr.mxu0 0.0
    %1282 = vmatpush1.xpose.msra.mxu0 0.0
    %1283 = vmatprep.subr.mxu0 0.0
    %1284 = vmatpush1.xpose.msra.mxu0 0.0
    %1285 = vmatprep.subr.mxu0 0.0
    %1286 = vmatpush1.xpose.msra.mxu0 0.0
    %1287 = vmatprep.subr.mxu0 0.0
    %1288 = vmatpush1.xpose.msra.mxu0 0.0
    %1289 = vmatprep.subr.mxu0 0.0
    %1290 = vmatpush1.xpose.msra.mxu0 0.0
    %1291 = vmatprep.subr.mxu0 0.0
    %1292 = vmatpush1.xpose.msra.mxu0 0.0
    %1293 = vmatprep.subr.mxu0 0.0
    %1294 = vmatpush1.xpose.msra.mxu0 0.0
    %1295 = vmatprep.subr.mxu0 0.0
    %1296 = vmatpush1.xpose.msra.mxu0 0.0
    %1297 = vmatprep.subr.mxu0 0.0
    %1298 = vmatpush1.xpose.msra.mxu0 0.0
    %1299 = vmatprep.mubr.f32.mxu0 0.0
    %1300 = vmatmul.mubr.f32.gmra.mrb[0].mxu0 %v1223
    %v1301 = vpop.f32.mrb[0].mxu0
    %v1302 = vadd.f32 0.0, %v1301
    %v1303 = vpop.f32.mrb[0].mxu0
    %1304 = vmatprep.mubr.f32.mxu0 0.0
    %1305 = vmatmul.mubr.f32.gmra.mrb[0].mxu0 %v1225
    %v1306 = vpop.f32.mrb[0].mxu0
    %v1307 = vadd.f32 0.0, %v1306
    %v1308 = vpop.f32.mrb[0].mxu0
    %1309 = vmatprep.mubr.f32.mxu0 0.0
    %1310 = vmatmul.mubr.f32.gmra.mrb[0].mxu0 %v1227
    %v1311 = vpop.f32.mrb[0].mxu0
    %v1312 = vadd.f32 0.0, %v1311
    %v1313 = vpop.f32.mrb[0].mxu0
    %1314 = vdwg.mxu0
    %s1315 = sld [smem:[#allocation2 + $0x3]]
    %v1316 = vstv %s1315
    %v1317 = vmul.f32 %v1302, %v1316
    %v1318 = vmul.f32 %v1307, %v1316
    %v1319 = vmul.f32 %v1312, %v1316
    %s1320 = scalar_lea.vmem %s5, 72
    %v1321 = vld [vmem:[%s1320] sm:$0xff]
    %v1322 = vld [vmem:[%s1320 + $0x8] sm:$0xff]
    %v1323 = vld [vmem:[%s1320 + $0x10] sm:$0x3]
    %v1324 = vadd.f32 %v1317, %v1321
    %v1325 = vadd.f32 %v1318, %v1322
    %v1326 = vadd.f32 %v1319, %v1323
    %v1327 = vsel %vm315, %v1324, -inf
    %1328 = vmax.xlane.f32.xlu0 %v1327
    %v1329 = vpop.xlane.xlu0 %1328
    %v1330 = vsel %vm315, %v1325, -inf
    %1331 = vmax.xlane.f32.xlu0 %v1330
    %v1332 = vpop.xlane.xlu0 %1331
    %v1333 = vsel %vm322, %v1326, -inf
    %1334 = vmax.xlane.f32.xlu0 %v1333
    %v1335 = vpop.xlane.xlu0 %1334
    %v1336 = vsub.f32 %v1324, %v1329
    %v1337 = vsub.f32 %v1325, %v1332
    %v1338 = vsub.f32 %v1326, %v1335
    %v1339 = vmul.f32 %v1336, 1.442695
    %v1340 = vpow.pop %v1339
    %v1341 = vmul.f32 %v1337, 1.442695
    %v1342 = vpow.pop %v1341
    %v1343 = vmul.f32 %v1338, 1.442695
    %v1344 = vpow.pop %v1343
    %v1345 = vsel %vm315, %v1340, 0.0
    %1346 = vadd.xlane.f32.xlu0 %v1345
    %v1347 = vpop.xlane.xlu0 %1346
    %v1348 = vsel %vm315, %v1342, 0.0
    %1349 = vadd.xlane.f32.xlu0 %v1348
    %v1350 = vpop.xlane.xlu0 %1349
    %v1351 = vsel %vm322, %v1344, 0.0
    %1352 = vadd.xlane.f32.xlu0 %v1351
    %v1353 = vpop.xlane.xlu0 %1352
    %v1354 = vrcp.pop %v1347
    %v1355 = vrcp.pop %v1350
    %v1356 = vrcp.pop %v1353
    %v1357 = vmul.f32 %v1340, %v1354
    %v1358 = vmul.f32 %v1342, %v1355
    %v1359 = vmul.f32 %v1344, %v1356
    %v1360 = vpack.c.bf16 %v1358, %v1357
    %v1361 = vpack.c.bf16 %v1359, %v1359
    %1362 = vrot.lane.b32.xlu0 %v352, 40
    %v1363 = vpop.permute.xlu0 %1362
    %1364 = vrot.lane.b32.xlu0 %v353, 40
    %v1365 = vpop.permute.xlu0 %1364
    %v1368 = vsel %vm315, %v1360, 0
    %v1371 = vsel %vm315, %v1361, 0
    %v1374 = vsel %vm367, %v1365, 0
    %1376 = vmatprep.subr.bf16.mxu0 0
    %1377 = vmatpush1.bf16.msra.mxu0 %v1363
    %1378 = vmatprep.subr.bf16.mxu0 0
    %1379 = vmatpush1.bf16.msra.mxu0 %v1374
    %1380 = vmatprep.subr.bf16.mxu0 0
    %1381 = vmatpush1.bf16.msra.mxu0 0
    %1382 = vmatprep.subr.bf16.mxu0 0
    %1383 = vmatpush1.bf16.msra.mxu0 0
    %1384 = vmatprep.subr.bf16.mxu0 0
    %1385 = vmatpush1.bf16.msra.mxu0 0
    %1386 = vmatprep.subr.bf16.mxu0 0
    %1387 = vmatpush1.bf16.msra.mxu0 0
    %1388 = vmatprep.subr.bf16.mxu0 0
    %1389 = vmatpush1.bf16.msra.mxu0 0
    %1390 = vmatprep.subr.bf16.mxu0 0
    %1391 = vmatpush1.bf16.msra.mxu0 0
    %1392 = vmatprep.subr.bf16.mxu0 0
    %1393 = vmatpush1.bf16.msra.mxu0 0
    %1394 = vmatprep.subr.bf16.mxu0 0
    %1395 = vmatpush1.bf16.msra.mxu0 0
    %1396 = vmatprep.subr.bf16.mxu0 0
    %1397 = vmatpush1.bf16.msra.mxu0 0
    %1398 = vmatprep.subr.bf16.mxu0 0
    %1399 = vmatpush1.bf16.msra.mxu0 0
    %1400 = vmatprep.subr.bf16.mxu0 0
    %1401 = vmatpush1.bf16.msra.mxu0 0
    %1402 = vmatprep.subr.bf16.mxu0 0
    %1403 = vmatpush1.bf16.msra.mxu0 0
    %1404 = vmatprep.subr.bf16.mxu0 0
    %1405 = vmatpush1.bf16.msra.mxu0 0
    %1406 = vmatprep.subr.bf16.mxu0 0
    %1407 = vmatpush1.bf16.msra.mxu0 0
    %1408 = vmatprep.mubr.bf16.mxu0 0
    %1409 = vmatmul.mubr.bf16.gmra.mrb[0].mxu0 %v1368
    %v1410 = vpop.f32.mrb[0].mxu0
    %v1411 = vadd.f32 0.0, %v1410
    %v1412 = vpop.f32.mrb[0].mxu0
    %v1413 = vpop.f32.mrb[0].mxu0
    %v1414 = vadd.f32 0.0, %v1413
    %v1415 = vpop.f32.mrb[0].mxu0
    %1416 = vmatprep.mubr.bf16.mxu0 0
    %1417 = vmatmul.mubr.bf16.gmra.mrb[0].mxu0 %v1371
    %v1418 = vpop.f32.mrb[0].mxu0
    %v1419 = vadd.f32 0.0, %v1418
    %v1420 = vpop.f32.mrb[0].mxu0
    %v1421 = vpop.f32.mrb[0].mxu0
    %v1422 = vpop.f32.mrb[0].mxu0
    %1423 = vdwg.mxu0
    %v1424 = vpack.c.bf16 %v1414, %v1411
    %v1425 = vpack.c.bf16 %v1419, %v1419
    %s1426 = scalar_lea.vmem %s3, 12
    %v1427 = vld [vmem:[%s1426] sm:$0xf]
    %v1429 = vsel %vm150, %v1424, 0
    %v1432 = vsel %vm150, %v1425, 0
    %v1435 = vsel %vm705, %v1427, 0
    %1437 = vmatprep.subr.bf16.mxu0 0
    %1438 = vmatpush1.bf16.msra.mxu0 %v1435
    %1439 = vmatprep.subr.bf16.mxu0 0
    %1440 = vmatpush1.bf16.msra.mxu0 0
    %1441 = vmatprep.subr.bf16.mxu0 0
    %1442 = vmatpush1.bf16.msra.mxu0 0
    %1443 = vmatprep.subr.bf16.mxu0 0
    %1444 = vmatpush1.bf16.msra.mxu0 0
    %1445 = vmatprep.subr.bf16.mxu0 0
    %1446 = vmatpush1.bf16.msra.mxu0 0
    %1447 = vmatprep.subr.bf16.mxu0 0
    %1448 = vmatpush1.bf16.msra.mxu0 0
    %1449 = vmatprep.subr.bf16.mxu0 0
    %1450 = vmatpush1.bf16.msra.mxu0 0
    %1451 = vmatprep.subr.bf16.mxu0 0
    %1452 = vmatpush1.bf16.msra.mxu0 0
    %1453 = vmatprep.subr.bf16.mxu0 0
    %1454 = vmatpush1.bf16.msra.mxu0 0
    %1455 = vmatprep.subr.bf16.mxu0 0
    %1456 = vmatpush1.bf16.msra.mxu0 0
    %1457 = vmatprep.subr.bf16.mxu0 0
    %1458 = vmatpush1.bf16.msra.mxu0 0
    %1459 = vmatprep.subr.bf16.mxu0 0
    %1460 = vmatpush1.bf16.msra.mxu0 0
    %1461 = vmatprep.subr.bf16.mxu0 0
    %1462 = vmatpush1.bf16.msra.mxu0 0
    %1463 = vmatprep.subr.bf16.mxu0 0
    %1464 = vmatpush1.bf16.msra.mxu0 0
    %1465 = vmatprep.subr.bf16.mxu0 0
    %1466 = vmatpush1.bf16.msra.mxu0 0
    %1467 = vmatprep.subr.bf16.mxu0 0
    %1468 = vmatpush1.bf16.msra.mxu0 0
    %1469 = vmatprep.mubr.bf16.mxu0 0
    %1470 = vmatmul.mubr.bf16.gmra.mrb[0].mxu0 %v1429
    %v1471 = vpop.f32.mrb[0].mxu0
    %v1472 = vadd.f32 0.0, %v1471
    %v1473 = vpop.f32.mrb[0].mxu0
    %v1474 = vpop.f32.mrb[0].mxu0
    %v1475 = vadd.f32 0.0, %v1474
    %v1476 = vpop.f32.mrb[0].mxu0
    %1477 = vmatprep.mubr.bf16.mxu0 0
    %1478 = vmatmul.mubr.bf16.gmra.mrb[0].mxu0 %v1432
    %v1479 = vpop.f32.mrb[0].mxu0
    %v1480 = vadd.f32 0.0, %v1479
    %v1481 = vpop.f32.mrb[0].mxu0
    %v1482 = vpop.f32.mrb[0].mxu0
    %v1483 = vpop.f32.mrb[0].mxu0
    %1484 = vdwg.mxu0
    %v1485 = vadd.f32 %v1148, %v1472
    %v1486 = vadd.f32 %v1149, %v1475
    %v1487 = vadd.f32 %v1150, %v1480
    %v1488 = vld [vmem:[%s4] sm:$0x1]
    %v1490 = vlaneseq
    %v1491 = vshrl.u32 %v1490, 7
    %v1492 = vsub.s32 0, %v1491
    %v1493 = vrot.slane %v1488, %v1492
    %v1495 = vadd.f32 %v1485, %v1493
    %v1496 = vadd.f32 %v1486, %v1493
    %v1497 = vadd.f32 %v1487, %v1493
    %v1498 = vld [vmem:[%s6] sm:$0x1]
    %v1499 = vld [vmem:[%s7] sm:$0x1]
    %v1500 = vsel %vm92, %v1495, 0.0
    %1501 = vadd.xlane.f32.xlu0 %v1500
    %v1502 = vpop.xlane.xlu0 %1501
    %v1503 = vsel %vm92, %v1496, 0.0
    %1504 = vadd.xlane.f32.xlu0 %v1503
    %v1505 = vpop.xlane.xlu0 %1504
    %vm1506 = vcmask 254976
    %v1507 = vsel %vm1506, %v1497, 0.0
    %1508 = vadd.xlane.f32.xlu0 %v1507
    %v1509 = vpop.xlane.xlu0 %1508
    %v1510 = vrcp.pop 32.0
    %v1511 = vmul.f32 %v1502, %v1510
    %v1512 = vmul.f32 %v1505, %v1510
    %v1513 = vmul.f32 %v1509, %v1510
    %v1514 = vsub.f32 %v1495, %v1511
    %v1515 = vsub.f32 %v1496, %v1512
    %v1516 = vsub.f32 %v1497, %v1513
    %v1517 = vmul.f32 %v1514, %v1514
    %v1518 = vmul.f32 %v1515, %v1515
    %v1519 = vmul.f32 %v1516, %v1516
    %v1520 = vsel %vm92, %v1517, 0.0
    %1521 = vadd.xlane.f32.xlu0 %v1520
    %v1522 = vpop.xlane.xlu0 %1521
    %v1523 = vsel %vm92, %v1518, 0.0
    %1524 = vadd.xlane.f32.xlu0 %v1523
    %v1525 = vpop.xlane.xlu0 %1524
    %v1526 = vsel %vm1506, %v1519, 0.0
    %1527 = vadd.xlane.f32.xlu0 %v1526
    %v1528 = vpop.xlane.xlu0 %1527
    %v1529 = vmul.f32 %v1522, %v1510
    %v1530 = vmul.f32 %v1525, %v1510
    %v1531 = vmul.f32 %v1528, %v1510
    %v1532 = vadd.f32 %v1529, 1e-05
    %v1533 = vadd.f32 %v1530, 1e-05
    %v1534 = vadd.f32 %v1531, 1e-05
    %v1535 = vrsqrt.pop %v1532
    %v1536 = vrsqrt.pop %v1533
    %v1537 = vrsqrt.pop %v1534
    %v1538 = vmul.f32 %v1514, %v1535
    %v1539 = vmul.f32 %v1515, %v1536
    %v1540 = vmul.f32 %v1516, %v1537
    %v1542 = vlaneseq
    %v1543 = vshrl.u32 %v1542, 7
    %v1544 = vsub.s32 0, %v1543
    %v1545 = vrot.slane %v1498, %v1544
    %v1547 = vmul.f32 %v1538, %v1545
    %v1548 = vmul.f32 %v1539, %v1545
    %v1549 = vmul.f32 %v1540, %v1545
    %v1551 = vlaneseq
    %v1552 = vshrl.u32 %v1551, 7
    %v1553 = vsub.s32 0, %v1552
    %v1554 = vrot.slane %v1499, %v1553
    %v1556 = vadd.f32 %v1547, %v1554
    %v1557 = vadd.f32 %v1548, %v1554
    %v1558 = vadd.f32 %v1549, %v1554
    %v1559 = vadd.f32 %v64, %v1556
    %v1560 = vadd.f32 %v65, %v1557
    %v1561 = vadd.f32 %v66, %v1558
    %v1562 = vpack.c.bf16 %v1560, %v1559
    %v1563 = vpack.c.bf16 %v1561, %v1561
    %v1564 = vld [vmem:[%s8] sm:$0xf]
    %v1565 = vld [vmem:[%s8 + $0x4] sm:$0xf]
    %v1566 = vld [vmem:[%s8 + $0x8] sm:$0xf]
    %v1567 = vld [vmem:[%s8 + $0xc] sm:$0xf]
    %v1568 = vld [vmem:[%s9] sm:$0x1]
    %v1570 = vlaneseq
    %v1571 = vshrl.u32 %v1570, 7
    %v1572 = vsub.s32 0, %v1571
    %v1573 = vrot.slane %v1568, %v1572
    %v1579 = vunpack.c.l.b16 %v1564
    %v1580 = vunpack.c.l.b16 %v1565
    %v1581 = vunpack.c.l.b16 %v1566
    %v1582 = vunpack.c.l.b16 %v1567
    %v1583 = vpack.c.b16 %v1580, %v1579
    %v1584 = vpack.c.b16 %v1582, %v1581
    %v1588 = vsel %vm92, %v1562, 0
    %v1591 = vsel %vm92, %v1563, 0
    %1593 = vmatprep.subr.bf16.mxu0 0
    %1594 = vmatpush1.bf16.msra.mxu0 %v1583
    %1595 = vmatprep.subr.bf16.mxu0 0
    %1596 = vmatpush1.bf16.msra.mxu0 %v1584
    %1597 = vmatprep.subr.bf16.mxu0 0
    %1598 = vmatpush1.bf16.msra.mxu0 0
    %1599 = vmatprep.subr.bf16.mxu0 0
    %1600 = vmatpush1.bf16.msra.mxu0 0
    %1601 = vmatprep.subr.bf16.mxu0 0
    %1602 = vmatpush1.bf16.msra.mxu0 0
    %1603 = vmatprep.subr.bf16.mxu0 0
    %1604 = vmatpush1.bf16.msra.mxu0 0
    %1605 = vmatprep.subr.bf16.mxu0 0
    %1606 = vmatpush1.bf16.msra.mxu0 0
    %1607 = vmatprep.subr.bf16.mxu0 0
    %1608 = vmatpush1.bf16.msra.mxu0 0
    %1609 = vmatprep.subr.bf16.mxu0 0
    %1610 = vmatpush1.bf16.msra.mxu0 0
    %1611 = vmatprep.subr.bf16.mxu0 0
    %1612 = vmatpush1.bf16.msra.mxu0 0
    %1613 = vmatprep.subr.bf16.mxu0 0
    %1614 = vmatpush1.bf16.msra.mxu0 0
    %1615 = vmatprep.subr.bf16.mxu0 0
    %1616 = vmatpush1.bf16.msra.mxu0 0
    %1617 = vmatprep.subr.bf16.mxu0 0
    %1618 = vmatpush1.bf16.msra.mxu0 0
    %1619 = vmatprep.subr.bf16.mxu0 0
    %1620 = vmatpush1.bf16.msra.mxu0 0
    %1621 = vmatprep.subr.bf16.mxu0 0
    %1622 = vmatpush1.bf16.msra.mxu0 0
    %1623 = vmatprep.subr.bf16.mxu0 0
    %1624 = vmatpush1.bf16.msra.mxu0 0
    %1625 = vmatprep.mubr.bf16.mxu0 0
    %1626 = vmatmul.mubr.bf16.gmra.mrb[0].mxu0 %v1588
    %v1627 = vpop.f32.mrb[0].mxu0
    %v1628 = vadd.f32 %v1573, %v1627
    %v1629 = vpop.f32.mrb[0].mxu0
    %v1630 = vpop.f32.mrb[0].mxu0
    %v1631 = vadd.f32 %v1573, %v1630
    %v1632 = vpop.f32.mrb[0].mxu0
    %1633 = vmatprep.mubr.bf16.mxu0 0
    %1634 = vmatmul.mubr.bf16.gmra.mrb[0].mxu0 %v1591
    %v1635 = vpop.f32.mrb[0].mxu0
    %v1636 = vadd.f32 %v1573, %v1635
    %v1637 = vpop.f32.mrb[0].mxu0
    %v1638 = vpop.f32.mrb[0].mxu0
    %v1639 = vpop.f32.mrb[0].mxu0
    %1640 = vdwg.mxu0
    %v1641 = vmul.f32 %v1628, 0.5
    %v1642 = vmul.f32 %v1631, 0.5
    %v1643 = vmul.f32 %v1636, 0.5
    %v1644 = vmul.f32 %v1628, 0.70710677
    %v1645 = vmul.f32 %v1631, 0.70710677
    %v1646 = vmul.f32 %v1636, 0.70710677
    %v1647 = verf.f32.pop %v1644
    %v1648 = verf.f32.pop %v1645
    %v1649 = verf.f32.pop %v1646
    %v1650 = vadd.f32 %v1647, 1.0
    %v1651 = vadd.f32 %v1648, 1.0
    %v1652 = vadd.f32 %v1649, 1.0
    %v1653 = vmul.f32 %v1641, %v1650
    %v1654 = vmul.f32 %v1642, %v1651
    %v1655 = vmul.f32 %v1643, %v1652
    %v1656 = vpack.c.bf16 %v1654, %v1653
    %v1657 = vpack.c.bf16 %v1655, %v1655
    %v1658 = vld [vmem:[%s10] sm:$0xf]
    %v1659 = vld [vmem:[%s10 + $0x4] sm:$0xf]
    %v1660 = vld [vmem:[%s10 + $0x8] sm:$0xf]
    %v1661 = vld [vmem:[%s10 + $0xc] sm:$0xf]
    %v1662 = vld [vmem:[%s10 + $0x10] sm:$0xf]
    %v1663 = vld [vmem:[%s10 + $0x14] sm:$0xf]
    %v1664 = vld [vmem:[%s10 + $0x18] sm:$0xf]
    %v1665 = vld [vmem:[%s10 + $0x1c] sm:$0xf]
    %v1666 = vld [vmem:[%s10 + $0x20] sm:$0xf]
    %v1667 = vld [vmem:[%s10 + $0x24] sm:$0xf]
    %v1668 = vld [vmem:[%s10 + $0x28] sm:$0xf]
    %v1669 = vld [vmem:[%s10 + $0x2c] sm:$0xf]
    %v1670 = vld [vmem:[%s10 + $0x30] sm:$0xf]
    %v1671 = vld [vmem:[%s10 + $0x34] sm:$0xf]
    %v1672 = vld [vmem:[%s10 + $0x38] sm:$0xf]
    %v1673 = vld [vmem:[%s10 + $0x3c] sm:$0xf]
    %v1674 = vld [vmem:[%s11] sm:$0x1]
    %v1676 = vlaneseq
    %v1677 = vshrl.u32 %v1676, 7
    %v1678 = vsub.s32 0, %v1677
    %v1679 = vrot.slane %v1674, %v1678
    %v1697 = vunpack.c.l.b16 %v1658
    %v1698 = vunpack.c.l.b16 %v1659
    %v1699 = vunpack.c.l.b16 %v1660
    %v1700 = vunpack.c.l.b16 %v1661
    %v1701 = vunpack.c.l.b16 %v1662
    %v1702 = vunpack.c.l.b16 %v1663
    %v1703 = vunpack.c.l.b16 %v1664
    %v1704 = vunpack.c.l.b16 %v1665
    %v1705 = vunpack.c.l.b16 %v1666
    %v1706 = vunpack.c.l.b16 %v1667
    %v1707 = vunpack.c.l.b16 %v1668
    %v1708 = vunpack.c.l.b16 %v1669
    %v1709 = vunpack.c.l.b16 %v1670
    %v1710 = vunpack.c.l.b16 %v1671
    %v1711 = vunpack.c.l.b16 %v1672
    %v1712 = vunpack.c.l.b16 %v1673
    %v1713 = vpack.c.b16 %v1698, %v1697
    %v1714 = vpack.c.b16 %v1700, %v1699
    %v1715 = vpack.c.b16 %v1702, %v1701
    %v1716 = vpack.c.b16 %v1704, %v1703
    %v1717 = vpack.c.b16 %v1706, %v1705
    %v1718 = vpack.c.b16 %v1708, %v1707
    %v1719 = vpack.c.b16 %v1710, %v1709
    %v1720 = vpack.c.b16 %v1712, %v1711
    %1729 = vmatprep.subr.bf16.mxu0 0
    %1730 = vmatpush1.bf16.msra.mxu0 %v1713
    %1731 = vmatprep.subr.bf16.mxu0 0
    %1732 = vmatpush1.bf16.msra.mxu0 %v1714
    %1733 = vmatprep.subr.bf16.mxu0 0
    %1734 = vmatpush1.bf16.msra.mxu0 %v1715
    %1735 = vmatprep.subr.bf16.mxu0 0
    %1736 = vmatpush1.bf16.msra.mxu0 %v1716
    %1737 = vmatprep.subr.bf16.mxu0 0
    %1738 = vmatpush1.bf16.msra.mxu0 %v1717
    %1739 = vmatprep.subr.bf16.mxu0 0
    %1740 = vmatpush1.bf16.msra.mxu0 %v1718
    %1741 = vmatprep.subr.bf16.mxu0 0
    %1742 = vmatpush1.bf16.msra.mxu0 %v1719
    %1743 = vmatprep.subr.bf16.mxu0 0
    %1744 = vmatpush1.bf16.msra.mxu0 %v1720
    %1745 = vmatprep.subr.bf16.mxu0 0
    %1746 = vmatpush1.bf16.msra.mxu0 0
    %1747 = vmatprep.subr.bf16.mxu0 0
    %1748 = vmatpush1.bf16.msra.mxu0 0
    %1749 = vmatprep.subr.bf16.mxu0 0
    %1750 = vmatpush1.bf16.msra.mxu0 0
    %1751 = vmatprep.subr.bf16.mxu0 0
    %1752 = vmatpush1.bf16.msra.mxu0 0
    %1753 = vmatprep.subr.bf16.mxu0 0
    %1754 = vmatpush1.bf16.msra.mxu0 0
    %1755 = vmatprep.subr.bf16.mxu0 0
    %1756 = vmatpush1.bf16.msra.mxu0 0
    %1757 = vmatprep.subr.bf16.mxu0 0
    %1758 = vmatpush1.bf16.msra.mxu0 0
    %1759 = vmatprep.subr.bf16.mxu0 0
    %1760 = vmatpush1.bf16.msra.mxu0 0
    %1761 = vmatprep.mubr.bf16.mxu0 0
    %1762 = vmatmul.mubr.bf16.gmra.mrb[0].mxu0 %v1656
    %v1763 = vpop.f32.mrb[0].mxu0
    %v1764 = vadd.f32 %v1679, %v1763
    %v1765 = vpop.f32.mrb[0].mxu0
    %v1766 = vpop.f32.mrb[0].mxu0
    %v1767 = vadd.f32 %v1679, %v1766
    %v1768 = vpop.f32.mrb[0].mxu0
    %1769 = vmatprep.mubr.bf16.mxu0 0
    %1770 = vmatmul.mubr.bf16.gmra.mrb[0].mxu0 %v1657
    %v1771 = vpop.f32.mrb[0].mxu0
    %v1772 = vadd.f32 %v1679, %v1771
    %v1773 = vpop.f32.mrb[0].mxu0
    %v1774 = vpop.f32.mrb[0].mxu0
    %v1775 = vpop.f32.mrb[0].mxu0
    %1776 = vdwg.mxu0
    %v1777 = vld [vmem:[%s12] sm:$0x1]
    %v1778 = vld [vmem:[%s13] sm:$0x1]
    %v1779 = vsel %vm92, %v1764, 0.0
    %1780 = vadd.xlane.f32.xlu0 %v1779
    %v1781 = vpop.xlane.xlu0 %1780
    %v1782 = vsel %vm92, %v1767, 0.0
    %1783 = vadd.xlane.f32.xlu0 %v1782
    %v1784 = vpop.xlane.xlu0 %1783
    %v1785 = vsel %vm1506, %v1772, 0.0
    %1786 = vadd.xlane.f32.xlu0 %v1785
    %v1787 = vpop.xlane.xlu0 %1786
    %v1788 = vmul.f32 %v1781, %v1510
    %v1789 = vmul.f32 %v1784, %v1510
    %v1790 = vmul.f32 %v1787, %v1510
    %v1791 = vsub.f32 %v1764, %v1788
    %v1792 = vsub.f32 %v1767, %v1789
    %v1793 = vsub.f32 %v1772, %v1790
    %v1794 = vmul.f32 %v1791, %v1791
    %v1795 = vmul.f32 %v1792, %v1792
    %v1796 = vmul.f32 %v1793, %v1793
    %v1797 = vsel %vm92, %v1794, 0.0
    %1798 = vadd.xlane.f32.xlu0 %v1797
    %v1799 = vpop.xlane.xlu0 %1798
    %v1800 = vsel %vm92, %v1795, 0.0
    %1801 = vadd.xlane.f32.xlu0 %v1800
    %v1802 = vpop.xlane.xlu0 %1801
    %v1803 = vsel %vm1506, %v1796, 0.0
    %1804 = vadd.xlane.f32.xlu0 %v1803
    %v1805 = vpop.xlane.xlu0 %1804
    %v1806 = vmul.f32 %v1799, %v1510
    %v1807 = vmul.f32 %v1802, %v1510
    %v1808 = vmul.f32 %v1805, %v1510
    %v1809 = vadd.f32 %v1806, 1e-05
    %v1810 = vadd.f32 %v1807, 1e-05
    %v1811 = vadd.f32 %v1808, 1e-05
    %v1812 = vrsqrt.pop %v1809
    %v1813 = vrsqrt.pop %v1810
    %v1814 = vrsqrt.pop %v1811
    %v1815 = vmul.f32 %v1791, %v1812
    %v1816 = vmul.f32 %v1792, %v1813
    %v1817 = vmul.f32 %v1793, %v1814
    %v1819 = vlaneseq
    %v1820 = vshrl.u32 %v1819, 7
    %v1821 = vsub.s32 0, %v1820
    %v1822 = vrot.slane %v1777, %v1821
    %v1824 = vmul.f32 %v1815, %v1822
    %v1825 = vmul.f32 %v1816, %v1822
    %v1826 = vmul.f32 %v1817, %v1822
    %v1828 = vlaneseq
    %v1829 = vshrl.u32 %v1828, 7
    %v1830 = vsub.s32 0, %v1829
    %v1831 = vrot.slane %v1778, %v1830
    %v1833 = vadd.f32 %v1824, %v1831
    %v1834 = vadd.f32 %v1825, %v1831
    %v1835 = vadd.f32 %v1826, %v1831
    %v1836 = vadd.f32 %v1559, %v1833
    %v1837 = vadd.f32 %v1560, %v1834
    %v1838 = vadd.f32 %v1561, %v1835
    %1839 = vst.msk [vmem:[%s15] sm:$0xff] %vm92, %v1836
    %1840 = vst.msk [vmem:[%s15 + $0x8] sm:$0xff] %vm92, %v1837
    %1841 = vst.msk [vmem:[%s15 + $0x10] sm:$0x3] %vm1506, %v1838
    // Predicated region
    $region66: #{swin_forward.11} parent=1 // pred_check
      _
    $region67: #{swin_forward.11} parent=1 // pred_check_branch
      %1843 = sbr.rel (0) target = $region69
    $region68: #{swin_forward.11} parent=1 // pred_region
      _
    $region69: #{swin_forward.11} parent=1 // pred_fallthru
      _
    // Predicated region
    $region70: #{swin_forward.11} parent=1 // pred_check
      _
    $region71: #{swin_forward.11} parent=1 // pred_check_branch
      %1845 = sbr.rel (0) target = $region73
    $region72: #{swin_forward.11} parent=1 // pred_region
      _
    $region73: #{swin_forward.11} parent=1 // pred_fallthru
      _
    %1846 = vsyncpa [#allocation3], 1

</llo_original>
